<compile_context>
chip_gen: v5e
topology: v5e:2x2
jax: 0.10.0
libtpu: 0.0.40
codegen_flags: <defaults>
</compile_context>

<pallas_src>
import math

import numpy as np
import jax
import jax.numpy as jnp
from jax.experimental import pallas as pl
from jax.experimental.pallas import tpu as pltpu

# ---------------- configuration (small, deterministic) ----------------
T = 1000
IMG_SHAPE = (3, 8, 8)                                    # small spatial demo
STATE_SIZE = IMG_SHAPE[0] * IMG_SHAPE[1] * IMG_SHAPE[2]  # D = 192
NUM_CLASSES = 10
HIDDEN = 128                     # lane-width aligned hidden size
N_ODE_STEPS = 8                  # fixed RK4 steps
ROW_BLOCK = 16                   # rows (image,class copies) per grid step
LOG_2PI = math.log(2.0 * math.pi)

# diffusion schedule (host-side numpy; baked into the kernel as constants)
_BETA = np.linspace(0.1 / 1000.0, 20.0 / 1000.0, T, dtype=np.float64)
_ALPHA_BAR = np.cumprod(1.0 - _BETA)                     # alpha.cumprod
_BETA_S = _BETA * float(T)                               # module's self.beta = beta * T

# RK4 sub-times over [t0, t1]; 2*N+1 distinct evaluation times
T0, T1 = 1e-5, 1.0 - 1e-5
H_STEP = (T1 - T0) / N_ODE_STEPS
N_SUB = 2 * N_ODE_STEPS + 1
N_SUB_PAD = ((N_SUB + 7) // 8) * 8                       # sublane-aligned temb table
_SUB_TIDX = [min(int(round((T0 + 0.5 * H_STEP * j) * T)), T - 1)
             for j in range(N_SUB)]
BETA_SUB = [float(_BETA_S[i]) for i in _SUB_TIDX]                  # beta[t]*T
RS1M_SUB = [float(1.0 / math.sqrt(1.0 - _ALPHA_BAR[i])) for i in _SUB_TIDX]


# ---------------- deterministic synthetic "unet" parameters ----------------
def _build_temb_table():
    freqs = np.exp(-np.linspace(0.0, 6.0, HIDDEN // 2))
    tbl = np.zeros((N_SUB_PAD, HIDDEN), np.float32)
    for j, tidx in enumerate(_SUB_TIDX):
        tf = float(tidx)
        tbl[j, : HIDDEN // 2] = np.sin(tf * freqs)
        tbl[j, HIDDEN // 2:] = np.cos(tf * freqs)
    return tbl


def init_params(key):
    # TODO(synk): the real module loads a pretrained UNet via get_unet(); replaced
    # by a deterministic class/time-conditional score MLP with the same
    # (N, C, H, W) -> (N, C, H, W) contract (flattened to (N, D)).
    k1, k2, k3 = jax.random.split(key, 3)
    w1 = (jax.random.normal(k1, (STATE_SIZE, HIDDEN), jnp.float32) * 0.02
          ).astype(jnp.bfloat16)
    w2 = (jax.random.normal(k2, (HIDDEN, STATE_SIZE), jnp.float32) * 0.02
          ).astype(jnp.bfloat16)
    b1 = jnp.zeros((1, HIDDEN), jnp.float32)
    yemb = jax.random.normal(k3, (NUM_CLASSES, HIDDEN), jnp.float32) * 0.02
    temb = jnp.asarray(_build_temb_table(), jnp.float32)
    return dict(w1=w1, w2=w2, b1=b1, yemb=yemb, temb=temb)


# ---------------- fused Pallas kernel: RK4 likelihood ODE + bpd ----------------
def _sbgc_fused_kernel(x_ref, bias_ref, w1_ref, w2_ref, temb_ref, bpd_ref):
    """Whole likelihood ODE (RK4) + bpd epilogue for one block of rows."""
    # transform = lambda x: (x - 0.5) * 2
    xs = (x_ref[...] - 0.5) * 2.0                         # (R, D) f32
    dl = jnp.zeros((xs.shape[0], 1), jnp.float32)         # accumulated dloglik/dt

    def rhs(sub, xcur):
        beta_t = BETA_SUB[sub]          # compile-time scalar: beta[t] * T
        rs1m = RS1M_SUB[sub]            # compile-time: 1/sqrt(1 - alpha_bar[t])
        temb = temb_ref[pl.ds(sub, 1), :]                 # (1, H) static slice
        # synthetic eps-prediction net: two MXU matmuls (bf16 in, f32 acc)
        hpre = jnp.dot(xcur.astype(jnp.bfloat16), w1_ref[...],
                       preferred_element_type=jnp.float32)
        hact = jnp.tanh(hpre + bias_ref[...] + temb)      # f32 elementwise path
        pre = jnp.dot(hact.astype(jnp.bfloat16), w2_ref[...],
                      preferred_element_type=jnp.float32)
        # score = -eps / sqrt(1 - alpha_bar_t)
        score = -pre * rs1m
        # drift = -0.5*beta_t*x - 0.5*diffusion^2*score, diffusion^2 = beta_t
        drift = (-0.5 * beta_t) * xcur - (0.5 * beta_t) * score
        # huanran approximator: dlikelihood/dt = sum(score * f, dim=1, keepdim)
        tr = jnp.sum(score * drift, axis=1, keepdims=True)
        return drift, tr

    # TODO(synk): torchdiffeq dopri5 adaptive-step solver has no clean Pallas
    # equivalent; fixed-step RK4 over the same [t0, t1] interval instead.
    h = H_STEP
    for i in range(N_ODE_STEPS):                          # fully unrolled, static
        s0 = 2 * i
        kx1, kd1 = rhs(s0, xs)
        kx2, kd2 = rhs(s0 + 1, xs + (0.5 * h) * kx1)
        kx3, kd3 = rhs(s0 + 1, xs + (0.5 * h) * kx2)
        kx4, kd4 = rhs(s0 + 2, xs + h * kx3)
        xs = xs + (h / 6.0) * (kx1 + 2.0 * kx2 + 2.0 * kx3 + kx4)
        dl = dl + (h / 6.0) * (kd1 + 2.0 * kd2 + 2.0 * kd3 + kd4)

    # likelihood / bpd epilogue (was a separate pallas_call before)
    ll_latent = (-0.5 * jnp.sum(xs * xs, axis=1, keepdims=True)
                 - 0.5 * float(STATE_SIZE) * LOG_2PI)
    log_likelihood = dl + ll_latent
    bpd_ref[...] = (-log_likelihood / float(STATE_SIZE) / math.log(2.0)
                    + (8.0 - 1.0))


# ---------------- wrapper: batch*classes rows, one fused call ----------------
@jax.jit
def sbgc_forward(params, x):
    """x: (batch, C, H, W) -> logits (batch, num_classes) = -bpd."""
    batch = x.shape[0]
    rows = batch * NUM_CLASSES
    rows_pad = ((rows + ROW_BLOCK - 1) // ROW_BLOCK) * ROW_BLOCK
    pad = rows_pad - rows

    # one row per (image, class); y = arange(num_classes) per image
    x_rows = jnp.repeat(x.reshape(batch, STATE_SIZE), NUM_CLASSES, axis=0)
    y = jnp.tile(jnp.arange(NUM_CLASSES, dtype=jnp.int32), batch)
    bias_rows = params["b1"] + params["yemb"][y]          # (rows, HIDDEN) f32

    x_rows = jnp.pad(x_rows, ((0, pad), (0, 0)))
    bias_rows = jnp.pad(bias_rows, ((0, pad), (0, 0)))

    bpd = pl.pallas_call(
        _sbgc_fused_kernel,
        out_shape=jax.ShapeDtypeStruct((rows_pad, 1), jnp.float32),
        grid_spec=pltpu.PrefetchScalarGridSpec(
            num_scalar_prefetch=0,
            grid=(rows_pad // ROW_BLOCK,),
            in_specs=[
                pl.BlockSpec((ROW_BLOCK, STATE_SIZE), lambda i: (i, 0)),   # x rows
                pl.BlockSpec((ROW_BLOCK, HIDDEN), lambda i: (i, 0)),       # b1+yemb
                pl.BlockSpec((STATE_SIZE, HIDDEN), lambda i: (0, 0)),      # w1 (resident)
                pl.BlockSpec((HIDDEN, STATE_SIZE), lambda i: (0, 0)),      # w2 (resident)
                pl.BlockSpec((N_SUB_PAD, HIDDEN), lambda i: (0, 0)),       # temb table
            ],
            out_specs=pl.BlockSpec((ROW_BLOCK, 1), lambda i: (i, 0)),
        ),
        compiler_params=pltpu.CompilerParams(
            dimension_semantics=("parallel",)),            # megacore on v7x
    )(x_rows, bias_rows, params["w1"], params["w2"], params["temb"])

    return -bpd[:rows, 0].reshape(batch, NUM_CLASSES)


if __name__ == "__main__":
    key = jax.random.PRNGKey(0)
    pkey, xkey = jax.random.split(key)
    params = init_params(pkey)
    x = jax.random.uniform(xkey, (2,) + IMG_SHAPE, jnp.float32)  # batch=2 images
    logits = sbgc_forward(params, x)
    jax.block_until_ready(logits)
    assert logits.shape == (2, NUM_CLASSES)
    assert bool(jnp.all(jnp.isfinite(logits)))
    print("KERNEL_OK")
</pallas_src>

<mosaic_0001>
module attributes {stable_mosaic.version = 11 : i64} {
  func.func @_sbgc_fused_kernel(%arg0: i32, %arg1: memref<16x192xf32, #tpu.memory_space<vmem>>, %arg2: memref<16x128xf32, #tpu.memory_space<vmem>>, %arg3: memref<192x128xbf16, #tpu.memory_space<vmem>>, %arg4: memref<128x192xbf16, #tpu.memory_space<vmem>>, %arg5: memref<24x128xf32, #tpu.memory_space<vmem>>, %arg6: memref<16x1xf32, #tpu.memory_space<vmem>>) attributes {dimension_semantics = [#tpu.dimension_semantics<parallel>], iteration_bounds = array<i64: 2>, scalar_prefetch = 0 : i64, scratch_operands = 0 : i64, tpu.core_type = #tpu.core_type<tc>, window_params = [{transform_indices = @transform_0, window_bounds = array<i64: 16, 192>}, {transform_indices = @transform_1, window_bounds = array<i64: 16, 128>}, {pipeline_mode = #tpu.pipeline_mode<synchronous>, transform_indices = @transform_2, window_bounds = array<i64: 192, 128>}, {pipeline_mode = #tpu.pipeline_mode<synchronous>, transform_indices = @transform_3, window_bounds = array<i64: 128, 192>}, {pipeline_mode = #tpu.pipeline_mode<synchronous>, transform_indices = @transform_4, window_bounds = array<i64: 24, 128>}, {transform_indices = @transform_5, window_bounds = array<i64: 16, 1>}]} {
    %c0 = arith.constant 0 : index
    %c0_0 = arith.constant 0 : index
    %0 = vector.load %arg1[%c0, %c0_0] : memref<16x192xf32, #tpu.memory_space<vmem>>, vector<16x192xf32>
    %cst = arith.constant 5.000000e-01 : f32
    %1 = vector.broadcast %cst : f32 to vector<16x192xf32>
    %2 = arith.subf %0, %1 : vector<16x192xf32>
    %cst_1 = arith.constant 2.000000e+00 : f32
    %3 = vector.broadcast %cst_1 : f32 to vector<16x192xf32>
    %4 = arith.mulf %2, %3 : vector<16x192xf32>
    %cst_2 = arith.constant 0.000000e+00 : f32
    %5 = vector.broadcast %cst_2 : f32 to vector<16x1xf32>
    %c0_3 = arith.constant 0 : index
    %c0_4 = arith.constant 0 : index
    %6 = vector.load %arg5[%c0_3, %c0_4] : memref<24x128xf32, #tpu.memory_space<vmem>>, vector<1x128xf32>
    %7 = arith.truncf %4 : vector<16x192xf32> to vector<16x192xbf16>
    %c0_5 = arith.constant 0 : index
    %c0_6 = arith.constant 0 : index
    %8 = vector.load %arg3[%c0_5, %c0_6] : memref<192x128xbf16, #tpu.memory_space<vmem>>, vector<192x128xbf16>
    %cst_7 = arith.constant dense<0.000000e+00> : vector<16x128xf32>
    %9 = tpu.matmul %7, %8, %cst_7 {dimension_numbers = #tpu.dot_dimension_numbers<[1], [0], [0], [1], [0, 0, 1, 1], [], []>} : vector<16x192xbf16>, vector<192x128xbf16>, vector<16x128xf32> -> vector<16x128xf32>
    %c0_8 = arith.constant 0 : index
    %c0_9 = arith.constant 0 : index
    %10 = vector.load %arg2[%c0_8, %c0_9] : memref<16x128xf32, #tpu.memory_space<vmem>>, vector<16x128xf32>
    %11 = arith.addf %9, %10 : vector<16x128xf32>
    %12 = vector.broadcast %6 : vector<1x128xf32> to vector<16x128xf32>
    %13 = arith.addf %11, %12 : vector<16x128xf32>
    %14 = math.tanh %13 : vector<16x128xf32>
    %15 = arith.truncf %14 : vector<16x128xf32> to vector<16x128xbf16>
    %c0_10 = arith.constant 0 : index
    %c0_11 = arith.constant 0 : index
    %16 = vector.load %arg4[%c0_10, %c0_11] : memref<128x192xbf16, #tpu.memory_space<vmem>>, vector<128x192xbf16>
    %cst_12 = arith.constant dense<0.000000e+00> : vector<16x192xf32>
    %17 = tpu.matmul %15, %16, %cst_12 {dimension_numbers = #tpu.dot_dimension_numbers<[1], [0], [0], [1], [0, 0, 1, 1], [], []>} : vector<16x128xbf16>, vector<128x192xbf16>, vector<16x192xf32> -> vector<16x192xf32>
    %cst_13 = arith.constant 0.000000e+00 : f32
    %18 = vector.broadcast %cst_13 : f32 to vector<16x192xf32>
    %19 = arith.subf %18, %17 : vector<16x192xf32>
    %cst_14 = arith.constant 1.000000e+02 : f32
    %20 = vector.broadcast %cst_14 : f32 to vector<16x192xf32>
    %21 = arith.mulf %19, %20 : vector<16x192xf32>
    %cst_15 = arith.constant -5.000000e-02 : f32
    %22 = vector.broadcast %cst_15 : f32 to vector<16x192xf32>
    %23 = arith.mulf %22, %4 : vector<16x192xf32>
    %cst_16 = arith.constant 5.000000e-02 : f32
    %24 = vector.broadcast %cst_16 : f32 to vector<16x192xf32>
    %25 = arith.mulf %24, %21 : vector<16x192xf32>
    %26 = arith.subf %23, %25 : vector<16x192xf32>
    %27 = arith.mulf %21, %26 : vector<16x192xf32>
    %cst_17 = arith.constant dense<0.000000e+00> : vector<16xf32>
    %28 = vector.multi_reduction <add>, %27, %cst_17 [1] : vector<16x192xf32> to vector<16xf32>
    %29 = vector.shape_cast %28 : vector<16xf32> to vector<16x1xf32>
    %cst_18 = arith.constant 0.0624987483 : f32
    %30 = vector.broadcast %cst_18 : f32 to vector<16x192xf32>
    %31 = arith.mulf %30, %26 : vector<16x192xf32>
    %32 = arith.addf %4, %31 : vector<16x192xf32>
    %c1 = arith.constant 1 : index
    %c0_19 = arith.constant 0 : index
    %33 = vector.load %arg5[%c1, %c0_19] : memref<24x128xf32, #tpu.memory_space<vmem>>, vector<1x128xf32>
    %34 = arith.truncf %32 : vector<16x192xf32> to vector<16x192xbf16>
    %c0_20 = arith.constant 0 : index
    %c0_21 = arith.constant 0 : index
    %35 = vector.load %arg3[%c0_20, %c0_21] : memref<192x128xbf16, #tpu.memory_space<vmem>>, vector<192x128xbf16>
    %cst_22 = arith.constant dense<0.000000e+00> : vector<16x128xf32>
    %36 = tpu.matmul %34, %35, %cst_22 {dimension_numbers = #tpu.dot_dimension_numbers<[1], [0], [0], [1], [0, 0, 1, 1], [], []>} : vector<16x192xbf16>, vector<192x128xbf16>, vector<16x128xf32> -> vector<16x128xf32>
    %c0_23 = arith.constant 0 : index
    %c0_24 = arith.constant 0 : index
    %37 = vector.load %arg2[%c0_23, %c0_24] : memref<16x128xf32, #tpu.memory_space<vmem>>, vector<16x128xf32>
    %38 = arith.addf %36, %37 : vector<16x128xf32>
    %39 = vector.broadcast %33 : vector<1x128xf32> to vector<16x128xf32>
    %40 = arith.addf %38, %39 : vector<16x128xf32>
    %41 = math.tanh %40 : vector<16x128xf32>
    %42 = arith.truncf %41 : vector<16x128xf32> to vector<16x128xbf16>
    %c0_25 = arith.constant 0 : index
    %c0_26 = arith.constant 0 : index
    %43 = vector.load %arg4[%c0_25, %c0_26] : memref<128x192xbf16, #tpu.memory_space<vmem>>, vector<128x192xbf16>
    %cst_27 = arith.constant dense<0.000000e+00> : vector<16x192xf32>
    %44 = tpu.matmul %42, %43, %cst_27 {dimension_numbers = #tpu.dot_dimension_numbers<[1], [0], [0], [1], [0, 0, 1, 1], [], []>} : vector<16x128xbf16>, vector<128x192xbf16>, vector<16x192xf32> -> vector<16x192xf32>
    %cst_28 = arith.constant 0.000000e+00 : f32
    %45 = vector.broadcast %cst_28 : f32 to vector<16x192xf32>
    %46 = arith.subf %45, %44 : vector<16x192xf32>
    %cst_29 = arith.constant 4.68747234 : f32
    %47 = vector.broadcast %cst_29 : f32 to vector<16x192xf32>
    %48 = arith.mulf %46, %47 : vector<16x192xf32>
    %cst_30 = arith.constant -0.677477479 : f32
    %49 = vector.broadcast %cst_30 : f32 to vector<16x192xf32>
    %50 = arith.mulf %49, %32 : vector<16x192xf32>
    %cst_31 = arith.constant 0.677477479 : f32
    %51 = vector.broadcast %cst_31 : f32 to vector<16x192xf32>
    %52 = arith.mulf %51, %48 : vector<16x192xf32>
    %53 = arith.subf %50, %52 : vector<16x192xf32>
    %54 = arith.mulf %48, %53 : vector<16x192xf32>
    %cst_32 = arith.constant dense<0.000000e+00> : vector<16xf32>
    %55 = vector.multi_reduction <add>, %54, %cst_32 [1] : vector<16x192xf32> to vector<16xf32>
    %56 = vector.shape_cast %55 : vector<16xf32> to vector<16x1xf32>
    %cst_33 = arith.constant 0.0624987483 : f32
    %57 = vector.broadcast %cst_33 : f32 to vector<16x192xf32>
    %58 = arith.mulf %57, %53 : vector<16x192xf32>
    %59 = arith.addf %4, %58 : vector<16x192xf32>
    %c1_34 = arith.constant 1 : index
    %c0_35 = arith.constant 0 : index
    %60 = vector.load %arg5[%c1_34, %c0_35] : memref<24x128xf32, #tpu.memory_space<vmem>>, vector<1x128xf32>
    %61 = arith.truncf %59 : vector<16x192xf32> to vector<16x192xbf16>
    %c0_36 = arith.constant 0 : index
    %c0_37 = arith.constant 0 : index
    %62 = vector.load %arg3[%c0_36, %c0_37] : memref<192x128xbf16, #tpu.memory_space<vmem>>, vector<192x128xbf16>
    %cst_38 = arith.constant dense<0.000000e+00> : vector<16x128xf32>
    %63 = tpu.matmul %61, %62, %cst_38 {dimension_numbers = #tpu.dot_dimension_numbers<[1], [0], [0], [1], [0, 0, 1, 1], [], []>} : vector<16x192xbf16>, vector<192x128xbf16>, vector<16x128xf32> -> vector<16x128xf32>
    %c0_39 = arith.constant 0 : index
    %c0_40 = arith.constant 0 : index
    %64 = vector.load %arg2[%c0_39, %c0_40] : memref<16x128xf32, #tpu.memory_space<vmem>>, vector<16x128xf32>
    %65 = arith.addf %63, %64 : vector<16x128xf32>
    %66 = vector.broadcast %60 : vector<1x128xf32> to vector<16x128xf32>
    %67 = arith.addf %65, %66 : vector<16x128xf32>
    %68 = math.tanh %67 : vector<16x128xf32>
    %69 = arith.truncf %68 : vector<16x128xf32> to vector<16x128xbf16>
    %c0_41 = arith.constant 0 : index
    %c0_42 = arith.constant 0 : index
    %70 = vector.load %arg4[%c0_41, %c0_42] : memref<128x192xbf16, #tpu.memory_space<vmem>>, vector<128x192xbf16>
    %cst_43 = arith.constant dense<0.000000e+00> : vector<16x192xf32>
    %71 = tpu.matmul %69, %70, %cst_43 {dimension_numbers = #tpu.dot_dimension_numbers<[1], [0], [0], [1], [0, 0, 1, 1], [], []>} : vector<16x128xbf16>, vector<128x192xbf16>, vector<16x192xf32> -> vector<16x192xf32>
    %cst_44 = arith.constant 0.000000e+00 : f32
    %72 = vector.broadcast %cst_44 : f32 to vector<16x192xf32>
    %73 = arith.subf %72, %71 : vector<16x192xf32>
    %cst_45 = arith.constant 4.68747234 : f32
    %74 = vector.broadcast %cst_45 : f32 to vector<16x192xf32>
    %75 = arith.mulf %73, %74 : vector<16x192xf32>
    %cst_46 = arith.constant -0.677477479 : f32
    %76 = vector.broadcast %cst_46 : f32 to vector<16x192xf32>
    %77 = arith.mulf %76, %59 : vector<16x192xf32>
    %cst_47 = arith.constant 0.677477479 : f32
    %78 = vector.broadcast %cst_47 : f32 to vector<16x192xf32>
    %79 = arith.mulf %78, %75 : vector<16x192xf32>
    %80 = arith.subf %77, %79 : vector<16x192xf32>
    %81 = arith.mulf %75, %80 : vector<16x192xf32>
    %cst_48 = arith.constant dense<0.000000e+00> : vector<16xf32>
    %82 = vector.multi_reduction <add>, %81, %cst_48 [1] : vector<16x192xf32> to vector<16xf32>
    %83 = vector.shape_cast %82 : vector<16xf32> to vector<16x1xf32>
    %cst_49 = arith.constant 0.124997497 : f32
    %84 = vector.broadcast %cst_49 : f32 to vector<16x192xf32>
    %85 = arith.mulf %84, %80 : vector<16x192xf32>
    %86 = arith.addf %4, %85 : vector<16x192xf32>
    %c2 = arith.constant 2 : index
    %c0_50 = arith.constant 0 : index
    %87 = vector.load %arg5[%c2, %c0_50] : memref<24x128xf32, #tpu.memory_space<vmem>>, vector<1x128xf32>
    %88 = arith.truncf %86 : vector<16x192xf32> to vector<16x192xbf16>
    %c0_51 = arith.constant 0 : index
    %c0_52 = arith.constant 0 : index
    %89 = vector.load %arg3[%c0_51, %c0_52] : memref<192x128xbf16, #tpu.memory_space<vmem>>, vector<192x128xbf16>
    %cst_53 = arith.constant dense<0.000000e+00> : vector<16x128xf32>
    %90 = tpu.matmul %88, %89, %cst_53 {dimension_numbers = #tpu.dot_dimension_numbers<[1], [0], [0], [1], [0, 0, 1, 1], [], []>} : vector<16x192xbf16>, vector<192x128xbf16>, vector<16x128xf32> -> vector<16x128xf32>
    %c0_54 = arith.constant 0 : index
    %c0_55 = arith.constant 0 : index
    %91 = vector.load %arg2[%c0_54, %c0_55] : memref<16x128xf32, #tpu.memory_space<vmem>>, vector<16x128xf32>
    %92 = arith.addf %90, %91 : vector<16x128xf32>
    %93 = vector.broadcast %87 : vector<1x128xf32> to vector<16x128xf32>
    %94 = arith.addf %92, %93 : vector<16x128xf32>
    %95 = math.tanh %94 : vector<16x128xf32>
    %96 = arith.truncf %95 : vector<16x128xf32> to vector<16x128xbf16>
    %c0_56 = arith.constant 0 : index
    %c0_57 = arith.constant 0 : index
    %97 = vector.load %arg4[%c0_56, %c0_57] : memref<128x192xbf16, #tpu.memory_space<vmem>>, vector<128x192xbf16>
    %cst_58 = arith.constant dense<0.000000e+00> : vector<16x192xf32>
    %98 = tpu.matmul %96, %97, %cst_58 {dimension_numbers = #tpu.dot_dimension_numbers<[1], [0], [0], [1], [0, 0, 1, 1], [], []>} : vector<16x128xbf16>, vector<128x192xbf16>, vector<16x192xf32> -> vector<16x192xf32>
    %cst_59 = arith.constant 0.000000e+00 : f32
    %99 = vector.broadcast %cst_59 : f32 to vector<16x192xf32>
    %100 = arith.subf %99, %98 : vector<16x192xf32>
    %cst_60 = arith.constant 2.53175378 : f32
    %101 = vector.broadcast %cst_60 : f32 to vector<16x192xf32>
    %102 = arith.mulf %100, %101 : vector<16x192xf32>
    %cst_61 = arith.constant -1.29499495 : f32
    %103 = vector.broadcast %cst_61 : f32 to vector<16x192xf32>
    %104 = arith.mulf %103, %86 : vector<16x192xf32>
    %cst_62 = arith.constant 1.29499495 : f32
    %105 = vector.broadcast %cst_62 : f32 to vector<16x192xf32>
    %106 = arith.mulf %105, %102 : vector<16x192xf32>
    %107 = arith.subf %104, %106 : vector<16x192xf32>
    %108 = arith.mulf %102, %107 : vector<16x192xf32>
    %cst_63 = arith.constant dense<0.000000e+00> : vector<16xf32>
    %109 = vector.multi_reduction <add>, %108, %cst_63 [1] : vector<16x192xf32> to vector<16xf32>
    %110 = vector.shape_cast %109 : vector<16xf32> to vector<16x1xf32>
    %cst_64 = arith.constant 2.000000e+00 : f32
    %111 = vector.broadcast %cst_64 : f32 to vector<16x192xf32>
    %112 = arith.mulf %111, %53 : vector<16x192xf32>
    %113 = arith.addf %26, %112 : vector<16x192xf32>
    %cst_65 = arith.constant 2.000000e+00 : f32
    %114 = vector.broadcast %cst_65 : f32 to vector<16x192xf32>
    %115 = arith.mulf %114, %80 : vector<16x192xf32>
    %116 = arith.addf %113, %115 : vector<16x192xf32>
    %117 = arith.addf %116, %107 : vector<16x192xf32>
    %cst_66 = arith.constant 0.0208329167 : f32
    %118 = vector.broadcast %cst_66 : f32 to vector<16x192xf32>
    %119 = arith.mulf %118, %117 : vector<16x192xf32>
    %120 = arith.addf %4, %119 : vector<16x192xf32>
    %cst_67 = arith.constant 2.000000e+00 : f32
    %121 = vector.broadcast %cst_67 : f32 to vector<16x1xf32>
    %122 = arith.mulf %121, %56 : vector<16x1xf32>
    %123 = arith.addf %29, %122 : vector<16x1xf32>
    %cst_68 = arith.constant 2.000000e+00 : f32
    %124 = vector.broadcast %cst_68 : f32 to vector<16x1xf32>
    %125 = arith.mulf %124, %83 : vector<16x1xf32>
    %126 = arith.addf %123, %125 : vector<16x1xf32>
    %127 = arith.addf %126, %110 : vector<16x1xf32>
    %cst_69 = arith.constant 0.0208329167 : f32
    %128 = vector.broadcast %cst_69 : f32 to vector<16x1xf32>
    %129 = arith.mulf %128, %127 : vector<16x1xf32>
    %130 = arith.addf %5, %129 : vector<16x1xf32>
    %c2_70 = arith.constant 2 : index
    %c0_71 = arith.constant 0 : index
    %131 = vector.load %arg5[%c2_70, %c0_71] : memref<24x128xf32, #tpu.memory_space<vmem>>, vector<1x128xf32>
    %132 = arith.truncf %120 : vector<16x192xf32> to vector<16x192xbf16>
    %c0_72 = arith.constant 0 : index
    %c0_73 = arith.constant 0 : index
    %133 = vector.load %arg3[%c0_72, %c0_73] : memref<192x128xbf16, #tpu.memory_space<vmem>>, vector<192x128xbf16>
    %cst_74 = arith.constant dense<0.000000e+00> : vector<16x128xf32>
    %134 = tpu.matmul %132, %133, %cst_74 {dimension_numbers = #tpu.dot_dimension_numbers<[1], [0], [0], [1], [0, 0, 1, 1], [], []>} : vector<16x192xbf16>, vector<192x128xbf16>, vector<16x128xf32> -> vector<16x128xf32>
    %c0_75 = arith.constant 0 : index
    %c0_76 = arith.constant 0 : index
    %135 = vector.load %arg2[%c0_75, %c0_76] : memref<16x128xf32, #tpu.memory_space<vmem>>, vector<16x128xf32>
    %136 = arith.addf %134, %135 : vector<16x128xf32>
    %137 = vector.broadcast %131 : vector<1x128xf32> to vector<16x128xf32>
    %138 = arith.addf %136, %137 : vector<16x128xf32>
    %139 = math.tanh %138 : vector<16x128xf32>
    %140 = arith.truncf %139 : vector<16x128xf32> to vector<16x128xbf16>
    %c0_77 = arith.constant 0 : index
    %c0_78 = arith.constant 0 : index
    %141 = vector.load %arg4[%c0_77, %c0_78] : memref<128x192xbf16, #tpu.memory_space<vmem>>, vector<128x192xbf16>
    %cst_79 = arith.constant dense<0.000000e+00> : vector<16x192xf32>
    %142 = tpu.matmul %140, %141, %cst_79 {dimension_numbers = #tpu.dot_dimension_numbers<[1], [0], [0], [1], [0, 0, 1, 1], [], []>} : vector<16x128xbf16>, vector<128x192xbf16>, vector<16x192xf32> -> vector<16x192xf32>
    %cst_80 = arith.constant 0.000000e+00 : f32
    %143 = vector.broadcast %cst_80 : f32 to vector<16x192xf32>
    %144 = arith.subf %143, %142 : vector<16x192xf32>
    %cst_81 = arith.constant 2.53175378 : f32
    %145 = vector.broadcast %cst_81 : f32 to vector<16x192xf32>
    %146 = arith.mulf %144, %145 : vector<16x192xf32>
    %cst_82 = arith.constant -1.29499495 : f32
    %147 = vector.broadcast %cst_82 : f32 to vector<16x192xf32>
    %148 = arith.mulf %147, %120 : vector<16x192xf32>
    %cst_83 = arith.constant 1.29499495 : f32
    %149 = vector.broadcast %cst_83 : f32 to vector<16x192xf32>
    %150 = arith.mulf %149, %146 : vector<16x192xf32>
    %151 = arith.subf %148, %150 : vector<16x192xf32>
    %152 = arith.mulf %146, %151 : vector<16x192xf32>
    %cst_84 = arith.constant dense<0.000000e+00> : vector<16xf32>
    %153 = vector.multi_reduction <add>, %152, %cst_84 [1] : vector<16x192xf32> to vector<16xf32>
    %154 = vector.shape_cast %153 : vector<16xf32> to vector<16x1xf32>
    %cst_85 = arith.constant 0.0624987483 : f32
    %155 = vector.broadcast %cst_85 : f32 to vector<16x192xf32>
    %156 = arith.mulf %155, %151 : vector<16x192xf32>
    %157 = arith.addf %120, %156 : vector<16x192xf32>
    %c3 = arith.constant 3 : index
    %c0_86 = arith.constant 0 : index
    %158 = vector.load %arg5[%c3, %c0_86] : memref<24x128xf32, #tpu.memory_space<vmem>>, vector<1x128xf32>
    %159 = arith.truncf %157 : vector<16x192xf32> to vector<16x192xbf16>
    %c0_87 = arith.constant 0 : index
    %c0_88 = arith.constant 0 : index
    %160 = vector.load %arg3[%c0_87, %c0_88] : memref<192x128xbf16, #tpu.memory_space<vmem>>, vector<192x128xbf16>
    %cst_89 = arith.constant dense<0.000000e+00> : vector<16x128xf32>
    %161 = tpu.matmul %159, %160, %cst_89 {dimension_numbers = #tpu.dot_dimension_numbers<[1], [0], [0], [1], [0, 0, 1, 1], [], []>} : vector<16x192xbf16>, vector<192x128xbf16>, vector<16x128xf32> -> vector<16x128xf32>
    %c0_90 = arith.constant 0 : index
    %c0_91 = arith.constant 0 : index
    %162 = vector.load %arg2[%c0_90, %c0_91] : memref<16x128xf32, #tpu.memory_space<vmem>>, vector<16x128xf32>
    %163 = arith.addf %161, %162 : vector<16x128xf32>
    %164 = vector.broadcast %158 : vector<1x128xf32> to vector<16x128xf32>
    %165 = arith.addf %163, %164 : vector<16x128xf32>
    %166 = math.tanh %165 : vector<16x128xf32>
    %167 = arith.truncf %166 : vector<16x128xf32> to vector<16x128xbf16>
    %c0_92 = arith.constant 0 : index
    %c0_93 = arith.constant 0 : index
    %168 = vector.load %arg4[%c0_92, %c0_93] : memref<128x192xbf16, #tpu.memory_space<vmem>>, vector<128x192xbf16>
    %cst_94 = arith.constant dense<0.000000e+00> : vector<16x192xf32>
    %169 = tpu.matmul %167, %168, %cst_94 {dimension_numbers = #tpu.dot_dimension_numbers<[1], [0], [0], [1], [0, 0, 1, 1], [], []>} : vector<16x128xbf16>, vector<128x192xbf16>, vector<16x192xf32> -> vector<16x192xf32>
    %cst_95 = arith.constant 0.000000e+00 : f32
    %170 = vector.broadcast %cst_95 : f32 to vector<16x192xf32>
    %171 = arith.subf %170, %169 : vector<16x192xf32>
    %cst_96 = arith.constant 1.7916491 : f32
    %172 = vector.broadcast %cst_96 : f32 to vector<16x192xf32>
    %173 = arith.mulf %171, %172 : vector<16x192xf32>
    %cst_97 = arith.constant -1.92247248 : f32
    %174 = vector.broadcast %cst_97 : f32 to vector<16x192xf32>
    %175 = arith.mulf %174, %157 : vector<16x192xf32>
    %cst_98 = arith.constant 1.92247248 : f32
    %176 = vector.broadcast %cst_98 : f32 to vector<16x192xf32>
    %177 = arith.mulf %176, %173 : vector<16x192xf32>
    %178 = arith.subf %175, %177 : vector<16x192xf32>
    %179 = arith.mulf %173, %178 : vector<16x192xf32>
    %cst_99 = arith.constant dense<0.000000e+00> : vector<16xf32>
    %180 = vector.multi_reduction <add>, %179, %cst_99 [1] : vector<16x192xf32> to vector<16xf32>
    %181 = vector.shape_cast %180 : vector<16xf32> to vector<16x1xf32>
    %cst_100 = arith.constant 0.0624987483 : f32
    %182 = vector.broadcast %cst_100 : f32 to vector<16x192xf32>
    %183 = arith.mulf %182, %178 : vector<16x192xf32>
    %184 = arith.addf %120, %183 : vector<16x192xf32>
    %c3_101 = arith.constant 3 : index
    %c0_102 = arith.constant 0 : index
    %185 = vector.load %arg5[%c3_101, %c0_102] : memref<24x128xf32, #tpu.memory_space<vmem>>, vector<1x128xf32>
    %186 = arith.truncf %184 : vector<16x192xf32> to vector<16x192xbf16>
    %c0_103 = arith.constant 0 : index
    %c0_104 = arith.constant 0 : index
    %187 = vector.load %arg3[%c0_103, %c0_104] : memref<192x128xbf16, #tpu.memory_space<vmem>>, vector<192x128xbf16>
    %cst_105 = arith.constant dense<0.000000e+00> : vector<16x128xf32>
    %188 = tpu.matmul %186, %187, %cst_105 {dimension_numbers = #tpu.dot_dimension_numbers<[1], [0], [0], [1], [0, 0, 1, 1], [], []>} : vector<16x192xbf16>, vector<192x128xbf16>, vector<16x128xf32> -> vector<16x128xf32>
    %c0_106 = arith.constant 0 : index
    %c0_107 = arith.constant 0 : index
    %189 = vector.load %arg2[%c0_106, %c0_107] : memref<16x128xf32, #tpu.memory_space<vmem>>, vector<16x128xf32>
    %190 = arith.addf %188, %189 : vector<16x128xf32>
    %191 = vector.broadcast %185 : vector<1x128xf32> to vector<16x128xf32>
    %192 = arith.addf %190, %191 : vector<16x128xf32>
    %193 = math.tanh %192 : vector<16x128xf32>
    %194 = arith.truncf %193 : vector<16x128xf32> to vector<16x128xbf16>
    %c0_108 = arith.constant 0 : index
    %c0_109 = arith.constant 0 : index
    %195 = vector.load %arg4[%c0_108, %c0_109] : memref<128x192xbf16, #tpu.memory_space<vmem>>, vector<128x192xbf16>
    %cst_110 = arith.constant dense<0.000000e+00> : vector<16x192xf32>
    %196 = tpu.matmul %194, %195, %cst_110 {dimension_numbers = #tpu.dot_dimension_numbers<[1], [0], [0], [1], [0, 0, 1, 1], [], []>} : vector<16x128xbf16>, vector<128x192xbf16>, vector<16x192xf32> -> vector<16x192xf32>
    %cst_111 = arith.constant 0.000000e+00 : f32
    %197 = vector.broadcast %cst_111 : f32 to vector<16x192xf32>
    %198 = arith.subf %197, %196 : vector<16x192xf32>
    %cst_112 = arith.constant 1.7916491 : f32
    %199 = vector.broadcast %cst_112 : f32 to vector<16x192xf32>
    %200 = arith.mulf %198, %199 : vector<16x192xf32>
    %cst_113 = arith.constant -1.92247248 : f32
    %201 = vector.broadcast %cst_113 : f32 to vector<16x192xf32>
    %202 = arith.mulf %201, %184 : vector<16x192xf32>
    %cst_114 = arith.constant 1.92247248 : f32
    %203 = vector.broadcast %cst_114 : f32 to vector<16x192xf32>
    %204 = arith.mulf %203, %200 : vector<16x192xf32>
    %205 = arith.subf %202, %204 : vector<16x192xf32>
    %206 = arith.mulf %200, %205 : vector<16x192xf32>
    %cst_115 = arith.constant dense<0.000000e+00> : vector<16xf32>
    %207 = vector.multi_reduction <add>, %206, %cst_115 [1] : vector<16x192xf32> to vector<16xf32>
    %208 = vector.shape_cast %207 : vector<16xf32> to vector<16x1xf32>
    %cst_116 = arith.constant 0.124997497 : f32
    %209 = vector.broadcast %cst_116 : f32 to vector<16x192xf32>
    %210 = arith.mulf %209, %205 : vector<16x192xf32>
    %211 = arith.addf %120, %210 : vector<16x192xf32>
    %c4 = arith.constant 4 : index
    %c0_117 = arith.constant 0 : index
    %212 = vector.load %arg5[%c4, %c0_117] : memref<24x128xf32, #tpu.memory_space<vmem>>, vector<1x128xf32>
    %213 = arith.truncf %211 : vector<16x192xf32> to vector<16x192xbf16>
    %c0_118 = arith.constant 0 : index
    %c0_119 = arith.constant 0 : index
    %214 = vector.load %arg3[%c0_118, %c0_119] : memref<192x128xbf16, #tpu.memory_space<vmem>>, vector<192x128xbf16>
    %cst_120 = arith.constant dense<0.000000e+00> : vector<16x128xf32>
    %215 = tpu.matmul %213, %214, %cst_120 {dimension_numbers = #tpu.dot_dimension_numbers<[1], [0], [0], [1], [0, 0, 1, 1], [], []>} : vector<16x192xbf16>, vector<192x128xbf16>, vector<16x128xf32> -> vector<16x128xf32>
    %c0_121 = arith.constant 0 : index
    %c0_122 = arith.constant 0 : index
    %216 = vector.load %arg2[%c0_121, %c0_122] : memref<16x128xf32, #tpu.memory_space<vmem>>, vector<16x128xf32>
    %217 = arith.addf %215, %216 : vector<16x128xf32>
    %218 = vector.broadcast %212 : vector<1x128xf32> to vector<16x128xf32>
    %219 = arith.addf %217, %218 : vector<16x128xf32>
    %220 = math.tanh %219 : vector<16x128xf32>
    %221 = arith.truncf %220 : vector<16x128xf32> to vector<16x128xbf16>
    %c0_123 = arith.constant 0 : index
    %c0_124 = arith.constant 0 : index
    %222 = vector.load %arg4[%c0_123, %c0_124] : memref<128x192xbf16, #tpu.memory_space<vmem>>, vector<128x192xbf16>
    %cst_125 = arith.constant dense<0.000000e+00> : vector<16x192xf32>
    %223 = tpu.matmul %221, %222, %cst_125 {dimension_numbers = #tpu.dot_dimension_numbers<[1], [0], [0], [1], [0, 0, 1, 1], [], []>} : vector<16x128xbf16>, vector<128x192xbf16>, vector<16x192xf32> -> vector<16x192xf32>
    %cst_126 = arith.constant 0.000000e+00 : f32
    %224 = vector.broadcast %cst_126 : f32 to vector<16x192xf32>
    %225 = arith.subf %224, %223 : vector<16x192xf32>
    %cst_127 = arith.constant 1.445520e+00 : f32
    %226 = vector.broadcast %cst_127 : f32 to vector<16x192xf32>
    %227 = arith.mulf %225, %226 : vector<16x192xf32>
    %cst_128 = arith.constant -2.539990e+00 : f32
    %228 = vector.broadcast %cst_128 : f32 to vector<16x192xf32>
    %229 = arith.mulf %228, %211 : vector<16x192xf32>
    %cst_129 = arith.constant 2.539990e+00 : f32
    %230 = vector.broadcast %cst_129 : f32 to vector<16x192xf32>
    %231 = arith.mulf %230, %227 : vector<16x192xf32>
    %232 = arith.subf %229, %231 : vector<16x192xf32>
    %233 = arith.mulf %227, %232 : vector<16x192xf32>
    %cst_130 = arith.constant dense<0.000000e+00> : vector<16xf32>
    %234 = vector.multi_reduction <add>, %233, %cst_130 [1] : vector<16x192xf32> to vector<16xf32>
    %235 = vector.shape_cast %234 : vector<16xf32> to vector<16x1xf32>
    %cst_131 = arith.constant 2.000000e+00 : f32
    %236 = vector.broadcast %cst_131 : f32 to vector<16x192xf32>
    %237 = arith.mulf %236, %178 : vector<16x192xf32>
    %238 = arith.addf %151, %237 : vector<16x192xf32>
    %cst_132 = arith.constant 2.000000e+00 : f32
    %239 = vector.broadcast %cst_132 : f32 to vector<16x192xf32>
    %240 = arith.mulf %239, %205 : vector<16x192xf32>
    %241 = arith.addf %238, %240 : vector<16x192xf32>
    %242 = arith.addf %241, %232 : vector<16x192xf32>
    %cst_133 = arith.constant 0.0208329167 : f32
    %243 = vector.broadcast %cst_133 : f32 to vector<16x192xf32>
    %244 = arith.mulf %243, %242 : vector<16x192xf32>
    %245 = arith.addf %120, %244 : vector<16x192xf32>
    %cst_134 = arith.constant 2.000000e+00 : f32
    %246 = vector.broadcast %cst_134 : f32 to vector<16x1xf32>
    %247 = arith.mulf %246, %181 : vector<16x1xf32>
    %248 = arith.addf %154, %247 : vector<16x1xf32>
    %cst_135 = arith.constant 2.000000e+00 : f32
    %249 = vector.broadcast %cst_135 : f32 to vector<16x1xf32>
    %250 = arith.mulf %249, %208 : vector<16x1xf32>
    %251 = arith.addf %248, %250 : vector<16x1xf32>
    %252 = arith.addf %251, %235 : vector<16x1xf32>
    %cst_136 = arith.constant 0.0208329167 : f32
    %253 = vector.broadcast %cst_136 : f32 to vector<16x1xf32>
    %254 = arith.mulf %253, %252 : vector<16x1xf32>
    %255 = arith.addf %130, %254 : vector<16x1xf32>
    %c4_137 = arith.constant 4 : index
    %c0_138 = arith.constant 0 : index
    %256 = vector.load %arg5[%c4_137, %c0_138] : memref<24x128xf32, #tpu.memory_space<vmem>>, vector<1x128xf32>
    %257 = arith.truncf %245 : vector<16x192xf32> to vector<16x192xbf16>
    %c0_139 = arith.constant 0 : index
    %c0_140 = arith.constant 0 : index
    %258 = vector.load %arg3[%c0_139, %c0_140] : memref<192x128xbf16, #tpu.memory_space<vmem>>, vector<192x128xbf16>
    %cst_141 = arith.constant dense<0.000000e+00> : vector<16x128xf32>
    %259 = tpu.matmul %257, %258, %cst_141 {dimension_numbers = #tpu.dot_dimension_numbers<[1], [0], [0], [1], [0, 0, 1, 1], [], []>} : vector<16x192xbf16>, vector<192x128xbf16>, vector<16x128xf32> -> vector<16x128xf32>
    %c0_142 = arith.constant 0 : index
    %c0_143 = arith.constant 0 : index
    %260 = vector.load %arg2[%c0_142, %c0_143] : memref<16x128xf32, #tpu.memory_space<vmem>>, vector<16x128xf32>
    %261 = arith.addf %259, %260 : vector<16x128xf32>
    %262 = vector.broadcast %256 : vector<1x128xf32> to vector<16x128xf32>
    %263 = arith.addf %261, %262 : vector<16x128xf32>
    %264 = math.tanh %263 : vector<16x128xf32>
    %265 = arith.truncf %264 : vector<16x128xf32> to vector<16x128xbf16>
    %c0_144 = arith.constant 0 : index
    %c0_145 = arith.constant 0 : index
    %266 = vector.load %arg4[%c0_144, %c0_145] : memref<128x192xbf16, #tpu.memory_space<vmem>>, vector<128x192xbf16>
    %cst_146 = arith.constant dense<0.000000e+00> : vector<16x192xf32>
    %267 = tpu.matmul %265, %266, %cst_146 {dimension_numbers = #tpu.dot_dimension_numbers<[1], [0], [0], [1], [0, 0, 1, 1], [], []>} : vector<16x128xbf16>, vector<128x192xbf16>, vector<16x192xf32> -> vector<16x192xf32>
    %cst_147 = arith.constant 0.000000e+00 : f32
    %268 = vector.broadcast %cst_147 : f32 to vector<16x192xf32>
    %269 = arith.subf %268, %267 : vector<16x192xf32>
    %cst_148 = arith.constant 1.445520e+00 : f32
    %270 = vector.broadcast %cst_148 : f32 to vector<16x192xf32>
    %271 = arith.mulf %269, %270 : vector<16x192xf32>
    %cst_149 = arith.constant -2.539990e+00 : f32
    %272 = vector.broadcast %cst_149 : f32 to vector<16x192xf32>
    %273 = arith.mulf %272, %245 : vector<16x192xf32>
    %cst_150 = arith.constant 2.539990e+00 : f32
    %274 = vector.broadcast %cst_150 : f32 to vector<16x192xf32>
    %275 = arith.mulf %274, %271 : vector<16x192xf32>
    %276 = arith.subf %273, %275 : vector<16x192xf32>
    %277 = arith.mulf %271, %276 : vector<16x192xf32>
    %cst_151 = arith.constant dense<0.000000e+00> : vector<16xf32>
    %278 = vector.multi_reduction <add>, %277, %cst_151 [1] : vector<16x192xf32> to vector<16xf32>
    %279 = vector.shape_cast %278 : vector<16xf32> to vector<16x1xf32>
    %cst_152 = arith.constant 0.0624987483 : f32
    %280 = vector.broadcast %cst_152 : f32 to vector<16x192xf32>
    %281 = arith.mulf %280, %276 : vector<16x192xf32>
    %282 = arith.addf %245, %281 : vector<16x192xf32>
    %c5 = arith.constant 5 : index
    %c0_153 = arith.constant 0 : index
    %283 = vector.load %arg5[%c5, %c0_153] : memref<24x128xf32, #tpu.memory_space<vmem>>, vector<1x128xf32>
    %284 = arith.truncf %282 : vector<16x192xf32> to vector<16x192xbf16>
    %c0_154 = arith.constant 0 : index
    %c0_155 = arith.constant 0 : index
    %285 = vector.load %arg3[%c0_154, %c0_155] : memref<192x128xbf16, #tpu.memory_space<vmem>>, vector<192x128xbf16>
    %cst_156 = arith.constant dense<0.000000e+00> : vector<16x128xf32>
    %286 = tpu.matmul %284, %285, %cst_156 {dimension_numbers = #tpu.dot_dimension_numbers<[1], [0], [0], [1], [0, 0, 1, 1], [], []>} : vector<16x192xbf16>, vector<192x128xbf16>, vector<16x128xf32> -> vector<16x128xf32>
    %c0_157 = arith.constant 0 : index
    %c0_158 = arith.constant 0 : index
    %287 = vector.load %arg2[%c0_157, %c0_158] : memref<16x128xf32, #tpu.memory_space<vmem>>, vector<16x128xf32>
    %288 = arith.addf %286, %287 : vector<16x128xf32>
    %289 = vector.broadcast %283 : vector<1x128xf32> to vector<16x128xf32>
    %290 = arith.addf %288, %289 : vector<16x128xf32>
    %291 = math.tanh %290 : vector<16x128xf32>
    %292 = arith.truncf %291 : vector<16x128xf32> to vector<16x128xbf16>
    %c0_159 = arith.constant 0 : index
    %c0_160 = arith.constant 0 : index
    %293 = vector.load %arg4[%c0_159, %c0_160] : memref<128x192xbf16, #tpu.memory_space<vmem>>, vector<128x192xbf16>
    %cst_161 = arith.constant dense<0.000000e+00> : vector<16x192xf32>
    %294 = tpu.matmul %292, %293, %cst_161 {dimension_numbers = #tpu.dot_dimension_numbers<[1], [0], [0], [1], [0, 0, 1, 1], [], []>} : vector<16x128xbf16>, vector<128x192xbf16>, vector<16x192xf32> -> vector<16x192xf32>
    %cst_162 = arith.constant 0.000000e+00 : f32
    %295 = vector.broadcast %cst_162 : f32 to vector<16x192xf32>
    %296 = arith.subf %295, %294 : vector<16x192xf32>
    %cst_163 = arith.constant 1.253270e+00 : f32
    %297 = vector.broadcast %cst_163 : f32 to vector<16x192xf32>
    %298 = arith.mulf %296, %297 : vector<16x192xf32>
    %cst_164 = arith.constant -3.16746736 : f32
    %299 = vector.broadcast %cst_164 : f32 to vector<16x192xf32>
    %300 = arith.mulf %299, %282 : vector<16x192xf32>
    %cst_165 = arith.constant 3.16746736 : f32
    %301 = vector.broadcast %cst_165 : f32 to vector<16x192xf32>
    %302 = arith.mulf %301, %298 : vector<16x192xf32>
    %303 = arith.subf %300, %302 : vector<16x192xf32>
    %304 = arith.mulf %298, %303 : vector<16x192xf32>
    %cst_166 = arith.constant dense<0.000000e+00> : vector<16xf32>
    %305 = vector.multi_reduction <add>, %304, %cst_166 [1] : vector<16x192xf32> to vector<16xf32>
    %306 = vector.shape_cast %305 : vector<16xf32> to vector<16x1xf32>
    %cst_167 = arith.constant 0.0624987483 : f32
    %307 = vector.broadcast %cst_167 : f32 to vector<16x192xf32>
    %308 = arith.mulf %307, %303 : vector<16x192xf32>
    %309 = arith.addf %245, %308 : vector<16x192xf32>
    %c5_168 = arith.constant 5 : index
    %c0_169 = arith.constant 0 : index
    %310 = vector.load %arg5[%c5_168, %c0_169] : memref<24x128xf32, #tpu.memory_space<vmem>>, vector<1x128xf32>
    %311 = arith.truncf %309 : vector<16x192xf32> to vector<16x192xbf16>
    %c0_170 = arith.constant 0 : index
    %c0_171 = arith.constant 0 : index
    %312 = vector.load %arg3[%c0_170, %c0_171] : memref<192x128xbf16, #tpu.memory_space<vmem>>, vector<192x128xbf16>
    %cst_172 = arith.constant dense<0.000000e+00> : vector<16x128xf32>
    %313 = tpu.matmul %311, %312, %cst_172 {dimension_numbers = #tpu.dot_dimension_numbers<[1], [0], [0], [1], [0, 0, 1, 1], [], []>} : vector<16x192xbf16>, vector<192x128xbf16>, vector<16x128xf32> -> vector<16x128xf32>
    %c0_173 = arith.constant 0 : index
    %c0_174 = arith.constant 0 : index
    %314 = vector.load %arg2[%c0_173, %c0_174] : memref<16x128xf32, #tpu.memory_space<vmem>>, vector<16x128xf32>
    %315 = arith.addf %313, %314 : vector<16x128xf32>
    %316 = vector.broadcast %310 : vector<1x128xf32> to vector<16x128xf32>
    %317 = arith.addf %315, %316 : vector<16x128xf32>
    %318 = math.tanh %317 : vector<16x128xf32>
    %319 = arith.truncf %318 : vector<16x128xf32> to vector<16x128xbf16>
    %c0_175 = arith.constant 0 : index
    %c0_176 = arith.constant 0 : index
    %320 = vector.load %arg4[%c0_175, %c0_176] : memref<128x192xbf16, #tpu.memory_space<vmem>>, vector<128x192xbf16>
    %cst_177 = arith.constant dense<0.000000e+00> : vector<16x192xf32>
    %321 = tpu.matmul %319, %320, %cst_177 {dimension_numbers = #tpu.dot_dimension_numbers<[1], [0], [0], [1], [0, 0, 1, 1], [], []>} : vector<16x128xbf16>, vector<128x192xbf16>, vector<16x192xf32> -> vector<16x192xf32>
    %cst_178 = arith.constant 0.000000e+00 : f32
    %322 = vector.broadcast %cst_178 : f32 to vector<16x192xf32>
    %323 = arith.subf %322, %321 : vector<16x192xf32>
    %cst_179 = arith.constant 1.253270e+00 : f32
    %324 = vector.broadcast %cst_179 : f32 to vector<16x192xf32>
    %325 = arith.mulf %323, %324 : vector<16x192xf32>
    %cst_180 = arith.constant -3.16746736 : f32
    %326 = vector.broadcast %cst_180 : f32 to vector<16x192xf32>
    %327 = arith.mulf %326, %309 : vector<16x192xf32>
    %cst_181 = arith.constant 3.16746736 : f32
    %328 = vector.broadcast %cst_181 : f32 to vector<16x192xf32>
    %329 = arith.mulf %328, %325 : vector<16x192xf32>
    %330 = arith.subf %327, %329 : vector<16x192xf32>
    %331 = arith.mulf %325, %330 : vector<16x192xf32>
    %cst_182 = arith.constant dense<0.000000e+00> : vector<16xf32>
    %332 = vector.multi_reduction <add>, %331, %cst_182 [1] : vector<16x192xf32> to vector<16xf32>
    %333 = vector.shape_cast %332 : vector<16xf32> to vector<16x1xf32>
    %cst_183 = arith.constant 0.124997497 : f32
    %334 = vector.broadcast %cst_183 : f32 to vector<16x192xf32>
    %335 = arith.mulf %334, %330 : vector<16x192xf32>
    %336 = arith.addf %245, %335 : vector<16x192xf32>
    %c6 = arith.constant 6 : index
    %c0_184 = arith.constant 0 : index
    %337 = vector.load %arg5[%c6, %c0_184] : memref<24x128xf32, #tpu.memory_space<vmem>>, vector<1x128xf32>
    %338 = arith.truncf %336 : vector<16x192xf32> to vector<16x192xbf16>
    %c0_185 = arith.constant 0 : index
    %c0_186 = arith.constant 0 : index
    %339 = vector.load %arg3[%c0_185, %c0_186] : memref<192x128xbf16, #tpu.memory_space<vmem>>, vector<192x128xbf16>
    %cst_187 = arith.constant dense<0.000000e+00> : vector<16x128xf32>
    %340 = tpu.matmul %338, %339, %cst_187 {dimension_numbers = #tpu.dot_dimension_numbers<[1], [0], [0], [1], [0, 0, 1, 1], [], []>} : vector<16x192xbf16>, vector<192x128xbf16>, vector<16x128xf32> -> vector<16x128xf32>
    %c0_188 = arith.constant 0 : index
    %c0_189 = arith.constant 0 : index
    %341 = vector.load %arg2[%c0_188, %c0_189] : memref<16x128xf32, #tpu.memory_space<vmem>>, vector<16x128xf32>
    %342 = arith.addf %340, %341 : vector<16x128xf32>
    %343 = vector.broadcast %337 : vector<1x128xf32> to vector<16x128xf32>
    %344 = arith.addf %342, %343 : vector<16x128xf32>
    %345 = math.tanh %344 : vector<16x128xf32>
    %346 = arith.truncf %345 : vector<16x128xf32> to vector<16x128xbf16>
    %c0_190 = arith.constant 0 : index
    %c0_191 = arith.constant 0 : index
    %347 = vector.load %arg4[%c0_190, %c0_191] : memref<128x192xbf16, #tpu.memory_space<vmem>>, vector<128x192xbf16>
    %cst_192 = arith.constant dense<0.000000e+00> : vector<16x192xf32>
    %348 = tpu.matmul %346, %347, %cst_192 {dimension_numbers = #tpu.dot_dimension_numbers<[1], [0], [0], [1], [0, 0, 1, 1], [], []>} : vector<16x128xbf16>, vector<128x192xbf16>, vector<16x192xf32> -> vector<16x192xf32>
    %cst_193 = arith.constant 0.000000e+00 : f32
    %349 = vector.broadcast %cst_193 : f32 to vector<16x192xf32>
    %350 = arith.subf %349, %348 : vector<16x192xf32>
    %cst_194 = arith.constant 1.14377391 : f32
    %351 = vector.broadcast %cst_194 : f32 to vector<16x192xf32>
    %352 = arith.mulf %350, %351 : vector<16x192xf32>
    %cst_195 = arith.constant -3.78498507 : f32
    %353 = vector.broadcast %cst_195 : f32 to vector<16x192xf32>
    %354 = arith.mulf %353, %336 : vector<16x192xf32>
    %cst_196 = arith.constant 3.78498507 : f32
    %355 = vector.broadcast %cst_196 : f32 to vector<16x192xf32>
    %356 = arith.mulf %355, %352 : vector<16x192xf32>
    %357 = arith.subf %354, %356 : vector<16x192xf32>
    %358 = arith.mulf %352, %357 : vector<16x192xf32>
    %cst_197 = arith.constant dense<0.000000e+00> : vector<16xf32>
    %359 = vector.multi_reduction <add>, %358, %cst_197 [1] : vector<16x192xf32> to vector<16xf32>
    %360 = vector.shape_cast %359 : vector<16xf32> to vector<16x1xf32>
    %cst_198 = arith.constant 2.000000e+00 : f32
    %361 = vector.broadcast %cst_198 : f32 to vector<16x192xf32>
    %362 = arith.mulf %361, %303 : vector<16x192xf32>
    %363 = arith.addf %276, %362 : vector<16x192xf32>
    %cst_199 = arith.constant 2.000000e+00 : f32
    %364 = vector.broadcast %cst_199 : f32 to vector<16x192xf32>
    %365 = arith.mulf %364, %330 : vector<16x192xf32>
    %366 = arith.addf %363, %365 : vector<16x192xf32>
    %367 = arith.addf %366, %357 : vector<16x192xf32>
    %cst_200 = arith.constant 0.0208329167 : f32
    %368 = vector.broadcast %cst_200 : f32 to vector<16x192xf32>
    %369 = arith.mulf %368, %367 : vector<16x192xf32>
    %370 = arith.addf %245, %369 : vector<16x192xf32>
    %cst_201 = arith.constant 2.000000e+00 : f32
    %371 = vector.broadcast %cst_201 : f32 to vector<16x1xf32>
    %372 = arith.mulf %371, %306 : vector<16x1xf32>
    %373 = arith.addf %279, %372 : vector<16x1xf32>
    %cst_202 = arith.constant 2.000000e+00 : f32
    %374 = vector.broadcast %cst_202 : f32 to vector<16x1xf32>
    %375 = arith.mulf %374, %333 : vector<16x1xf32>
    %376 = arith.addf %373, %375 : vector<16x1xf32>
    %377 = arith.addf %376, %360 : vector<16x1xf32>
    %cst_203 = arith.constant 0.0208329167 : f32
    %378 = vector.broadcast %cst_203 : f32 to vector<16x1xf32>
    %379 = arith.mulf %378, %377 : vector<16x1xf32>
    %380 = arith.addf %255, %379 : vector<16x1xf32>
    %c6_204 = arith.constant 6 : index
    %c0_205 = arith.constant 0 : index
    %381 = vector.load %arg5[%c6_204, %c0_205] : memref<24x128xf32, #tpu.memory_space<vmem>>, vector<1x128xf32>
    %382 = arith.truncf %370 : vector<16x192xf32> to vector<16x192xbf16>
    %c0_206 = arith.constant 0 : index
    %c0_207 = arith.constant 0 : index
    %383 = vector.load %arg3[%c0_206, %c0_207] : memref<192x128xbf16, #tpu.memory_space<vmem>>, vector<192x128xbf16>
    %cst_208 = arith.constant dense<0.000000e+00> : vector<16x128xf32>
    %384 = tpu.matmul %382, %383, %cst_208 {dimension_numbers = #tpu.dot_dimension_numbers<[1], [0], [0], [1], [0, 0, 1, 1], [], []>} : vector<16x192xbf16>, vector<192x128xbf16>, vector<16x128xf32> -> vector<16x128xf32>
    %c0_209 = arith.constant 0 : index
    %c0_210 = arith.constant 0 : index
    %385 = vector.load %arg2[%c0_209, %c0_210] : memref<16x128xf32, #tpu.memory_space<vmem>>, vector<16x128xf32>
    %386 = arith.addf %384, %385 : vector<16x128xf32>
    %387 = vector.broadcast %381 : vector<1x128xf32> to vector<16x128xf32>
    %388 = arith.addf %386, %387 : vector<16x128xf32>
    %389 = math.tanh %388 : vector<16x128xf32>
    %390 = arith.truncf %389 : vector<16x128xf32> to vector<16x128xbf16>
    %c0_211 = arith.constant 0 : index
    %c0_212 = arith.constant 0 : index
    %391 = vector.load %arg4[%c0_211, %c0_212] : memref<128x192xbf16, #tpu.memory_space<vmem>>, vector<128x192xbf16>
    %cst_213 = arith.constant dense<0.000000e+00> : vector<16x192xf32>
    %392 = tpu.matmul %390, %391, %cst_213 {dimension_numbers = #tpu.dot_dimension_numbers<[1], [0], [0], [1], [0, 0, 1, 1], [], []>} : vector<16x128xbf16>, vector<128x192xbf16>, vector<16x192xf32> -> vector<16x192xf32>
    %cst_214 = arith.constant 0.000000e+00 : f32
    %393 = vector.broadcast %cst_214 : f32 to vector<16x192xf32>
    %394 = arith.subf %393, %392 : vector<16x192xf32>
    %cst_215 = arith.constant 1.14377391 : f32
    %395 = vector.broadcast %cst_215 : f32 to vector<16x192xf32>
    %396 = arith.mulf %394, %395 : vector<16x192xf32>
    %cst_216 = arith.constant -3.78498507 : f32
    %397 = vector.broadcast %cst_216 : f32 to vector<16x192xf32>
    %398 = arith.mulf %397, %370 : vector<16x192xf32>
    %cst_217 = arith.constant 3.78498507 : f32
    %399 = vector.broadcast %cst_217 : f32 to vector<16x192xf32>
    %400 = arith.mulf %399, %396 : vector<16x192xf32>
    %401 = arith.subf %398, %400 : vector<16x192xf32>
    %402 = arith.mulf %396, %401 : vector<16x192xf32>
    %cst_218 = arith.constant dense<0.000000e+00> : vector<16xf32>
    %403 = vector.multi_reduction <add>, %402, %cst_218 [1] : vector<16x192xf32> to vector<16xf32>
    %404 = vector.shape_cast %403 : vector<16xf32> to vector<16x1xf32>
    %cst_219 = arith.constant 0.0624987483 : f32
    %405 = vector.broadcast %cst_219 : f32 to vector<16x192xf32>
    %406 = arith.mulf %405, %401 : vector<16x192xf32>
    %407 = arith.addf %370, %406 : vector<16x192xf32>
    %c7 = arith.constant 7 : index
    %c0_220 = arith.constant 0 : index
    %408 = vector.load %arg5[%c7, %c0_220] : memref<24x128xf32, #tpu.memory_space<vmem>>, vector<1x128xf32>
    %409 = arith.truncf %407 : vector<16x192xf32> to vector<16x192xbf16>
    %c0_221 = arith.constant 0 : index
    %c0_222 = arith.constant 0 : index
    %410 = vector.load %arg3[%c0_221, %c0_222] : memref<192x128xbf16, #tpu.memory_space<vmem>>, vector<192x128xbf16>
    %cst_223 = arith.constant dense<0.000000e+00> : vector<16x128xf32>
    %411 = tpu.matmul %409, %410, %cst_223 {dimension_numbers = #tpu.dot_dimension_numbers<[1], [0], [0], [1], [0, 0, 1, 1], [], []>} : vector<16x192xbf16>, vector<192x128xbf16>, vector<16x128xf32> -> vector<16x128xf32>
    %c0_224 = arith.constant 0 : index
    %c0_225 = arith.constant 0 : index
    %412 = vector.load %arg2[%c0_224, %c0_225] : memref<16x128xf32, #tpu.memory_space<vmem>>, vector<16x128xf32>
    %413 = arith.addf %411, %412 : vector<16x128xf32>
    %414 = vector.broadcast %408 : vector<1x128xf32> to vector<16x128xf32>
    %415 = arith.addf %413, %414 : vector<16x128xf32>
    %416 = math.tanh %415 : vector<16x128xf32>
    %417 = arith.truncf %416 : vector<16x128xf32> to vector<16x128xbf16>
    %c0_226 = arith.constant 0 : index
    %c0_227 = arith.constant 0 : index
    %418 = vector.load %arg4[%c0_226, %c0_227] : memref<128x192xbf16, #tpu.memory_space<vmem>>, vector<128x192xbf16>
    %cst_228 = arith.constant dense<0.000000e+00> : vector<16x192xf32>
    %419 = tpu.matmul %417, %418, %cst_228 {dimension_numbers = #tpu.dot_dimension_numbers<[1], [0], [0], [1], [0, 0, 1, 1], [], []>} : vector<16x128xbf16>, vector<128x192xbf16>, vector<16x192xf32> -> vector<16x192xf32>
    %cst_229 = arith.constant 0.000000e+00 : f32
    %420 = vector.broadcast %cst_229 : f32 to vector<16x192xf32>
    %421 = arith.subf %420, %419 : vector<16x192xf32>
    %cst_230 = arith.constant 1.07844162 : f32
    %422 = vector.broadcast %cst_230 : f32 to vector<16x192xf32>
    %423 = arith.mulf %421, %422 : vector<16x192xf32>
    %cst_231 = arith.constant -4.41246223 : f32
    %424 = vector.broadcast %cst_231 : f32 to vector<16x192xf32>
    %425 = arith.mulf %424, %407 : vector<16x192xf32>
    %cst_232 = arith.constant 4.41246223 : f32
    %426 = vector.broadcast %cst_232 : f32 to vector<16x192xf32>
    %427 = arith.mulf %426, %423 : vector<16x192xf32>
    %428 = arith.subf %425, %427 : vector<16x192xf32>
    %429 = arith.mulf %423, %428 : vector<16x192xf32>
    %cst_233 = arith.constant dense<0.000000e+00> : vector<16xf32>
    %430 = vector.multi_reduction <add>, %429, %cst_233 [1] : vector<16x192xf32> to vector<16xf32>
    %431 = vector.shape_cast %430 : vector<16xf32> to vector<16x1xf32>
    %cst_234 = arith.constant 0.0624987483 : f32
    %432 = vector.broadcast %cst_234 : f32 to vector<16x192xf32>
    %433 = arith.mulf %432, %428 : vector<16x192xf32>
    %434 = arith.addf %370, %433 : vector<16x192xf32>
    %c7_235 = arith.constant 7 : index
    %c0_236 = arith.constant 0 : index
    %435 = vector.load %arg5[%c7_235, %c0_236] : memref<24x128xf32, #tpu.memory_space<vmem>>, vector<1x128xf32>
    %436 = arith.truncf %434 : vector<16x192xf32> to vector<16x192xbf16>
    %c0_237 = arith.constant 0 : index
    %c0_238 = arith.constant 0 : index
    %437 = vector.load %arg3[%c0_237, %c0_238] : memref<192x128xbf16, #tpu.memory_space<vmem>>, vector<192x128xbf16>
    %cst_239 = arith.constant dense<0.000000e+00> : vector<16x128xf32>
    %438 = tpu.matmul %436, %437, %cst_239 {dimension_numbers = #tpu.dot_dimension_numbers<[1], [0], [0], [1], [0, 0, 1, 1], [], []>} : vector<16x192xbf16>, vector<192x128xbf16>, vector<16x128xf32> -> vector<16x128xf32>
    %c0_240 = arith.constant 0 : index
    %c0_241 = arith.constant 0 : index
    %439 = vector.load %arg2[%c0_240, %c0_241] : memref<16x128xf32, #tpu.memory_space<vmem>>, vector<16x128xf32>
    %440 = arith.addf %438, %439 : vector<16x128xf32>
    %441 = vector.broadcast %435 : vector<1x128xf32> to vector<16x128xf32>
    %442 = arith.addf %440, %441 : vector<16x128xf32>
    %443 = math.tanh %442 : vector<16x128xf32>
    %444 = arith.truncf %443 : vector<16x128xf32> to vector<16x128xbf16>
    %c0_242 = arith.constant 0 : index
    %c0_243 = arith.constant 0 : index
    %445 = vector.load %arg4[%c0_242, %c0_243] : memref<128x192xbf16, #tpu.memory_space<vmem>>, vector<128x192xbf16>
    %cst_244 = arith.constant dense<0.000000e+00> : vector<16x192xf32>
    %446 = tpu.matmul %444, %445, %cst_244 {dimension_numbers = #tpu.dot_dimension_numbers<[1], [0], [0], [1], [0, 0, 1, 1], [], []>} : vector<16x128xbf16>, vector<128x192xbf16>, vector<16x192xf32> -> vector<16x192xf32>
    %cst_245 = arith.constant 0.000000e+00 : f32
    %447 = vector.broadcast %cst_245 : f32 to vector<16x192xf32>
    %448 = arith.subf %447, %446 : vector<16x192xf32>
    %cst_246 = arith.constant 1.07844162 : f32
    %449 = vector.broadcast %cst_246 : f32 to vector<16x192xf32>
    %450 = arith.mulf %448, %449 : vector<16x192xf32>
    %cst_247 = arith.constant -4.41246223 : f32
    %451 = vector.broadcast %cst_247 : f32 to vector<16x192xf32>
    %452 = arith.mulf %451, %434 : vector<16x192xf32>
    %cst_248 = arith.constant 4.41246223 : f32
    %453 = vector.broadcast %cst_248 : f32 to vector<16x192xf32>
    %454 = arith.mulf %453, %450 : vector<16x192xf32>
    %455 = arith.subf %452, %454 : vector<16x192xf32>
    %456 = arith.mulf %450, %455 : vector<16x192xf32>
    %cst_249 = arith.constant dense<0.000000e+00> : vector<16xf32>
    %457 = vector.multi_reduction <add>, %456, %cst_249 [1] : vector<16x192xf32> to vector<16xf32>
    %458 = vector.shape_cast %457 : vector<16xf32> to vector<16x1xf32>
    %cst_250 = arith.constant 0.124997497 : f32
    %459 = vector.broadcast %cst_250 : f32 to vector<16x192xf32>
    %460 = arith.mulf %459, %455 : vector<16x192xf32>
    %461 = arith.addf %370, %460 : vector<16x192xf32>
    %c8 = arith.constant 8 : index
    %c0_251 = arith.constant 0 : index
    %462 = vector.load %arg5[%c8, %c0_251] : memref<24x128xf32, #tpu.memory_space<vmem>>, vector<1x128xf32>
    %463 = arith.truncf %461 : vector<16x192xf32> to vector<16x192xbf16>
    %c0_252 = arith.constant 0 : index
    %c0_253 = arith.constant 0 : index
    %464 = vector.load %arg3[%c0_252, %c0_253] : memref<192x128xbf16, #tpu.memory_space<vmem>>, vector<192x128xbf16>
    %cst_254 = arith.constant dense<0.000000e+00> : vector<16x128xf32>
    %465 = tpu.matmul %463, %464, %cst_254 {dimension_numbers = #tpu.dot_dimension_numbers<[1], [0], [0], [1], [0, 0, 1, 1], [], []>} : vector<16x192xbf16>, vector<192x128xbf16>, vector<16x128xf32> -> vector<16x128xf32>
    %c0_255 = arith.constant 0 : index
    %c0_256 = arith.constant 0 : index
    %466 = vector.load %arg2[%c0_255, %c0_256] : memref<16x128xf32, #tpu.memory_space<vmem>>, vector<16x128xf32>
    %467 = arith.addf %465, %466 : vector<16x128xf32>
    %468 = vector.broadcast %462 : vector<1x128xf32> to vector<16x128xf32>
    %469 = arith.addf %467, %468 : vector<16x128xf32>
    %470 = math.tanh %469 : vector<16x128xf32>
    %471 = arith.truncf %470 : vector<16x128xf32> to vector<16x128xbf16>
    %c0_257 = arith.constant 0 : index
    %c0_258 = arith.constant 0 : index
    %472 = vector.load %arg4[%c0_257, %c0_258] : memref<128x192xbf16, #tpu.memory_space<vmem>>, vector<128x192xbf16>
    %cst_259 = arith.constant dense<0.000000e+00> : vector<16x192xf32>
    %473 = tpu.matmul %471, %472, %cst_259 {dimension_numbers = #tpu.dot_dimension_numbers<[1], [0], [0], [1], [0, 0, 1, 1], [], []>} : vector<16x128xbf16>, vector<128x192xbf16>, vector<16x192xf32> -> vector<16x192xf32>
    %cst_260 = arith.constant 0.000000e+00 : f32
    %474 = vector.broadcast %cst_260 : f32 to vector<16x192xf32>
    %475 = arith.subf %474, %473 : vector<16x192xf32>
    %cst_261 = arith.constant 1.04132581 : f32
    %476 = vector.broadcast %cst_261 : f32 to vector<16x192xf32>
    %477 = arith.mulf %475, %476 : vector<16x192xf32>
    %cst_262 = arith.constant -5.029980e+00 : f32
    %478 = vector.broadcast %cst_262 : f32 to vector<16x192xf32>
    %479 = arith.mulf %478, %461 : vector<16x192xf32>
    %cst_263 = arith.constant 5.029980e+00 : f32
    %480 = vector.broadcast %cst_263 : f32 to vector<16x192xf32>
    %481 = arith.mulf %480, %477 : vector<16x192xf32>
    %482 = arith.subf %479, %481 : vector<16x192xf32>
    %483 = arith.mulf %477, %482 : vector<16x192xf32>
    %cst_264 = arith.constant dense<0.000000e+00> : vector<16xf32>
    %484 = vector.multi_reduction <add>, %483, %cst_264 [1] : vector<16x192xf32> to vector<16xf32>
    %485 = vector.shape_cast %484 : vector<16xf32> to vector<16x1xf32>
    %cst_265 = arith.constant 2.000000e+00 : f32
    %486 = vector.broadcast %cst_265 : f32 to vector<16x192xf32>
    %487 = arith.mulf %486, %428 : vector<16x192xf32>
    %488 = arith.addf %401, %487 : vector<16x192xf32>
    %cst_266 = arith.constant 2.000000e+00 : f32
    %489 = vector.broadcast %cst_266 : f32 to vector<16x192xf32>
    %490 = arith.mulf %489, %455 : vector<16x192xf32>
    %491 = arith.addf %488, %490 : vector<16x192xf32>
    %492 = arith.addf %491, %482 : vector<16x192xf32>
    %cst_267 = arith.constant 0.0208329167 : f32
    %493 = vector.broadcast %cst_267 : f32 to vector<16x192xf32>
    %494 = arith.mulf %493, %492 : vector<16x192xf32>
    %495 = arith.addf %370, %494 : vector<16x192xf32>
    %cst_268 = arith.constant 2.000000e+00 : f32
    %496 = vector.broadcast %cst_268 : f32 to vector<16x1xf32>
    %497 = arith.mulf %496, %431 : vector<16x1xf32>
    %498 = arith.addf %404, %497 : vector<16x1xf32>
    %cst_269 = arith.constant 2.000000e+00 : f32
    %499 = vector.broadcast %cst_269 : f32 to vector<16x1xf32>
    %500 = arith.mulf %499, %458 : vector<16x1xf32>
    %501 = arith.addf %498, %500 : vector<16x1xf32>
    %502 = arith.addf %501, %485 : vector<16x1xf32>
    %cst_270 = arith.constant 0.0208329167 : f32
    %503 = vector.broadcast %cst_270 : f32 to vector<16x1xf32>
    %504 = arith.mulf %503, %502 : vector<16x1xf32>
    %505 = arith.addf %380, %504 : vector<16x1xf32>
    %c8_271 = arith.constant 8 : index
    %c0_272 = arith.constant 0 : index
    %506 = vector.load %arg5[%c8_271, %c0_272] : memref<24x128xf32, #tpu.memory_space<vmem>>, vector<1x128xf32>
    %507 = arith.truncf %495 : vector<16x192xf32> to vector<16x192xbf16>
    %c0_273 = arith.constant 0 : index
    %c0_274 = arith.constant 0 : index
    %508 = vector.load %arg3[%c0_273, %c0_274] : memref<192x128xbf16, #tpu.memory_space<vmem>>, vector<192x128xbf16>
    %cst_275 = arith.constant dense<0.000000e+00> : vector<16x128xf32>
    %509 = tpu.matmul %507, %508, %cst_275 {dimension_numbers = #tpu.dot_dimension_numbers<[1], [0], [0], [1], [0, 0, 1, 1], [], []>} : vector<16x192xbf16>, vector<192x128xbf16>, vector<16x128xf32> -> vector<16x128xf32>
    %c0_276 = arith.constant 0 : index
    %c0_277 = arith.constant 0 : index
    %510 = vector.load %arg2[%c0_276, %c0_277] : memref<16x128xf32, #tpu.memory_space<vmem>>, vector<16x128xf32>
    %511 = arith.addf %509, %510 : vector<16x128xf32>
    %512 = vector.broadcast %506 : vector<1x128xf32> to vector<16x128xf32>
    %513 = arith.addf %511, %512 : vector<16x128xf32>
    %514 = math.tanh %513 : vector<16x128xf32>
    %515 = arith.truncf %514 : vector<16x128xf32> to vector<16x128xbf16>
    %c0_278 = arith.constant 0 : index
    %c0_279 = arith.constant 0 : index
    %516 = vector.load %arg4[%c0_278, %c0_279] : memref<128x192xbf16, #tpu.memory_space<vmem>>, vector<128x192xbf16>
    %cst_280 = arith.constant dense<0.000000e+00> : vector<16x192xf32>
    %517 = tpu.matmul %515, %516, %cst_280 {dimension_numbers = #tpu.dot_dimension_numbers<[1], [0], [0], [1], [0, 0, 1, 1], [], []>} : vector<16x128xbf16>, vector<128x192xbf16>, vector<16x192xf32> -> vector<16x192xf32>
    %cst_281 = arith.constant 0.000000e+00 : f32
    %518 = vector.broadcast %cst_281 : f32 to vector<16x192xf32>
    %519 = arith.subf %518, %517 : vector<16x192xf32>
    %cst_282 = arith.constant 1.04132581 : f32
    %520 = vector.broadcast %cst_282 : f32 to vector<16x192xf32>
    %521 = arith.mulf %519, %520 : vector<16x192xf32>
    %cst_283 = arith.constant -5.029980e+00 : f32
    %522 = vector.broadcast %cst_283 : f32 to vector<16x192xf32>
    %523 = arith.mulf %522, %495 : vector<16x192xf32>
    %cst_284 = arith.constant 5.029980e+00 : f32
    %524 = vector.broadcast %cst_284 : f32 to vector<16x192xf32>
    %525 = arith.mulf %524, %521 : vector<16x192xf32>
    %526 = arith.subf %523, %525 : vector<16x192xf32>
    %527 = arith.mulf %521, %526 : vector<16x192xf32>
    %cst_285 = arith.constant dense<0.000000e+00> : vector<16xf32>
    %528 = vector.multi_reduction <add>, %527, %cst_285 [1] : vector<16x192xf32> to vector<16xf32>
    %529 = vector.shape_cast %528 : vector<16xf32> to vector<16x1xf32>
    %cst_286 = arith.constant 0.0624987483 : f32
    %530 = vector.broadcast %cst_286 : f32 to vector<16x192xf32>
    %531 = arith.mulf %530, %526 : vector<16x192xf32>
    %532 = arith.addf %495, %531 : vector<16x192xf32>
    %c9 = arith.constant 9 : index
    %c0_287 = arith.constant 0 : index
    %533 = vector.load %arg5[%c9, %c0_287] : memref<24x128xf32, #tpu.memory_space<vmem>>, vector<1x128xf32>
    %534 = arith.truncf %532 : vector<16x192xf32> to vector<16x192xbf16>
    %c0_288 = arith.constant 0 : index
    %c0_289 = arith.constant 0 : index
    %535 = vector.load %arg3[%c0_288, %c0_289] : memref<192x128xbf16, #tpu.memory_space<vmem>>, vector<192x128xbf16>
    %cst_290 = arith.constant dense<0.000000e+00> : vector<16x128xf32>
    %536 = tpu.matmul %534, %535, %cst_290 {dimension_numbers = #tpu.dot_dimension_numbers<[1], [0], [0], [1], [0, 0, 1, 1], [], []>} : vector<16x192xbf16>, vector<192x128xbf16>, vector<16x128xf32> -> vector<16x128xf32>
    %c0_291 = arith.constant 0 : index
    %c0_292 = arith.constant 0 : index
    %537 = vector.load %arg2[%c0_291, %c0_292] : memref<16x128xf32, #tpu.memory_space<vmem>>, vector<16x128xf32>
    %538 = arith.addf %536, %537 : vector<16x128xf32>
    %539 = vector.broadcast %533 : vector<1x128xf32> to vector<16x128xf32>
    %540 = arith.addf %538, %539 : vector<16x128xf32>
    %541 = math.tanh %540 : vector<16x128xf32>
    %542 = arith.truncf %541 : vector<16x128xf32> to vector<16x128xbf16>
    %c0_293 = arith.constant 0 : index
    %c0_294 = arith.constant 0 : index
    %543 = vector.load %arg4[%c0_293, %c0_294] : memref<128x192xbf16, #tpu.memory_space<vmem>>, vector<128x192xbf16>
    %cst_295 = arith.constant dense<0.000000e+00> : vector<16x192xf32>
    %544 = tpu.matmul %542, %543, %cst_295 {dimension_numbers = #tpu.dot_dimension_numbers<[1], [0], [0], [1], [0, 0, 1, 1], [], []>} : vector<16x128xbf16>, vector<128x192xbf16>, vector<16x192xf32> -> vector<16x192xf32>
    %cst_296 = arith.constant 0.000000e+00 : f32
    %545 = vector.broadcast %cst_296 : f32 to vector<16x192xf32>
    %546 = arith.subf %545, %544 : vector<16x192xf32>
    %cst_297 = arith.constant 1.02060008 : f32
    %547 = vector.broadcast %cst_297 : f32 to vector<16x192xf32>
    %548 = arith.mulf %546, %547 : vector<16x192xf32>
    %cst_298 = arith.constant -5.64749765 : f32
    %549 = vector.broadcast %cst_298 : f32 to vector<16x192xf32>
    %550 = arith.mulf %549, %532 : vector<16x192xf32>
    %cst_299 = arith.constant 5.64749765 : f32
    %551 = vector.broadcast %cst_299 : f32 to vector<16x192xf32>
    %552 = arith.mulf %551, %548 : vector<16x192xf32>
    %553 = arith.subf %550, %552 : vector<16x192xf32>
    %554 = arith.mulf %548, %553 : vector<16x192xf32>
    %cst_300 = arith.constant dense<0.000000e+00> : vector<16xf32>
    %555 = vector.multi_reduction <add>, %554, %cst_300 [1] : vector<16x192xf32> to vector<16xf32>
    %556 = vector.shape_cast %555 : vector<16xf32> to vector<16x1xf32>
    %cst_301 = arith.constant 0.0624987483 : f32
    %557 = vector.broadcast %cst_301 : f32 to vector<16x192xf32>
    %558 = arith.mulf %557, %553 : vector<16x192xf32>
    %559 = arith.addf %495, %558 : vector<16x192xf32>
    %c9_302 = arith.constant 9 : index
    %c0_303 = arith.constant 0 : index
    %560 = vector.load %arg5[%c9_302, %c0_303] : memref<24x128xf32, #tpu.memory_space<vmem>>, vector<1x128xf32>
    %561 = arith.truncf %559 : vector<16x192xf32> to vector<16x192xbf16>
    %c0_304 = arith.constant 0 : index
    %c0_305 = arith.constant 0 : index
    %562 = vector.load %arg3[%c0_304, %c0_305] : memref<192x128xbf16, #tpu.memory_space<vmem>>, vector<192x128xbf16>
    %cst_306 = arith.constant dense<0.000000e+00> : vector<16x128xf32>
    %563 = tpu.matmul %561, %562, %cst_306 {dimension_numbers = #tpu.dot_dimension_numbers<[1], [0], [0], [1], [0, 0, 1, 1], [], []>} : vector<16x192xbf16>, vector<192x128xbf16>, vector<16x128xf32> -> vector<16x128xf32>
    %c0_307 = arith.constant 0 : index
    %c0_308 = arith.constant 0 : index
    %564 = vector.load %arg2[%c0_307, %c0_308] : memref<16x128xf32, #tpu.memory_space<vmem>>, vector<16x128xf32>
    %565 = arith.addf %563, %564 : vector<16x128xf32>
    %566 = vector.broadcast %560 : vector<1x128xf32> to vector<16x128xf32>
    %567 = arith.addf %565, %566 : vector<16x128xf32>
    %568 = math.tanh %567 : vector<16x128xf32>
    %569 = arith.truncf %568 : vector<16x128xf32> to vector<16x128xbf16>
    %c0_309 = arith.constant 0 : index
    %c0_310 = arith.constant 0 : index
    %570 = vector.load %arg4[%c0_309, %c0_310] : memref<128x192xbf16, #tpu.memory_space<vmem>>, vector<128x192xbf16>
    %cst_311 = arith.constant dense<0.000000e+00> : vector<16x192xf32>
    %571 = tpu.matmul %569, %570, %cst_311 {dimension_numbers = #tpu.dot_dimension_numbers<[1], [0], [0], [1], [0, 0, 1, 1], [], []>} : vector<16x128xbf16>, vector<128x192xbf16>, vector<16x192xf32> -> vector<16x192xf32>
    %cst_312 = arith.constant 0.000000e+00 : f32
    %572 = vector.broadcast %cst_312 : f32 to vector<16x192xf32>
    %573 = arith.subf %572, %571 : vector<16x192xf32>
    %cst_313 = arith.constant 1.02060008 : f32
    %574 = vector.broadcast %cst_313 : f32 to vector<16x192xf32>
    %575 = arith.mulf %573, %574 : vector<16x192xf32>
    %cst_314 = arith.constant -5.64749765 : f32
    %576 = vector.broadcast %cst_314 : f32 to vector<16x192xf32>
    %577 = arith.mulf %576, %559 : vector<16x192xf32>
    %cst_315 = arith.constant 5.64749765 : f32
    %578 = vector.broadcast %cst_315 : f32 to vector<16x192xf32>
    %579 = arith.mulf %578, %575 : vector<16x192xf32>
    %580 = arith.subf %577, %579 : vector<16x192xf32>
    %581 = arith.mulf %575, %580 : vector<16x192xf32>
    %cst_316 = arith.constant dense<0.000000e+00> : vector<16xf32>
    %582 = vector.multi_reduction <add>, %581, %cst_316 [1] : vector<16x192xf32> to vector<16xf32>
    %583 = vector.shape_cast %582 : vector<16xf32> to vector<16x1xf32>
    %cst_317 = arith.constant 0.124997497 : f32
    %584 = vector.broadcast %cst_317 : f32 to vector<16x192xf32>
    %585 = arith.mulf %584, %580 : vector<16x192xf32>
    %586 = arith.addf %495, %585 : vector<16x192xf32>
    %c10 = arith.constant 10 : index
    %c0_318 = arith.constant 0 : index
    %587 = vector.load %arg5[%c10, %c0_318] : memref<24x128xf32, #tpu.memory_space<vmem>>, vector<1x128xf32>
    %588 = arith.truncf %586 : vector<16x192xf32> to vector<16x192xbf16>
    %c0_319 = arith.constant 0 : index
    %c0_320 = arith.constant 0 : index
    %589 = vector.load %arg3[%c0_319, %c0_320] : memref<192x128xbf16, #tpu.memory_space<vmem>>, vector<192x128xbf16>
    %cst_321 = arith.constant dense<0.000000e+00> : vector<16x128xf32>
    %590 = tpu.matmul %588, %589, %cst_321 {dimension_numbers = #tpu.dot_dimension_numbers<[1], [0], [0], [1], [0, 0, 1, 1], [], []>} : vector<16x192xbf16>, vector<192x128xbf16>, vector<16x128xf32> -> vector<16x128xf32>
    %c0_322 = arith.constant 0 : index
    %c0_323 = arith.constant 0 : index
    %591 = vector.load %arg2[%c0_322, %c0_323] : memref<16x128xf32, #tpu.memory_space<vmem>>, vector<16x128xf32>
    %592 = arith.addf %590, %591 : vector<16x128xf32>
    %593 = vector.broadcast %587 : vector<1x128xf32> to vector<16x128xf32>
    %594 = arith.addf %592, %593 : vector<16x128xf32>
    %595 = math.tanh %594 : vector<16x128xf32>
    %596 = arith.truncf %595 : vector<16x128xf32> to vector<16x128xbf16>
    %c0_324 = arith.constant 0 : index
    %c0_325 = arith.constant 0 : index
    %597 = vector.load %arg4[%c0_324, %c0_325] : memref<128x192xbf16, #tpu.memory_space<vmem>>, vector<128x192xbf16>
    %cst_326 = arith.constant dense<0.000000e+00> : vector<16x192xf32>
    %598 = tpu.matmul %596, %597, %cst_326 {dimension_numbers = #tpu.dot_dimension_numbers<[1], [0], [0], [1], [0, 0, 1, 1], [], []>} : vector<16x128xbf16>, vector<128x192xbf16>, vector<16x192xf32> -> vector<16x192xf32>
    %cst_327 = arith.constant 0.000000e+00 : f32
    %599 = vector.broadcast %cst_327 : f32 to vector<16x192xf32>
    %600 = arith.subf %599, %598 : vector<16x192xf32>
    %cst_328 = arith.constant 1.00951326 : f32
    %601 = vector.broadcast %cst_328 : f32 to vector<16x192xf32>
    %602 = arith.mulf %600, %601 : vector<16x192xf32>
    %cst_329 = arith.constant -6.27497482 : f32
    %603 = vector.broadcast %cst_329 : f32 to vector<16x192xf32>
    %604 = arith.mulf %603, %586 : vector<16x192xf32>
    %cst_330 = arith.constant 6.27497482 : f32
    %605 = vector.broadcast %cst_330 : f32 to vector<16x192xf32>
    %606 = arith.mulf %605, %602 : vector<16x192xf32>
    %607 = arith.subf %604, %606 : vector<16x192xf32>
    %608 = arith.mulf %602, %607 : vector<16x192xf32>
    %cst_331 = arith.constant dense<0.000000e+00> : vector<16xf32>
    %609 = vector.multi_reduction <add>, %608, %cst_331 [1] : vector<16x192xf32> to vector<16xf32>
    %610 = vector.shape_cast %609 : vector<16xf32> to vector<16x1xf32>
    %cst_332 = arith.constant 2.000000e+00 : f32
    %611 = vector.broadcast %cst_332 : f32 to vector<16x192xf32>
    %612 = arith.mulf %611, %553 : vector<16x192xf32>
    %613 = arith.addf %526, %612 : vector<16x192xf32>
    %cst_333 = arith.constant 2.000000e+00 : f32
    %614 = vector.broadcast %cst_333 : f32 to vector<16x192xf32>
    %615 = arith.mulf %614, %580 : vector<16x192xf32>
    %616 = arith.addf %613, %615 : vector<16x192xf32>
    %617 = arith.addf %616, %607 : vector<16x192xf32>
    %cst_334 = arith.constant 0.0208329167 : f32
    %618 = vector.broadcast %cst_334 : f32 to vector<16x192xf32>
    %619 = arith.mulf %618, %617 : vector<16x192xf32>
    %620 = arith.addf %495, %619 : vector<16x192xf32>
    %cst_335 = arith.constant 2.000000e+00 : f32
    %621 = vector.broadcast %cst_335 : f32 to vector<16x1xf32>
    %622 = arith.mulf %621, %556 : vector<16x1xf32>
    %623 = arith.addf %529, %622 : vector<16x1xf32>
    %cst_336 = arith.constant 2.000000e+00 : f32
    %624 = vector.broadcast %cst_336 : f32 to vector<16x1xf32>
    %625 = arith.mulf %624, %583 : vector<16x1xf32>
    %626 = arith.addf %623, %625 : vector<16x1xf32>
    %627 = arith.addf %626, %610 : vector<16x1xf32>
    %cst_337 = arith.constant 0.0208329167 : f32
    %628 = vector.broadcast %cst_337 : f32 to vector<16x1xf32>
    %629 = arith.mulf %628, %627 : vector<16x1xf32>
    %630 = arith.addf %505, %629 : vector<16x1xf32>
    %c10_338 = arith.constant 10 : index
    %c0_339 = arith.constant 0 : index
    %631 = vector.load %arg5[%c10_338, %c0_339] : memref<24x128xf32, #tpu.memory_space<vmem>>, vector<1x128xf32>
    %632 = arith.truncf %620 : vector<16x192xf32> to vector<16x192xbf16>
    %c0_340 = arith.constant 0 : index
    %c0_341 = arith.constant 0 : index
    %633 = vector.load %arg3[%c0_340, %c0_341] : memref<192x128xbf16, #tpu.memory_space<vmem>>, vector<192x128xbf16>
    %cst_342 = arith.constant dense<0.000000e+00> : vector<16x128xf32>
    %634 = tpu.matmul %632, %633, %cst_342 {dimension_numbers = #tpu.dot_dimension_numbers<[1], [0], [0], [1], [0, 0, 1, 1], [], []>} : vector<16x192xbf16>, vector<192x128xbf16>, vector<16x128xf32> -> vector<16x128xf32>
    %c0_343 = arith.constant 0 : index
    %c0_344 = arith.constant 0 : index
    %635 = vector.load %arg2[%c0_343, %c0_344] : memref<16x128xf32, #tpu.memory_space<vmem>>, vector<16x128xf32>
    %636 = arith.addf %634, %635 : vector<16x128xf32>
    %637 = vector.broadcast %631 : vector<1x128xf32> to vector<16x128xf32>
    %638 = arith.addf %636, %637 : vector<16x128xf32>
    %639 = math.tanh %638 : vector<16x128xf32>
    %640 = arith.truncf %639 : vector<16x128xf32> to vector<16x128xbf16>
    %c0_345 = arith.constant 0 : index
    %c0_346 = arith.constant 0 : index
    %641 = vector.load %arg4[%c0_345, %c0_346] : memref<128x192xbf16, #tpu.memory_space<vmem>>, vector<128x192xbf16>
    %cst_347 = arith.constant dense<0.000000e+00> : vector<16x192xf32>
    %642 = tpu.matmul %640, %641, %cst_347 {dimension_numbers = #tpu.dot_dimension_numbers<[1], [0], [0], [1], [0, 0, 1, 1], [], []>} : vector<16x128xbf16>, vector<128x192xbf16>, vector<16x192xf32> -> vector<16x192xf32>
    %cst_348 = arith.constant 0.000000e+00 : f32
    %643 = vector.broadcast %cst_348 : f32 to vector<16x192xf32>
    %644 = arith.subf %643, %642 : vector<16x192xf32>
    %cst_349 = arith.constant 1.00951326 : f32
    %645 = vector.broadcast %cst_349 : f32 to vector<16x192xf32>
    %646 = arith.mulf %644, %645 : vector<16x192xf32>
    %cst_350 = arith.constant -6.27497482 : f32
    %647 = vector.broadcast %cst_350 : f32 to vector<16x192xf32>
    %648 = arith.mulf %647, %620 : vector<16x192xf32>
    %cst_351 = arith.constant 6.27497482 : f32
    %649 = vector.broadcast %cst_351 : f32 to vector<16x192xf32>
    %650 = arith.mulf %649, %646 : vector<16x192xf32>
    %651 = arith.subf %648, %650 : vector<16x192xf32>
    %652 = arith.mulf %646, %651 : vector<16x192xf32>
    %cst_352 = arith.constant dense<0.000000e+00> : vector<16xf32>
    %653 = vector.multi_reduction <add>, %652, %cst_352 [1] : vector<16x192xf32> to vector<16xf32>
    %654 = vector.shape_cast %653 : vector<16xf32> to vector<16x1xf32>
    %cst_353 = arith.constant 0.0624987483 : f32
    %655 = vector.broadcast %cst_353 : f32 to vector<16x192xf32>
    %656 = arith.mulf %655, %651 : vector<16x192xf32>
    %657 = arith.addf %620, %656 : vector<16x192xf32>
    %c11 = arith.constant 11 : index
    %c0_354 = arith.constant 0 : index
    %658 = vector.load %arg5[%c11, %c0_354] : memref<24x128xf32, #tpu.memory_space<vmem>>, vector<1x128xf32>
    %659 = arith.truncf %657 : vector<16x192xf32> to vector<16x192xbf16>
    %c0_355 = arith.constant 0 : index
    %c0_356 = arith.constant 0 : index
    %660 = vector.load %arg3[%c0_355, %c0_356] : memref<192x128xbf16, #tpu.memory_space<vmem>>, vector<192x128xbf16>
    %cst_357 = arith.constant dense<0.000000e+00> : vector<16x128xf32>
    %661 = tpu.matmul %659, %660, %cst_357 {dimension_numbers = #tpu.dot_dimension_numbers<[1], [0], [0], [1], [0, 0, 1, 1], [], []>} : vector<16x192xbf16>, vector<192x128xbf16>, vector<16x128xf32> -> vector<16x128xf32>
    %c0_358 = arith.constant 0 : index
    %c0_359 = arith.constant 0 : index
    %662 = vector.load %arg2[%c0_358, %c0_359] : memref<16x128xf32, #tpu.memory_space<vmem>>, vector<16x128xf32>
    %663 = arith.addf %661, %662 : vector<16x128xf32>
    %664 = vector.broadcast %658 : vector<1x128xf32> to vector<16x128xf32>
    %665 = arith.addf %663, %664 : vector<16x128xf32>
    %666 = math.tanh %665 : vector<16x128xf32>
    %667 = arith.truncf %666 : vector<16x128xf32> to vector<16x128xbf16>
    %c0_360 = arith.constant 0 : index
    %c0_361 = arith.constant 0 : index
    %668 = vector.load %arg4[%c0_360, %c0_361] : memref<128x192xbf16, #tpu.memory_space<vmem>>, vector<128x192xbf16>
    %cst_362 = arith.constant dense<0.000000e+00> : vector<16x192xf32>
    %669 = tpu.matmul %667, %668, %cst_362 {dimension_numbers = #tpu.dot_dimension_numbers<[1], [0], [0], [1], [0, 0, 1, 1], [], []>} : vector<16x128xbf16>, vector<128x192xbf16>, vector<16x192xf32> -> vector<16x192xf32>
    %cst_363 = arith.constant 0.000000e+00 : f32
    %670 = vector.broadcast %cst_363 : f32 to vector<16x192xf32>
    %671 = arith.subf %670, %669 : vector<16x192xf32>
    %cst_364 = arith.constant 1.00414646 : f32
    %672 = vector.broadcast %cst_364 : f32 to vector<16x192xf32>
    %673 = arith.mulf %671, %672 : vector<16x192xf32>
    %cst_365 = arith.constant -6.89249229 : f32
    %674 = vector.broadcast %cst_365 : f32 to vector<16x192xf32>
    %675 = arith.mulf %674, %657 : vector<16x192xf32>
    %cst_366 = arith.constant 6.89249229 : f32
    %676 = vector.broadcast %cst_366 : f32 to vector<16x192xf32>
    %677 = arith.mulf %676, %673 : vector<16x192xf32>
    %678 = arith.subf %675, %677 : vector<16x192xf32>
    %679 = arith.mulf %673, %678 : vector<16x192xf32>
    %cst_367 = arith.constant dense<0.000000e+00> : vector<16xf32>
    %680 = vector.multi_reduction <add>, %679, %cst_367 [1] : vector<16x192xf32> to vector<16xf32>
    %681 = vector.shape_cast %680 : vector<16xf32> to vector<16x1xf32>
    %cst_368 = arith.constant 0.0624987483 : f32
    %682 = vector.broadcast %cst_368 : f32 to vector<16x192xf32>
    %683 = arith.mulf %682, %678 : vector<16x192xf32>
    %684 = arith.addf %620, %683 : vector<16x192xf32>
    %c11_369 = arith.constant 11 : index
    %c0_370 = arith.constant 0 : index
    %685 = vector.load %arg5[%c11_369, %c0_370] : memref<24x128xf32, #tpu.memory_space<vmem>>, vector<1x128xf32>
    %686 = arith.truncf %684 : vector<16x192xf32> to vector<16x192xbf16>
    %c0_371 = arith.constant 0 : index
    %c0_372 = arith.constant 0 : index
    %687 = vector.load %arg3[%c0_371, %c0_372] : memref<192x128xbf16, #tpu.memory_space<vmem>>, vector<192x128xbf16>
    %cst_373 = arith.constant dense<0.000000e+00> : vector<16x128xf32>
    %688 = tpu.matmul %686, %687, %cst_373 {dimension_numbers = #tpu.dot_dimension_numbers<[1], [0], [0], [1], [0, 0, 1, 1], [], []>} : vector<16x192xbf16>, vector<192x128xbf16>, vector<16x128xf32> -> vector<16x128xf32>
    %c0_374 = arith.constant 0 : index
    %c0_375 = arith.constant 0 : index
    %689 = vector.load %arg2[%c0_374, %c0_375] : memref<16x128xf32, #tpu.memory_space<vmem>>, vector<16x128xf32>
    %690 = arith.addf %688, %689 : vector<16x128xf32>
    %691 = vector.broadcast %685 : vector<1x128xf32> to vector<16x128xf32>
    %692 = arith.addf %690, %691 : vector<16x128xf32>
    %693 = math.tanh %692 : vector<16x128xf32>
    %694 = arith.truncf %693 : vector<16x128xf32> to vector<16x128xbf16>
    %c0_376 = arith.constant 0 : index
    %c0_377 = arith.constant 0 : index
    %695 = vector.load %arg4[%c0_376, %c0_377] : memref<128x192xbf16, #tpu.memory_space<vmem>>, vector<128x192xbf16>
    %cst_378 = arith.constant dense<0.000000e+00> : vector<16x192xf32>
    %696 = tpu.matmul %694, %695, %cst_378 {dimension_numbers = #tpu.dot_dimension_numbers<[1], [0], [0], [1], [0, 0, 1, 1], [], []>} : vector<16x128xbf16>, vector<128x192xbf16>, vector<16x192xf32> -> vector<16x192xf32>
    %cst_379 = arith.constant 0.000000e+00 : f32
    %697 = vector.broadcast %cst_379 : f32 to vector<16x192xf32>
    %698 = arith.subf %697, %696 : vector<16x192xf32>
    %cst_380 = arith.constant 1.00414646 : f32
    %699 = vector.broadcast %cst_380 : f32 to vector<16x192xf32>
    %700 = arith.mulf %698, %699 : vector<16x192xf32>
    %cst_381 = arith.constant -6.89249229 : f32
    %701 = vector.broadcast %cst_381 : f32 to vector<16x192xf32>
    %702 = arith.mulf %701, %684 : vector<16x192xf32>
    %cst_382 = arith.constant 6.89249229 : f32
    %703 = vector.broadcast %cst_382 : f32 to vector<16x192xf32>
    %704 = arith.mulf %703, %700 : vector<16x192xf32>
    %705 = arith.subf %702, %704 : vector<16x192xf32>
    %706 = arith.mulf %700, %705 : vector<16x192xf32>
    %cst_383 = arith.constant dense<0.000000e+00> : vector<16xf32>
    %707 = vector.multi_reduction <add>, %706, %cst_383 [1] : vector<16x192xf32> to vector<16xf32>
    %708 = vector.shape_cast %707 : vector<16xf32> to vector<16x1xf32>
    %cst_384 = arith.constant 0.124997497 : f32
    %709 = vector.broadcast %cst_384 : f32 to vector<16x192xf32>
    %710 = arith.mulf %709, %705 : vector<16x192xf32>
    %711 = arith.addf %620, %710 : vector<16x192xf32>
    %c12 = arith.constant 12 : index
    %c0_385 = arith.constant 0 : index
    %712 = vector.load %arg5[%c12, %c0_385] : memref<24x128xf32, #tpu.memory_space<vmem>>, vector<1x128xf32>
    %713 = arith.truncf %711 : vector<16x192xf32> to vector<16x192xbf16>
    %c0_386 = arith.constant 0 : index
    %c0_387 = arith.constant 0 : index
    %714 = vector.load %arg3[%c0_386, %c0_387] : memref<192x128xbf16, #tpu.memory_space<vmem>>, vector<192x128xbf16>
    %cst_388 = arith.constant dense<0.000000e+00> : vector<16x128xf32>
    %715 = tpu.matmul %713, %714, %cst_388 {dimension_numbers = #tpu.dot_dimension_numbers<[1], [0], [0], [1], [0, 0, 1, 1], [], []>} : vector<16x192xbf16>, vector<192x128xbf16>, vector<16x128xf32> -> vector<16x128xf32>
    %c0_389 = arith.constant 0 : index
    %c0_390 = arith.constant 0 : index
    %716 = vector.load %arg2[%c0_389, %c0_390] : memref<16x128xf32, #tpu.memory_space<vmem>>, vector<16x128xf32>
    %717 = arith.addf %715, %716 : vector<16x128xf32>
    %718 = vector.broadcast %712 : vector<1x128xf32> to vector<16x128xf32>
    %719 = arith.addf %717, %718 : vector<16x128xf32>
    %720 = math.tanh %719 : vector<16x128xf32>
    %721 = arith.truncf %720 : vector<16x128xf32> to vector<16x128xbf16>
    %c0_391 = arith.constant 0 : index
    %c0_392 = arith.constant 0 : index
    %722 = vector.load %arg4[%c0_391, %c0_392] : memref<128x192xbf16, #tpu.memory_space<vmem>>, vector<128x192xbf16>
    %cst_393 = arith.constant dense<0.000000e+00> : vector<16x192xf32>
    %723 = tpu.matmul %721, %722, %cst_393 {dimension_numbers = #tpu.dot_dimension_numbers<[1], [0], [0], [1], [0, 0, 1, 1], [], []>} : vector<16x128xbf16>, vector<128x192xbf16>, vector<16x192xf32> -> vector<16x192xf32>
    %cst_394 = arith.constant 0.000000e+00 : f32
    %724 = vector.broadcast %cst_394 : f32 to vector<16x192xf32>
    %725 = arith.subf %724, %723 : vector<16x192xf32>
    %cst_395 = arith.constant 1.00165415 : f32
    %726 = vector.broadcast %cst_395 : f32 to vector<16x192xf32>
    %727 = arith.mulf %725, %726 : vector<16x192xf32>
    %cst_396 = arith.constant -7.519970e+00 : f32
    %728 = vector.broadcast %cst_396 : f32 to vector<16x192xf32>
    %729 = arith.mulf %728, %711 : vector<16x192xf32>
    %cst_397 = arith.constant 7.519970e+00 : f32
    %730 = vector.broadcast %cst_397 : f32 to vector<16x192xf32>
    %731 = arith.mulf %730, %727 : vector<16x192xf32>
    %732 = arith.subf %729, %731 : vector<16x192xf32>
    %733 = arith.mulf %727, %732 : vector<16x192xf32>
    %cst_398 = arith.constant dense<0.000000e+00> : vector<16xf32>
    %734 = vector.multi_reduction <add>, %733, %cst_398 [1] : vector<16x192xf32> to vector<16xf32>
    %735 = vector.shape_cast %734 : vector<16xf32> to vector<16x1xf32>
    %cst_399 = arith.constant 2.000000e+00 : f32
    %736 = vector.broadcast %cst_399 : f32 to vector<16x192xf32>
    %737 = arith.mulf %736, %678 : vector<16x192xf32>
    %738 = arith.addf %651, %737 : vector<16x192xf32>
    %cst_400 = arith.constant 2.000000e+00 : f32
    %739 = vector.broadcast %cst_400 : f32 to vector<16x192xf32>
    %740 = arith.mulf %739, %705 : vector<16x192xf32>
    %741 = arith.addf %738, %740 : vector<16x192xf32>
    %742 = arith.addf %741, %732 : vector<16x192xf32>
    %cst_401 = arith.constant 0.0208329167 : f32
    %743 = vector.broadcast %cst_401 : f32 to vector<16x192xf32>
    %744 = arith.mulf %743, %742 : vector<16x192xf32>
    %745 = arith.addf %620, %744 : vector<16x192xf32>
    %cst_402 = arith.constant 2.000000e+00 : f32
    %746 = vector.broadcast %cst_402 : f32 to vector<16x1xf32>
    %747 = arith.mulf %746, %681 : vector<16x1xf32>
    %748 = arith.addf %654, %747 : vector<16x1xf32>
    %cst_403 = arith.constant 2.000000e+00 : f32
    %749 = vector.broadcast %cst_403 : f32 to vector<16x1xf32>
    %750 = arith.mulf %749, %708 : vector<16x1xf32>
    %751 = arith.addf %748, %750 : vector<16x1xf32>
    %752 = arith.addf %751, %735 : vector<16x1xf32>
    %cst_404 = arith.constant 0.0208329167 : f32
    %753 = vector.broadcast %cst_404 : f32 to vector<16x1xf32>
    %754 = arith.mulf %753, %752 : vector<16x1xf32>
    %755 = arith.addf %630, %754 : vector<16x1xf32>
    %c12_405 = arith.constant 12 : index
    %c0_406 = arith.constant 0 : index
    %756 = vector.load %arg5[%c12_405, %c0_406] : memref<24x128xf32, #tpu.memory_space<vmem>>, vector<1x128xf32>
    %757 = arith.truncf %745 : vector<16x192xf32> to vector<16x192xbf16>
    %c0_407 = arith.constant 0 : index
    %c0_408 = arith.constant 0 : index
    %758 = vector.load %arg3[%c0_407, %c0_408] : memref<192x128xbf16, #tpu.memory_space<vmem>>, vector<192x128xbf16>
    %cst_409 = arith.constant dense<0.000000e+00> : vector<16x128xf32>
    %759 = tpu.matmul %757, %758, %cst_409 {dimension_numbers = #tpu.dot_dimension_numbers<[1], [0], [0], [1], [0, 0, 1, 1], [], []>} : vector<16x192xbf16>, vector<192x128xbf16>, vector<16x128xf32> -> vector<16x128xf32>
    %c0_410 = arith.constant 0 : index
    %c0_411 = arith.constant 0 : index
    %760 = vector.load %arg2[%c0_410, %c0_411] : memref<16x128xf32, #tpu.memory_space<vmem>>, vector<16x128xf32>
    %761 = arith.addf %759, %760 : vector<16x128xf32>
    %762 = vector.broadcast %756 : vector<1x128xf32> to vector<16x128xf32>
    %763 = arith.addf %761, %762 : vector<16x128xf32>
    %764 = math.tanh %763 : vector<16x128xf32>
    %765 = arith.truncf %764 : vector<16x128xf32> to vector<16x128xbf16>
    %c0_412 = arith.constant 0 : index
    %c0_413 = arith.constant 0 : index
    %766 = vector.load %arg4[%c0_412, %c0_413] : memref<128x192xbf16, #tpu.memory_space<vmem>>, vector<128x192xbf16>
    %cst_414 = arith.constant dense<0.000000e+00> : vector<16x192xf32>
    %767 = tpu.matmul %765, %766, %cst_414 {dimension_numbers = #tpu.dot_dimension_numbers<[1], [0], [0], [1], [0, 0, 1, 1], [], []>} : vector<16x128xbf16>, vector<128x192xbf16>, vector<16x192xf32> -> vector<16x192xf32>
    %cst_415 = arith.constant 0.000000e+00 : f32
    %768 = vector.broadcast %cst_415 : f32 to vector<16x192xf32>
    %769 = arith.subf %768, %767 : vector<16x192xf32>
    %cst_416 = arith.constant 1.00165415 : f32
    %770 = vector.broadcast %cst_416 : f32 to vector<16x192xf32>
    %771 = arith.mulf %769, %770 : vector<16x192xf32>
    %cst_417 = arith.constant -7.519970e+00 : f32
    %772 = vector.broadcast %cst_417 : f32 to vector<16x192xf32>
    %773 = arith.mulf %772, %745 : vector<16x192xf32>
    %cst_418 = arith.constant 7.519970e+00 : f32
    %774 = vector.broadcast %cst_418 : f32 to vector<16x192xf32>
    %775 = arith.mulf %774, %771 : vector<16x192xf32>
    %776 = arith.subf %773, %775 : vector<16x192xf32>
    %777 = arith.mulf %771, %776 : vector<16x192xf32>
    %cst_419 = arith.constant dense<0.000000e+00> : vector<16xf32>
    %778 = vector.multi_reduction <add>, %777, %cst_419 [1] : vector<16x192xf32> to vector<16xf32>
    %779 = vector.shape_cast %778 : vector<16xf32> to vector<16x1xf32>
    %cst_420 = arith.constant 0.0624987483 : f32
    %780 = vector.broadcast %cst_420 : f32 to vector<16x192xf32>
    %781 = arith.mulf %780, %776 : vector<16x192xf32>
    %782 = arith.addf %745, %781 : vector<16x192xf32>
    %c13 = arith.constant 13 : index
    %c0_421 = arith.constant 0 : index
    %783 = vector.load %arg5[%c13, %c0_421] : memref<24x128xf32, #tpu.memory_space<vmem>>, vector<1x128xf32>
    %784 = arith.truncf %782 : vector<16x192xf32> to vector<16x192xbf16>
    %c0_422 = arith.constant 0 : index
    %c0_423 = arith.constant 0 : index
    %785 = vector.load %arg3[%c0_422, %c0_423] : memref<192x128xbf16, #tpu.memory_space<vmem>>, vector<192x128xbf16>
    %cst_424 = arith.constant dense<0.000000e+00> : vector<16x128xf32>
    %786 = tpu.matmul %784, %785, %cst_424 {dimension_numbers = #tpu.dot_dimension_numbers<[1], [0], [0], [1], [0, 0, 1, 1], [], []>} : vector<16x192xbf16>, vector<192x128xbf16>, vector<16x128xf32> -> vector<16x128xf32>
    %c0_425 = arith.constant 0 : index
    %c0_426 = arith.constant 0 : index
    %787 = vector.load %arg2[%c0_425, %c0_426] : memref<16x128xf32, #tpu.memory_space<vmem>>, vector<16x128xf32>
    %788 = arith.addf %786, %787 : vector<16x128xf32>
    %789 = vector.broadcast %783 : vector<1x128xf32> to vector<16x128xf32>
    %790 = arith.addf %788, %789 : vector<16x128xf32>
    %791 = math.tanh %790 : vector<16x128xf32>
    %792 = arith.truncf %791 : vector<16x128xf32> to vector<16x128xbf16>
    %c0_427 = arith.constant 0 : index
    %c0_428 = arith.constant 0 : index
    %793 = vector.load %arg4[%c0_427, %c0_428] : memref<128x192xbf16, #tpu.memory_space<vmem>>, vector<128x192xbf16>
    %cst_429 = arith.constant dense<0.000000e+00> : vector<16x192xf32>
    %794 = tpu.matmul %792, %793, %cst_429 {dimension_numbers = #tpu.dot_dimension_numbers<[1], [0], [0], [1], [0, 0, 1, 1], [], []>} : vector<16x128xbf16>, vector<128x192xbf16>, vector<16x192xf32> -> vector<16x192xf32>
    %cst_430 = arith.constant 0.000000e+00 : f32
    %795 = vector.broadcast %cst_430 : f32 to vector<16x192xf32>
    %796 = arith.subf %795, %794 : vector<16x192xf32>
    %cst_431 = arith.constant 1.00062048 : f32
    %797 = vector.broadcast %cst_431 : f32 to vector<16x192xf32>
    %798 = arith.mulf %796, %797 : vector<16x192xf32>
    %cst_432 = arith.constant -8.13748741 : f32
    %799 = vector.broadcast %cst_432 : f32 to vector<16x192xf32>
    %800 = arith.mulf %799, %782 : vector<16x192xf32>
    %cst_433 = arith.constant 8.13748741 : f32
    %801 = vector.broadcast %cst_433 : f32 to vector<16x192xf32>
    %802 = arith.mulf %801, %798 : vector<16x192xf32>
    %803 = arith.subf %800, %802 : vector<16x192xf32>
    %804 = arith.mulf %798, %803 : vector<16x192xf32>
    %cst_434 = arith.constant dense<0.000000e+00> : vector<16xf32>
    %805 = vector.multi_reduction <add>, %804, %cst_434 [1] : vector<16x192xf32> to vector<16xf32>
    %806 = vector.shape_cast %805 : vector<16xf32> to vector<16x1xf32>
    %cst_435 = arith.constant 0.0624987483 : f32
    %807 = vector.broadcast %cst_435 : f32 to vector<16x192xf32>
    %808 = arith.mulf %807, %803 : vector<16x192xf32>
    %809 = arith.addf %745, %808 : vector<16x192xf32>
    %c13_436 = arith.constant 13 : index
    %c0_437 = arith.constant 0 : index
    %810 = vector.load %arg5[%c13_436, %c0_437] : memref<24x128xf32, #tpu.memory_space<vmem>>, vector<1x128xf32>
    %811 = arith.truncf %809 : vector<16x192xf32> to vector<16x192xbf16>
    %c0_438 = arith.constant 0 : index
    %c0_439 = arith.constant 0 : index
    %812 = vector.load %arg3[%c0_438, %c0_439] : memref<192x128xbf16, #tpu.memory_space<vmem>>, vector<192x128xbf16>
    %cst_440 = arith.constant dense<0.000000e+00> : vector<16x128xf32>
    %813 = tpu.matmul %811, %812, %cst_440 {dimension_numbers = #tpu.dot_dimension_numbers<[1], [0], [0], [1], [0, 0, 1, 1], [], []>} : vector<16x192xbf16>, vector<192x128xbf16>, vector<16x128xf32> -> vector<16x128xf32>
    %c0_441 = arith.constant 0 : index
    %c0_442 = arith.constant 0 : index
    %814 = vector.load %arg2[%c0_441, %c0_442] : memref<16x128xf32, #tpu.memory_space<vmem>>, vector<16x128xf32>
    %815 = arith.addf %813, %814 : vector<16x128xf32>
    %816 = vector.broadcast %810 : vector<1x128xf32> to vector<16x128xf32>
    %817 = arith.addf %815, %816 : vector<16x128xf32>
    %818 = math.tanh %817 : vector<16x128xf32>
    %819 = arith.truncf %818 : vector<16x128xf32> to vector<16x128xbf16>
    %c0_443 = arith.constant 0 : index
    %c0_444 = arith.constant 0 : index
    %820 = vector.load %arg4[%c0_443, %c0_444] : memref<128x192xbf16, #tpu.memory_space<vmem>>, vector<128x192xbf16>
    %cst_445 = arith.constant dense<0.000000e+00> : vector<16x192xf32>
    %821 = tpu.matmul %819, %820, %cst_445 {dimension_numbers = #tpu.dot_dimension_numbers<[1], [0], [0], [1], [0, 0, 1, 1], [], []>} : vector<16x128xbf16>, vector<128x192xbf16>, vector<16x192xf32> -> vector<16x192xf32>
    %cst_446 = arith.constant 0.000000e+00 : f32
    %822 = vector.broadcast %cst_446 : f32 to vector<16x192xf32>
    %823 = arith.subf %822, %821 : vector<16x192xf32>
    %cst_447 = arith.constant 1.00062048 : f32
    %824 = vector.broadcast %cst_447 : f32 to vector<16x192xf32>
    %825 = arith.mulf %823, %824 : vector<16x192xf32>
    %cst_448 = arith.constant -8.13748741 : f32
    %826 = vector.broadcast %cst_448 : f32 to vector<16x192xf32>
    %827 = arith.mulf %826, %809 : vector<16x192xf32>
    %cst_449 = arith.constant 8.13748741 : f32
    %828 = vector.broadcast %cst_449 : f32 to vector<16x192xf32>
    %829 = arith.mulf %828, %825 : vector<16x192xf32>
    %830 = arith.subf %827, %829 : vector<16x192xf32>
    %831 = arith.mulf %825, %830 : vector<16x192xf32>
    %cst_450 = arith.constant dense<0.000000e+00> : vector<16xf32>
    %832 = vector.multi_reduction <add>, %831, %cst_450 [1] : vector<16x192xf32> to vector<16xf32>
    %833 = vector.shape_cast %832 : vector<16xf32> to vector<16x1xf32>
    %cst_451 = arith.constant 0.124997497 : f32
    %834 = vector.broadcast %cst_451 : f32 to vector<16x192xf32>
    %835 = arith.mulf %834, %830 : vector<16x192xf32>
    %836 = arith.addf %745, %835 : vector<16x192xf32>
    %c14 = arith.constant 14 : index
    %c0_452 = arith.constant 0 : index
    %837 = vector.load %arg5[%c14, %c0_452] : memref<24x128xf32, #tpu.memory_space<vmem>>, vector<1x128xf32>
    %838 = arith.truncf %836 : vector<16x192xf32> to vector<16x192xbf16>
    %c0_453 = arith.constant 0 : index
    %c0_454 = arith.constant 0 : index
    %839 = vector.load %arg3[%c0_453, %c0_454] : memref<192x128xbf16, #tpu.memory_space<vmem>>, vector<192x128xbf16>
    %cst_455 = arith.constant dense<0.000000e+00> : vector<16x128xf32>
    %840 = tpu.matmul %838, %839, %cst_455 {dimension_numbers = #tpu.dot_dimension_numbers<[1], [0], [0], [1], [0, 0, 1, 1], [], []>} : vector<16x192xbf16>, vector<192x128xbf16>, vector<16x128xf32> -> vector<16x128xf32>
    %c0_456 = arith.constant 0 : index
    %c0_457 = arith.constant 0 : index
    %841 = vector.load %arg2[%c0_456, %c0_457] : memref<16x128xf32, #tpu.memory_space<vmem>>, vector<16x128xf32>
    %842 = arith.addf %840, %841 : vector<16x128xf32>
    %843 = vector.broadcast %837 : vector<1x128xf32> to vector<16x128xf32>
    %844 = arith.addf %842, %843 : vector<16x128xf32>
    %845 = math.tanh %844 : vector<16x128xf32>
    %846 = arith.truncf %845 : vector<16x128xf32> to vector<16x128xbf16>
    %c0_458 = arith.constant 0 : index
    %c0_459 = arith.constant 0 : index
    %847 = vector.load %arg4[%c0_458, %c0_459] : memref<128x192xbf16, #tpu.memory_space<vmem>>, vector<128x192xbf16>
    %cst_460 = arith.constant dense<0.000000e+00> : vector<16x192xf32>
    %848 = tpu.matmul %846, %847, %cst_460 {dimension_numbers = #tpu.dot_dimension_numbers<[1], [0], [0], [1], [0, 0, 1, 1], [], []>} : vector<16x128xbf16>, vector<128x192xbf16>, vector<16x192xf32> -> vector<16x192xf32>
    %cst_461 = arith.constant 0.000000e+00 : f32
    %849 = vector.broadcast %cst_461 : f32 to vector<16x192xf32>
    %850 = arith.subf %849, %848 : vector<16x192xf32>
    %cst_462 = arith.constant 1.00021172 : f32
    %851 = vector.broadcast %cst_462 : f32 to vector<16x192xf32>
    %852 = arith.mulf %850, %851 : vector<16x192xf32>
    %cst_463 = arith.constant -8.76496506 : f32
    %853 = vector.broadcast %cst_463 : f32 to vector<16x192xf32>
    %854 = arith.mulf %853, %836 : vector<16x192xf32>
    %cst_464 = arith.constant 8.76496506 : f32
    %855 = vector.broadcast %cst_464 : f32 to vector<16x192xf32>
    %856 = arith.mulf %855, %852 : vector<16x192xf32>
    %857 = arith.subf %854, %856 : vector<16x192xf32>
    %858 = arith.mulf %852, %857 : vector<16x192xf32>
    %cst_465 = arith.constant dense<0.000000e+00> : vector<16xf32>
    %859 = vector.multi_reduction <add>, %858, %cst_465 [1] : vector<16x192xf32> to vector<16xf32>
    %860 = vector.shape_cast %859 : vector<16xf32> to vector<16x1xf32>
    %cst_466 = arith.constant 2.000000e+00 : f32
    %861 = vector.broadcast %cst_466 : f32 to vector<16x192xf32>
    %862 = arith.mulf %861, %803 : vector<16x192xf32>
    %863 = arith.addf %776, %862 : vector<16x192xf32>
    %cst_467 = arith.constant 2.000000e+00 : f32
    %864 = vector.broadcast %cst_467 : f32 to vector<16x192xf32>
    %865 = arith.mulf %864, %830 : vector<16x192xf32>
    %866 = arith.addf %863, %865 : vector<16x192xf32>
    %867 = arith.addf %866, %857 : vector<16x192xf32>
    %cst_468 = arith.constant 0.0208329167 : f32
    %868 = vector.broadcast %cst_468 : f32 to vector<16x192xf32>
    %869 = arith.mulf %868, %867 : vector<16x192xf32>
    %870 = arith.addf %745, %869 : vector<16x192xf32>
    %cst_469 = arith.constant 2.000000e+00 : f32
    %871 = vector.broadcast %cst_469 : f32 to vector<16x1xf32>
    %872 = arith.mulf %871, %806 : vector<16x1xf32>
    %873 = arith.addf %779, %872 : vector<16x1xf32>
    %cst_470 = arith.constant 2.000000e+00 : f32
    %874 = vector.broadcast %cst_470 : f32 to vector<16x1xf32>
    %875 = arith.mulf %874, %833 : vector<16x1xf32>
    %876 = arith.addf %873, %875 : vector<16x1xf32>
    %877 = arith.addf %876, %860 : vector<16x1xf32>
    %cst_471 = arith.constant 0.0208329167 : f32
    %878 = vector.broadcast %cst_471 : f32 to vector<16x1xf32>
    %879 = arith.mulf %878, %877 : vector<16x1xf32>
    %880 = arith.addf %755, %879 : vector<16x1xf32>
    %c14_472 = arith.constant 14 : index
    %c0_473 = arith.constant 0 : index
    %881 = vector.load %arg5[%c14_472, %c0_473] : memref<24x128xf32, #tpu.memory_space<vmem>>, vector<1x128xf32>
    %882 = arith.truncf %870 : vector<16x192xf32> to vector<16x192xbf16>
    %c0_474 = arith.constant 0 : index
    %c0_475 = arith.constant 0 : index
    %883 = vector.load %arg3[%c0_474, %c0_475] : memref<192x128xbf16, #tpu.memory_space<vmem>>, vector<192x128xbf16>
    %cst_476 = arith.constant dense<0.000000e+00> : vector<16x128xf32>
    %884 = tpu.matmul %882, %883, %cst_476 {dimension_numbers = #tpu.dot_dimension_numbers<[1], [0], [0], [1], [0, 0, 1, 1], [], []>} : vector<16x192xbf16>, vector<192x128xbf16>, vector<16x128xf32> -> vector<16x128xf32>
    %c0_477 = arith.constant 0 : index
    %c0_478 = arith.constant 0 : index
    %885 = vector.load %arg2[%c0_477, %c0_478] : memref<16x128xf32, #tpu.memory_space<vmem>>, vector<16x128xf32>
    %886 = arith.addf %884, %885 : vector<16x128xf32>
    %887 = vector.broadcast %881 : vector<1x128xf32> to vector<16x128xf32>
    %888 = arith.addf %886, %887 : vector<16x128xf32>
    %889 = math.tanh %888 : vector<16x128xf32>
    %890 = arith.truncf %889 : vector<16x128xf32> to vector<16x128xbf16>
    %c0_479 = arith.constant 0 : index
    %c0_480 = arith.constant 0 : index
    %891 = vector.load %arg4[%c0_479, %c0_480] : memref<128x192xbf16, #tpu.memory_space<vmem>>, vector<128x192xbf16>
    %cst_481 = arith.constant dense<0.000000e+00> : vector<16x192xf32>
    %892 = tpu.matmul %890, %891, %cst_481 {dimension_numbers = #tpu.dot_dimension_numbers<[1], [0], [0], [1], [0, 0, 1, 1], [], []>} : vector<16x128xbf16>, vector<128x192xbf16>, vector<16x192xf32> -> vector<16x192xf32>
    %cst_482 = arith.constant 0.000000e+00 : f32
    %893 = vector.broadcast %cst_482 : f32 to vector<16x192xf32>
    %894 = arith.subf %893, %892 : vector<16x192xf32>
    %cst_483 = arith.constant 1.00021172 : f32
    %895 = vector.broadcast %cst_483 : f32 to vector<16x192xf32>
    %896 = arith.mulf %894, %895 : vector<16x192xf32>
    %cst_484 = arith.constant -8.76496506 : f32
    %897 = vector.broadcast %cst_484 : f32 to vector<16x192xf32>
    %898 = arith.mulf %897, %870 : vector<16x192xf32>
    %cst_485 = arith.constant 8.76496506 : f32
    %899 = vector.broadcast %cst_485 : f32 to vector<16x192xf32>
    %900 = arith.mulf %899, %896 : vector<16x192xf32>
    %901 = arith.subf %898, %900 : vector<16x192xf32>
    %902 = arith.mulf %896, %901 : vector<16x192xf32>
    %cst_486 = arith.constant dense<0.000000e+00> : vector<16xf32>
    %903 = vector.multi_reduction <add>, %902, %cst_486 [1] : vector<16x192xf32> to vector<16xf32>
    %904 = vector.shape_cast %903 : vector<16xf32> to vector<16x1xf32>
    %cst_487 = arith.constant 0.0624987483 : f32
    %905 = vector.broadcast %cst_487 : f32 to vector<16x192xf32>
    %906 = arith.mulf %905, %901 : vector<16x192xf32>
    %907 = arith.addf %870, %906 : vector<16x192xf32>
    %c15 = arith.constant 15 : index
    %c0_488 = arith.constant 0 : index
    %908 = vector.load %arg5[%c15, %c0_488] : memref<24x128xf32, #tpu.memory_space<vmem>>, vector<1x128xf32>
    %909 = arith.truncf %907 : vector<16x192xf32> to vector<16x192xbf16>
    %c0_489 = arith.constant 0 : index
    %c0_490 = arith.constant 0 : index
    %910 = vector.load %arg3[%c0_489, %c0_490] : memref<192x128xbf16, #tpu.memory_space<vmem>>, vector<192x128xbf16>
    %cst_491 = arith.constant dense<0.000000e+00> : vector<16x128xf32>
    %911 = tpu.matmul %909, %910, %cst_491 {dimension_numbers = #tpu.dot_dimension_numbers<[1], [0], [0], [1], [0, 0, 1, 1], [], []>} : vector<16x192xbf16>, vector<192x128xbf16>, vector<16x128xf32> -> vector<16x128xf32>
    %c0_492 = arith.constant 0 : index
    %c0_493 = arith.constant 0 : index
    %912 = vector.load %arg2[%c0_492, %c0_493] : memref<16x128xf32, #tpu.memory_space<vmem>>, vector<16x128xf32>
    %913 = arith.addf %911, %912 : vector<16x128xf32>
    %914 = vector.broadcast %908 : vector<1x128xf32> to vector<16x128xf32>
    %915 = arith.addf %913, %914 : vector<16x128xf32>
    %916 = math.tanh %915 : vector<16x128xf32>
    %917 = arith.truncf %916 : vector<16x128xf32> to vector<16x128xbf16>
    %c0_494 = arith.constant 0 : index
    %c0_495 = arith.constant 0 : index
    %918 = vector.load %arg4[%c0_494, %c0_495] : memref<128x192xbf16, #tpu.memory_space<vmem>>, vector<128x192xbf16>
    %cst_496 = arith.constant dense<0.000000e+00> : vector<16x192xf32>
    %919 = tpu.matmul %917, %918, %cst_496 {dimension_numbers = #tpu.dot_dimension_numbers<[1], [0], [0], [1], [0, 0, 1, 1], [], []>} : vector<16x128xbf16>, vector<128x192xbf16>, vector<16x192xf32> -> vector<16x192xf32>
    %cst_497 = arith.constant 0.000000e+00 : f32
    %920 = vector.broadcast %cst_497 : f32 to vector<16x192xf32>
    %921 = arith.subf %920, %919 : vector<16x192xf32>
    %cst_498 = arith.constant 1.00006795 : f32
    %922 = vector.broadcast %cst_498 : f32 to vector<16x192xf32>
    %923 = arith.mulf %921, %922 : vector<16x192xf32>
    %cst_499 = arith.constant -9.38248252 : f32
    %924 = vector.broadcast %cst_499 : f32 to vector<16x192xf32>
    %925 = arith.mulf %924, %907 : vector<16x192xf32>
    %cst_500 = arith.constant 9.38248252 : f32
    %926 = vector.broadcast %cst_500 : f32 to vector<16x192xf32>
    %927 = arith.mulf %926, %923 : vector<16x192xf32>
    %928 = arith.subf %925, %927 : vector<16x192xf32>
    %929 = arith.mulf %923, %928 : vector<16x192xf32>
    %cst_501 = arith.constant dense<0.000000e+00> : vector<16xf32>
    %930 = vector.multi_reduction <add>, %929, %cst_501 [1] : vector<16x192xf32> to vector<16xf32>
    %931 = vector.shape_cast %930 : vector<16xf32> to vector<16x1xf32>
    %cst_502 = arith.constant 0.0624987483 : f32
    %932 = vector.broadcast %cst_502 : f32 to vector<16x192xf32>
    %933 = arith.mulf %932, %928 : vector<16x192xf32>
    %934 = arith.addf %870, %933 : vector<16x192xf32>
    %c15_503 = arith.constant 15 : index
    %c0_504 = arith.constant 0 : index
    %935 = vector.load %arg5[%c15_503, %c0_504] : memref<24x128xf32, #tpu.memory_space<vmem>>, vector<1x128xf32>
    %936 = arith.truncf %934 : vector<16x192xf32> to vector<16x192xbf16>
    %c0_505 = arith.constant 0 : index
    %c0_506 = arith.constant 0 : index
    %937 = vector.load %arg3[%c0_505, %c0_506] : memref<192x128xbf16, #tpu.memory_space<vmem>>, vector<192x128xbf16>
    %cst_507 = arith.constant dense<0.000000e+00> : vector<16x128xf32>
    %938 = tpu.matmul %936, %937, %cst_507 {dimension_numbers = #tpu.dot_dimension_numbers<[1], [0], [0], [1], [0, 0, 1, 1], [], []>} : vector<16x192xbf16>, vector<192x128xbf16>, vector<16x128xf32> -> vector<16x128xf32>
    %c0_508 = arith.constant 0 : index
    %c0_509 = arith.constant 0 : index
    %939 = vector.load %arg2[%c0_508, %c0_509] : memref<16x128xf32, #tpu.memory_space<vmem>>, vector<16x128xf32>
    %940 = arith.addf %938, %939 : vector<16x128xf32>
    %941 = vector.broadcast %935 : vector<1x128xf32> to vector<16x128xf32>
    %942 = arith.addf %940, %941 : vector<16x128xf32>
    %943 = math.tanh %942 : vector<16x128xf32>
    %944 = arith.truncf %943 : vector<16x128xf32> to vector<16x128xbf16>
    %c0_510 = arith.constant 0 : index
    %c0_511 = arith.constant 0 : index
    %945 = vector.load %arg4[%c0_510, %c0_511] : memref<128x192xbf16, #tpu.memory_space<vmem>>, vector<128x192xbf16>
    %cst_512 = arith.constant dense<0.000000e+00> : vector<16x192xf32>
    %946 = tpu.matmul %944, %945, %cst_512 {dimension_numbers = #tpu.dot_dimension_numbers<[1], [0], [0], [1], [0, 0, 1, 1], [], []>} : vector<16x128xbf16>, vector<128x192xbf16>, vector<16x192xf32> -> vector<16x192xf32>
    %cst_513 = arith.constant 0.000000e+00 : f32
    %947 = vector.broadcast %cst_513 : f32 to vector<16x192xf32>
    %948 = arith.subf %947, %946 : vector<16x192xf32>
    %cst_514 = arith.constant 1.00006795 : f32
    %949 = vector.broadcast %cst_514 : f32 to vector<16x192xf32>
    %950 = arith.mulf %948, %949 : vector<16x192xf32>
    %cst_515 = arith.constant -9.38248252 : f32
    %951 = vector.broadcast %cst_515 : f32 to vector<16x192xf32>
    %952 = arith.mulf %951, %934 : vector<16x192xf32>
    %cst_516 = arith.constant 9.38248252 : f32
    %953 = vector.broadcast %cst_516 : f32 to vector<16x192xf32>
    %954 = arith.mulf %953, %950 : vector<16x192xf32>
    %955 = arith.subf %952, %954 : vector<16x192xf32>
    %956 = arith.mulf %950, %955 : vector<16x192xf32>
    %cst_517 = arith.constant dense<0.000000e+00> : vector<16xf32>
    %957 = vector.multi_reduction <add>, %956, %cst_517 [1] : vector<16x192xf32> to vector<16xf32>
    %958 = vector.shape_cast %957 : vector<16xf32> to vector<16x1xf32>
    %cst_518 = arith.constant 0.124997497 : f32
    %959 = vector.broadcast %cst_518 : f32 to vector<16x192xf32>
    %960 = arith.mulf %959, %955 : vector<16x192xf32>
    %961 = arith.addf %870, %960 : vector<16x192xf32>
    %c16 = arith.constant 16 : index
    %c0_519 = arith.constant 0 : index
    %962 = vector.load %arg5[%c16, %c0_519] : memref<24x128xf32, #tpu.memory_space<vmem>>, vector<1x128xf32>
    %963 = arith.truncf %961 : vector<16x192xf32> to vector<16x192xbf16>
    %c0_520 = arith.constant 0 : index
    %c0_521 = arith.constant 0 : index
    %964 = vector.load %arg3[%c0_520, %c0_521] : memref<192x128xbf16, #tpu.memory_space<vmem>>, vector<192x128xbf16>
    %cst_522 = arith.constant dense<0.000000e+00> : vector<16x128xf32>
    %965 = tpu.matmul %963, %964, %cst_522 {dimension_numbers = #tpu.dot_dimension_numbers<[1], [0], [0], [1], [0, 0, 1, 1], [], []>} : vector<16x192xbf16>, vector<192x128xbf16>, vector<16x128xf32> -> vector<16x128xf32>
    %c0_523 = arith.constant 0 : index
    %c0_524 = arith.constant 0 : index
    %966 = vector.load %arg2[%c0_523, %c0_524] : memref<16x128xf32, #tpu.memory_space<vmem>>, vector<16x128xf32>
    %967 = arith.addf %965, %966 : vector<16x128xf32>
    %968 = vector.broadcast %962 : vector<1x128xf32> to vector<16x128xf32>
    %969 = arith.addf %967, %968 : vector<16x128xf32>
    %970 = math.tanh %969 : vector<16x128xf32>
    %971 = arith.truncf %970 : vector<16x128xf32> to vector<16x128xbf16>
    %c0_525 = arith.constant 0 : index
    %c0_526 = arith.constant 0 : index
    %972 = vector.load %arg4[%c0_525, %c0_526] : memref<128x192xbf16, #tpu.memory_space<vmem>>, vector<128x192xbf16>
    %cst_527 = arith.constant dense<0.000000e+00> : vector<16x192xf32>
    %973 = tpu.matmul %971, %972, %cst_527 {dimension_numbers = #tpu.dot_dimension_numbers<[1], [0], [0], [1], [0, 0, 1, 1], [], []>} : vector<16x128xbf16>, vector<128x192xbf16>, vector<16x192xf32> -> vector<16x192xf32>
    %cst_528 = arith.constant 0.000000e+00 : f32
    %974 = vector.broadcast %cst_528 : f32 to vector<16x192xf32>
    %975 = arith.subf %974, %973 : vector<16x192xf32>
    %cst_529 = arith.constant 1.00002015 : f32
    %976 = vector.broadcast %cst_529 : f32 to vector<16x192xf32>
    %977 = arith.mulf %975, %976 : vector<16x192xf32>
    %cst_530 = arith.constant -1.000000e+01 : f32
    %978 = vector.broadcast %cst_530 : f32 to vector<16x192xf32>
    %979 = arith.mulf %978, %961 : vector<16x192xf32>
    %cst_531 = arith.constant 1.000000e+01 : f32
    %980 = vector.broadcast %cst_531 : f32 to vector<16x192xf32>
    %981 = arith.mulf %980, %977 : vector<16x192xf32>
    %982 = arith.subf %979, %981 : vector<16x192xf32>
    %983 = arith.mulf %977, %982 : vector<16x192xf32>
    %cst_532 = arith.constant dense<0.000000e+00> : vector<16xf32>
    %984 = vector.multi_reduction <add>, %983, %cst_532 [1] : vector<16x192xf32> to vector<16xf32>
    %985 = vector.shape_cast %984 : vector<16xf32> to vector<16x1xf32>
    %cst_533 = arith.constant 2.000000e+00 : f32
    %986 = vector.broadcast %cst_533 : f32 to vector<16x192xf32>
    %987 = arith.mulf %986, %928 : vector<16x192xf32>
    %988 = arith.addf %901, %987 : vector<16x192xf32>
    %cst_534 = arith.constant 2.000000e+00 : f32
    %989 = vector.broadcast %cst_534 : f32 to vector<16x192xf32>
    %990 = arith.mulf %989, %955 : vector<16x192xf32>
    %991 = arith.addf %988, %990 : vector<16x192xf32>
    %992 = arith.addf %991, %982 : vector<16x192xf32>
    %cst_535 = arith.constant 0.0208329167 : f32
    %993 = vector.broadcast %cst_535 : f32 to vector<16x192xf32>
    %994 = arith.mulf %993, %992 : vector<16x192xf32>
    %995 = arith.addf %870, %994 : vector<16x192xf32>
    %cst_536 = arith.constant 2.000000e+00 : f32
    %996 = vector.broadcast %cst_536 : f32 to vector<16x1xf32>
    %997 = arith.mulf %996, %931 : vector<16x1xf32>
    %998 = arith.addf %904, %997 : vector<16x1xf32>
    %cst_537 = arith.constant 2.000000e+00 : f32
    %999 = vector.broadcast %cst_537 : f32 to vector<16x1xf32>
    %1000 = arith.mulf %999, %958 : vector<16x1xf32>
    %1001 = arith.addf %998, %1000 : vector<16x1xf32>
    %1002 = arith.addf %1001, %985 : vector<16x1xf32>
    %cst_538 = arith.constant 0.0208329167 : f32
    %1003 = vector.broadcast %cst_538 : f32 to vector<16x1xf32>
    %1004 = arith.mulf %1003, %1002 : vector<16x1xf32>
    %1005 = arith.addf %880, %1004 : vector<16x1xf32>
    %1006 = arith.mulf %995, %995 : vector<16x192xf32>
    %cst_539 = arith.constant dense<0.000000e+00> : vector<16xf32>
    %1007 = vector.multi_reduction <add>, %1006, %cst_539 [1] : vector<16x192xf32> to vector<16xf32>
    %1008 = vector.shape_cast %1007 : vector<16xf32> to vector<16x1xf32>
    %cst_540 = arith.constant -5.000000e-01 : f32
    %1009 = vector.broadcast %cst_540 : f32 to vector<16x1xf32>
    %1010 = arith.mulf %1009, %1008 : vector<16x1xf32>
    %cst_541 = arith.constant 176.436203 : f32
    %1011 = vector.broadcast %cst_541 : f32 to vector<16x1xf32>
    %1012 = arith.subf %1010, %1011 : vector<16x1xf32>
    %1013 = arith.addf %1005, %1012 : vector<16x1xf32>
    %cst_542 = arith.constant 0.000000e+00 : f32
    %1014 = vector.broadcast %cst_542 : f32 to vector<16x1xf32>
    %1015 = arith.subf %1014, %1013 : vector<16x1xf32>
    %cst_543 = arith.constant 1.920000e+02 : f32
    %1016 = vector.broadcast %cst_543 : f32 to vector<16x1xf32>
    %1017 = arith.divf %1015, %1016 : vector<16x1xf32>
    %cst_544 = arith.constant 0.693147182 : f32
    %1018 = vector.broadcast %cst_544 : f32 to vector<16x1xf32>
    %1019 = arith.divf %1017, %1018 : vector<16x1xf32>
    %cst_545 = arith.constant 7.000000e+00 : f32
    %1020 = vector.broadcast %cst_545 : f32 to vector<16x1xf32>
    %1021 = arith.addf %1019, %1020 : vector<16x1xf32>
    %c0_546 = arith.constant 0 : index
    %c0_547 = arith.constant 0 : index
    %1022 = vector.load %arg6[%c0_546, %c0_547] : memref<16x1xf32, #tpu.memory_space<vmem>>, vector<16x1xf32>
    tpu.vector_store %arg6[%c0_546, %c0_547], %1021 {strides = array<i32>} : memref<16x1xf32, #tpu.memory_space<vmem>>, vector<16x1xf32>,
    return
  }
  func.func @transform_0(%arg0: i32) -> (i32, i32) {
    %c0_i32 = arith.constant 0 : i32
    %c0_i32_0 = arith.constant 0 : i32
    return %arg0, %c0_i32 : i32, i32
  }
  func.func @transform_1(%arg0: i32) -> (i32, i32) {
    %c0_i32 = arith.constant 0 : i32
    %c0_i32_0 = arith.constant 0 : i32
    return %arg0, %c0_i32 : i32, i32
  }
  func.func @transform_2(%arg0: i32) -> (i32, i32) {
    %c0_i32 = arith.constant 0 : i32
    %c0_i32_0 = arith.constant 0 : i32
    %c0_i32_1 = arith.constant 0 : i32
    return %c0_i32, %c0_i32_0 : i32, i32
  }
  func.func @transform_3(%arg0: i32) -> (i32, i32) {
    %c0_i32 = arith.constant 0 : i32
    %c0_i32_0 = arith.constant 0 : i32
    %c0_i32_1 = arith.constant 0 : i32
    return %c0_i32, %c0_i32_0 : i32, i32
  }
  func.func @transform_4(%arg0: i32) -> (i32, i32) {
    %c0_i32 = arith.constant 0 : i32
    %c0_i32_0 = arith.constant 0 : i32
    %c0_i32_1 = arith.constant 0 : i32
    return %c0_i32, %c0_i32_0 : i32, i32
  }
  func.func @transform_5(%arg0: i32) -> (i32, i32) {
    %c0_i32 = arith.constant 0 : i32
    %c0_i32_0 = arith.constant 0 : i32
    return %arg0, %c0_i32 : i32, i32
  }
}

</mosaic_0001>

<llo_original>
// kernel: sbgc_forward.1
$region0: #{sbgc_forward.1}
  #allocation0 [shape = 'u32[]', space=smem, size = 0x4, offset = 0x4, fixed_abs, tag = 'smem constant byte address 0x4 - core index']
  #allocation1 [shape = 'u32[72,128]{1,0:T(1,128)}', space=vmem, size = 0x9000, scoped, tag = 'internal scratch']
  %s0 = inlined_call_operand.vmem [shape: f32[32,192], index: 0, kind: input, shape index: {}]
  %s1 = inlined_call_operand.vmem [shape: f32[32,128], index: 1, kind: input, shape index: {}]
  %s2 = inlined_call_operand.vmem [shape: bf16[192,128], index: 2, kind: input, shape index: {}]
  %s3 = inlined_call_operand.vmem [shape: bf16[128,192], index: 3, kind: input, shape index: {}]
  %s4 = inlined_call_operand.vmem [shape: f32[24,128], index: 4, kind: input, shape index: {}]
  %s5 = inlined_call_operand.vmem [shape: f32[32,1], index: 5, kind: output, shape index: {}]
  %s6 = sld [smem:[#allocation0]]
  $region53: #{sbgc_forward.1} parent=0
    _
  %s8 = ssub.s32 1, %s6
  %s9 = scalar_select 0, %s8, %s6
  loop: start=0, step=1, limit=4
  $region2: #{sbgc_forward.1} parent=0 // loop_pre_header
    _
  $region3: #{sbgc_forward.1} parent=0 // loop_header
    %s11 = sphi 0, %s15
    %p12 = scmp.ge.s32.totalorder %s11, 4
    %s21 = sphi 0, %s23
    %s24 = sphi 0, %s21
    %s25 = sphi 0, %s24
    %s41 = sphi 0, %s25
    %s47 = sphi 0, %s49
    %s50 = sphi 0, %s47
    %s51 = sphi 0, %s50
    %s67 = sphi 0, %s51
    %s71 = sphi 0, %s71
    %s73 = sphi 0, %s71
    %s74 = sphi 0, %s73
    %s88 = sphi 0, %s74
    %s92 = sphi 0, %s92
    %s94 = sphi 0, %s92
    %s95 = sphi 0, %s94
    %s109 = sphi 0, %s95
    %s113 = sphi 0, %s113
    %s115 = sphi 0, %s113
    %s116 = sphi 0, %s115
    %s130 = sphi 0, %s116
    %s136 = sphi 0, %s138
    %s139 = sphi 0, %s136
    %s140 = sphi 0, %s139
    %s156 = sphi 0, %s140
  $region4: #{sbgc_forward.1} parent=0 // loop_header_branch
    %14 = sbr.rel (%p12) target = $region8
  $region5: #{sbgc_forward.1} parent=0 // loop_body
    %s16 = ssub.s32 %s11, 1
    %s17 = ssub.s32 %s11, 2
    %s18 = sadd.s32 %s11, 1
    %s19 = ssub.s32 %s11, %s18
    %p20 = scmp.eq.s32.totalorder %s19, 0
    %s22 = sadd.s32 %s21, 1
    %s23 = scalar_select %p20, %s21, %s22
    %p26 = pneg %p20
    %p27 = scmp.eq.s32.totalorder %s11, 1
    %p28 = por %p26, %p27
    %p29 = scmp.ne.s32.totalorder %s21, %s24
    %p30 = scmp.eq.s32.totalorder %s11, 0
    %p31 = por %p29, %p30
    %p32 = scmp.ne.s32.totalorder %s21, %s24
    %p33 = scmp.eq.s32.totalorder %s16, 1
    %p34 = por %p32, %p33
    %p35 = scmp.ne.s32.totalorder %s24, %s25
    %p36 = scmp.eq.s32.totalorder %s16, 0
    %p37 = por %p35, %p36
    %p38 = scmp.ne.s32.totalorder %s24, %s25
    %p39 = scmp.eq.s32.totalorder %s17, 1
    %p40 = por %p38, %p39
    %p42 = scmp.ne.s32.totalorder %s25, %s41
    %p43 = scmp.eq.s32.totalorder %s17, 0
    %p44 = por %p42, %p43
    %s45 = ssub.s32 %s11, %s18
    %p46 = scmp.eq.s32.totalorder %s45, 0
    %s48 = sadd.s32 %s47, 1
    %s49 = scalar_select %p46, %s47, %s48
    %p52 = pneg %p46
    %p53 = scmp.eq.s32.totalorder %s11, 1
    %p54 = por %p52, %p53
    %p55 = scmp.ne.s32.totalorder %s47, %s50
    %p56 = scmp.eq.s32.totalorder %s11, 0
    %p57 = por %p55, %p56
    %p58 = scmp.ne.s32.totalorder %s47, %s50
    %p59 = scmp.eq.s32.totalorder %s16, 1
    %p60 = por %p58, %p59
    %p61 = scmp.ne.s32.totalorder %s50, %s51
    %p62 = scmp.eq.s32.totalorder %s16, 0
    %p63 = por %p61, %p62
    %p64 = scmp.ne.s32.totalorder %s50, %s51
    %p65 = scmp.eq.s32.totalorder %s17, 1
    %p66 = por %p64, %p65
    %p68 = scmp.ne.s32.totalorder %s51, %s67
    %p69 = scmp.eq.s32.totalorder %s17, 0
    %p70 = por %p68, %p69
    %s72 = sadd.s32 %s71, 1
    %p75 = scmp.eq.s32.totalorder %s11, 1
    %p76 = scmp.ne.s32.totalorder %s71, %s73
    %p77 = scmp.eq.s32.totalorder %s11, 0
    %p78 = por %p76, %p77
    %p79 = scmp.ne.s32.totalorder %s71, %s73
    %p80 = scmp.eq.s32.totalorder %s16, 1
    %p81 = por %p79, %p80
    %p82 = scmp.ne.s32.totalorder %s73, %s74
    %p83 = scmp.eq.s32.totalorder %s16, 0
    %p84 = por %p82, %p83
    %p85 = scmp.ne.s32.totalorder %s73, %s74
    %p86 = scmp.eq.s32.totalorder %s17, 1
    %p87 = por %p85, %p86
    %p89 = scmp.ne.s32.totalorder %s74, %s88
    %p90 = scmp.eq.s32.totalorder %s17, 0
    %p91 = por %p89, %p90
    %s93 = sadd.s32 %s92, 1
    %p96 = scmp.eq.s32.totalorder %s11, 1
    %p97 = scmp.ne.s32.totalorder %s92, %s94
    %p98 = scmp.eq.s32.totalorder %s11, 0
    %p99 = por %p97, %p98
    %p100 = scmp.ne.s32.totalorder %s92, %s94
    %p101 = scmp.eq.s32.totalorder %s16, 1
    %p102 = por %p100, %p101
    %p103 = scmp.ne.s32.totalorder %s94, %s95
    %p104 = scmp.eq.s32.totalorder %s16, 0
    %p105 = por %p103, %p104
    %p106 = scmp.ne.s32.totalorder %s94, %s95
    %p107 = scmp.eq.s32.totalorder %s17, 1
    %p108 = por %p106, %p107
    %p110 = scmp.ne.s32.totalorder %s95, %s109
    %p111 = scmp.eq.s32.totalorder %s17, 0
    %p112 = por %p110, %p111
    %s114 = sadd.s32 %s113, 1
    %p117 = scmp.eq.s32.totalorder %s11, 1
    %p118 = scmp.ne.s32.totalorder %s113, %s115
    %p119 = scmp.eq.s32.totalorder %s11, 0
    %p120 = por %p118, %p119
    %p121 = scmp.ne.s32.totalorder %s113, %s115
    %p122 = scmp.eq.s32.totalorder %s16, 1
    %p123 = por %p121, %p122
    %p124 = scmp.ne.s32.totalorder %s115, %s116
    %p125 = scmp.eq.s32.totalorder %s16, 0
    %p126 = por %p124, %p125
    %p127 = scmp.ne.s32.totalorder %s115, %s116
    %p128 = scmp.eq.s32.totalorder %s17, 1
    %p129 = por %p127, %p128
    %p131 = scmp.ne.s32.totalorder %s116, %s130
    %p132 = scmp.eq.s32.totalorder %s17, 0
    %p133 = por %p131, %p132
    %s134 = ssub.s32 %s11, %s18
    %p135 = scmp.eq.s32.totalorder %s134, 0
    %s137 = sadd.s32 %s136, 1
    %s138 = scalar_select %p135, %s136, %s137
    %p141 = pneg %p135
    %p142 = scmp.eq.s32.totalorder %s11, 1
    %p143 = por %p141, %p142
    %p144 = scmp.ne.s32.totalorder %s136, %s139
    %p145 = scmp.eq.s32.totalorder %s11, 0
    %p146 = por %p144, %p145
    %p147 = scmp.ne.s32.totalorder %s136, %s139
    %p148 = scmp.eq.s32.totalorder %s16, 1
    %p149 = por %p147, %p148
    %p150 = scmp.ne.s32.totalorder %s139, %s140
    %p151 = scmp.eq.s32.totalorder %s16, 0
    %p152 = por %p150, %p151
    %p153 = scmp.ne.s32.totalorder %s139, %s140
    %p154 = scmp.eq.s32.totalorder %s17, 1
    %p155 = por %p153, %p154
    %p157 = scmp.ne.s32.totalorder %s140, %s156
    %p158 = scmp.eq.s32.totalorder %s17, 0
    %p159 = por %p157, %p158
    %p160 = scmp.le.s32.totalorder 1, %s11
    %p161 = scmp.lt.s32.totalorder %s11, 3
    %p162 = pnand %p160, %p161
    %p163 = pneg %p162
    // Predicated region
    $region9: #{sbgc_forward.1} parent=5 // pred_check
      _
    $region10: #{sbgc_forward.1} parent=5 // pred_check_branch
      %165 = sbr.rel (%p162) target = $region12
    $region11: #{sbgc_forward.1} parent=5 // pred_region
      %s166 = ssub.s32 %s11, 1
      // Predicated region
      $region13: #{sbgc_forward.1} parent=11 // pred_check
        %p167 = pneg %p84
      $region14: #{sbgc_forward.1} parent=11 // pred_check_branch
        %169 = sbr.rel (%p167) target = $region16
      $region15: #{sbgc_forward.1} parent=11 // pred_region
        _
      $region16: #{sbgc_forward.1} parent=11 // pred_fallthru
        _
      // Predicated region
      $region17: #{sbgc_forward.1} parent=11 // pred_check
        %p170 = pneg %p105
      $region18: #{sbgc_forward.1} parent=11 // pred_check_branch
        %172 = sbr.rel (%p170) target = $region20
      $region19: #{sbgc_forward.1} parent=11 // pred_region
        _
      $region20: #{sbgc_forward.1} parent=11 // pred_fallthru
        _
      // Predicated region
      $region21: #{sbgc_forward.1} parent=11 // pred_check
        %p173 = pneg %p126
      $region22: #{sbgc_forward.1} parent=11 // pred_check_branch
        %175 = sbr.rel (%p173) target = $region24
      $region23: #{sbgc_forward.1} parent=11 // pred_region
        _
      $region24: #{sbgc_forward.1} parent=11 // pred_fallthru
        _
    $region12: #{sbgc_forward.1} parent=5 // pred_fallthru
      _
    %p176 = scmp.lt.s32.totalorder %s11, 2
    // Predicated region
    $region25: #{sbgc_forward.1} parent=5 // pred_check
      %p177 = pneg %p176
    $region26: #{sbgc_forward.1} parent=5 // pred_check_branch
      %179 = sbr.rel (%p177) target = $region28
    $region27: #{sbgc_forward.1} parent=5 // pred_region
      // Predicated region
      $region29: #{sbgc_forward.1} parent=27 // pred_check
        %p180 = pneg %p31
      $region30: #{sbgc_forward.1} parent=27 // pred_check_branch
        %182 = sbr.rel (%p180) target = $region32
      $region31: #{sbgc_forward.1} parent=27 // pred_region
        %s183 = smul.u32 2, %s11
        %p184 = scmp.lt.s32.totalorder %s183, 3
        %s185 = scalar_select %p184, %s183, 3
        %s186 = smul.addr %s185, 2
        %s187 = smul.addr %s186, 8
        %s188 = scalar_lea.vmem %s0, %s187
        %s189 = smul.u32 2, %s11
      $region32: #{sbgc_forward.1} parent=27 // pred_fallthru
        _
      // Predicated region
      $region33: #{sbgc_forward.1} parent=27 // pred_check
        %p190 = pneg %p57
      $region34: #{sbgc_forward.1} parent=27 // pred_check_branch
        %192 = sbr.rel (%p190) target = $region36
      $region35: #{sbgc_forward.1} parent=27 // pred_region
        %s193 = smul.u32 2, %s11
        %p194 = scmp.lt.s32.totalorder %s193, 3
        %s195 = scalar_select %p194, %s193, 3
        %s196 = smul.addr %s195, 8
        %s197 = scalar_lea.vmem %s1, %s196
        %s198 = smul.u32 2, %s11
      $region36: #{sbgc_forward.1} parent=27 // pred_fallthru
        _
    $region28: #{sbgc_forward.1} parent=5 // pred_fallthru
      _
    %p199 = scmp.le.s32.totalorder 1, %s11
    %p200 = scmp.lt.s32.totalorder %s11, 3
    %p201 = pnand %p199, %p200
    %p202 = pneg %p201
    // Predicated region
    $region37: #{sbgc_forward.1} parent=5 // pred_check
      _
    $region38: #{sbgc_forward.1} parent=5 // pred_check_branch
      %204 = sbr.rel (%p201) target = $region40
    $region39: #{sbgc_forward.1} parent=5 // pred_region
      %s205 = ssub.s32 %s11, 1
      %s206 = smul.u32 2, %s16
      %p207 = scmp.lt.s32.totalorder %s206, 3
      %s208 = scalar_select %p207, %s206, 3
      %s209 = smul.addr %s208, 2
      %s210 = smul.addr %s209, 8
      %s211 = scalar_lea.vmem %s0, %s210
      %p212 = pneg %p37
      %p213 = pneg %p34
      %s214 = smul.u32 2, %s16
      %p215 = scmp.lt.s32.totalorder %s214, 3
      %s216 = scalar_select %p215, %s214, 3
      %s217 = smul.addr %s216, 8
      %s218 = scalar_lea.vmem %s1, %s217
      %p219 = pneg %p63
      %p220 = pneg %p60
      %p221 = pneg %p84
      %p222 = pneg %p81
      %p223 = pneg %p105
      %p224 = pneg %p102
      %p225 = pneg %p126
      %p226 = pneg %p123
      %p227 = pneg %p152
      %p228 = pneg %p149
      %s229 = smul.u32 2, %s16
      %p230 = scmp.lt.s32.totalorder %s229, 3
      %s231 = scalar_select %p230, %s229, 3
      %s232 = smul.addr %s231, 8
      %s233 = scalar_lea.vmem %s5, %s232
      %s234 = smul.u32 2, %s16
      %p235 = scmp.lt.s32.totalorder %s234, 3
      %s236 = scalar_select %p235, %s234, 3
      %s237 = smul.addr %s236, 2
      %s238 = smul.addr %s237, 8
      %s239 = scalar_lea.vmem %s0, %s238
      %s240 = smul.u32 2, %s16
      %s241 = smul.u32 2, %s16
      %p242 = scmp.lt.s32.totalorder %s241, 3
      %s243 = scalar_select %p242, %s241, 3
      %s244 = smul.addr %s243, 8
      %s245 = scalar_lea.vmem %s1, %s244
      %s246 = smul.u32 2, %s16
      %s247 = smul.u32 2, %s16
      %p248 = scmp.lt.s32.totalorder %s247, 3
      %s249 = scalar_select %p248, %s247, 3
      %s250 = smul.addr %s249, 8
      %s251 = scalar_lea.vmem %s5, %s250
      %s252 = smul.u32 2, %s16
      %v254 = vld [vmem:[%s239] sm:$0xff]
      %v255 = vld [vmem:[%s239 + $0x8] sm:$0xff]
      %v256 = vld [vmem:[%s239 + $0x10] sm:$0xff]
      %v257 = vld [vmem:[%s239 + $0x18] sm:$0xff]
      %v258 = vsub.f32 %v254, 0.5
      %v259 = vsub.f32 %v255, 0.5
      %v260 = vsub.f32 %v256, 0.5
      %v261 = vsub.f32 %v257, 0.5
      %v262 = vmul.f32 %v258, 2.0
      %v263 = vmul.f32 %v259, 2.0
      %v264 = vmul.f32 %v260, 2.0
      %v265 = vmul.f32 %v261, 2.0
      %v266 = vld [vmem:[%s4] sm:$0x1]
      %v267 = vpack.c.bf16 %v264, %v262
      %v268 = vpack.c.bf16 %v265, %v263
      %v269 = vld [vmem:[%s2] sm:$0xf]
      %v270 = vld [vmem:[%s2 + $0x4] sm:$0xf]
      %v271 = vld [vmem:[%s2 + $0x8] sm:$0xf]
      %v272 = vld [vmem:[%s2 + $0xc] sm:$0xf]
      %v273 = vld [vmem:[%s2 + $0x10] sm:$0xf]
      %v274 = vld [vmem:[%s2 + $0x14] sm:$0xf]
      %v275 = vld [vmem:[%s2 + $0x18] sm:$0xf]
      %v276 = vld [vmem:[%s2 + $0x1c] sm:$0xf]
      %v277 = vld [vmem:[%s2 + $0x20] sm:$0xf]
      %v278 = vld [vmem:[%s2 + $0x24] sm:$0xf]
      %v279 = vld [vmem:[%s2 + $0x28] sm:$0xf]
      %v280 = vld [vmem:[%s2 + $0x2c] sm:$0xf]
      %v281 = vld [vmem:[%s2 + $0x30] sm:$0xf]
      %v282 = vld [vmem:[%s2 + $0x34] sm:$0xf]
      %v283 = vld [vmem:[%s2 + $0x38] sm:$0xf]
      %v284 = vld [vmem:[%s2 + $0x3c] sm:$0xf]
      %v285 = vld [vmem:[%s2 + $0x40] sm:$0xf]
      %v286 = vld [vmem:[%s2 + $0x44] sm:$0xf]
      %v287 = vld [vmem:[%s2 + $0x48] sm:$0xf]
      %v288 = vld [vmem:[%s2 + $0x4c] sm:$0xf]
      %v289 = vld [vmem:[%s2 + $0x50] sm:$0xf]
      %v290 = vld [vmem:[%s2 + $0x54] sm:$0xf]
      %v291 = vld [vmem:[%s2 + $0x58] sm:$0xf]
      %v292 = vld [vmem:[%s2 + $0x5c] sm:$0xf]
      %v293 = vld [vmem:[%s245] sm:$0xff]
      %v294 = vld [vmem:[%s245 + $0x8] sm:$0xff]
      %v319 = vunpack.c.l.b16 %v269
      %v320 = vunpack.c.l.b16 %v270
      %v321 = vunpack.c.l.b16 %v271
      %v322 = vunpack.c.l.b16 %v272
      %v323 = vunpack.c.l.b16 %v273
      %v324 = vunpack.c.l.b16 %v274
      %v325 = vunpack.c.l.b16 %v275
      %v326 = vunpack.c.l.b16 %v276
      %v327 = vunpack.c.l.b16 %v277
      %v328 = vunpack.c.l.b16 %v278
      %v329 = vunpack.c.l.b16 %v279
      %v330 = vunpack.c.l.b16 %v280
      %v331 = vunpack.c.l.b16 %v281
      %v332 = vunpack.c.l.b16 %v282
      %v333 = vunpack.c.l.b16 %v283
      %v334 = vunpack.c.l.b16 %v284
      %v335 = vunpack.c.l.b16 %v285
      %v336 = vunpack.c.l.b16 %v286
      %v337 = vunpack.c.l.b16 %v287
      %v338 = vunpack.c.l.b16 %v288
      %v339 = vunpack.c.l.b16 %v289
      %v340 = vunpack.c.l.b16 %v290
      %v341 = vunpack.c.l.b16 %v291
      %v342 = vunpack.c.l.b16 %v292
      %v343 = vpack.c.b16 %v320, %v319
      %v344 = vpack.c.b16 %v322, %v321
      %v345 = vpack.c.b16 %v324, %v323
      %v346 = vpack.c.b16 %v326, %v325
      %v347 = vpack.c.b16 %v328, %v327
      %v348 = vpack.c.b16 %v330, %v329
      %v349 = vpack.c.b16 %v332, %v331
      %v350 = vpack.c.b16 %v334, %v333
      %v351 = vpack.c.b16 %v336, %v335
      %v352 = vpack.c.b16 %v338, %v337
      %v353 = vpack.c.b16 %v340, %v339
      %v354 = vpack.c.b16 %v342, %v341
      %vm367 = vcmask 523264
      %v369 = vsel %vm367, %v268, 0
      %371 = vmatpush.bf16.msra.mxu0 %v350
      %372 = vmatpush.bf16.msra.mxu0 %v349
      %373 = vmatpush.bf16.msra.mxu0 %v348
      %374 = vmatpush.bf16.msra.mxu0 %v347
      %375 = vmatpush.bf16.msra.mxu0 %v346
      %376 = vmatpush.bf16.msra.mxu0 %v345
      %377 = vmatpush.bf16.msra.mxu0 %v344
      %378 = vmatpush.bf16.msra.mxu0 %v343
      %379 = vmatmul.bf16.gmra.mxu0 %v267
      %v380 = vpop.f32.mrf.mxu0
      %v381 = vadd.f32 %v293, %v380
      %v382 = vpop.f32.mrf.mxu0
      %v383 = vadd.f32 %v294, %v382
      %384 = vdwg.mxu0
      %385 = vmatpush.bf16.msra.mxu0 0
      %386 = vmatpush.bf16.msra.mxu0 0
      %387 = vmatpush.bf16.msra.mxu0 0
      %388 = vmatpush.bf16.msra.mxu0 0
      %389 = vmatpush.bf16.msra.mxu0 %v354
      %390 = vmatpush.bf16.msra.mxu0 %v353
      %391 = vmatpush.bf16.msra.mxu0 %v352
      %392 = vmatpush.bf16.msra.mxu0 %v351
      %393 = vmatmul.bf16.gmra.mxu0 %v369
      %v394 = vpop.f32.mrf.mxu0
      %v395 = vadd.f32 %v381, %v394
      %v396 = vpop.f32.mrf.mxu0
      %v397 = vadd.f32 %v383, %v396
      %398 = vdwg.mxu0
      %v399 = vperm.slane %v266, 0
      %v400 = vadd.f32 %v395, %v399
      %v401 = vadd.f32 %v397, %v399
      %v402 = vtanh.pop %v400
      %v403 = vtanh.pop %v401
      %v404 = vpack.c.bf16 %v403, %v402
      %v405 = vld [vmem:[%s3] sm:$0xff]
      %v406 = vld [vmem:[%s3 + $0x8] sm:$0xff]
      %v407 = vld [vmem:[%s3 + $0x10] sm:$0xff]
      %v408 = vld [vmem:[%s3 + $0x18] sm:$0xff]
      %v409 = vld [vmem:[%s3 + $0x20] sm:$0xff]
      %v410 = vld [vmem:[%s3 + $0x28] sm:$0xff]
      %v411 = vld [vmem:[%s3 + $0x30] sm:$0xff]
      %v412 = vld [vmem:[%s3 + $0x38] sm:$0xff]
      %v413 = vld [vmem:[%s3 + $0x40] sm:$0xff]
      %v414 = vld [vmem:[%s3 + $0x48] sm:$0xff]
      %v415 = vld [vmem:[%s3 + $0x50] sm:$0xff]
      %v416 = vld [vmem:[%s3 + $0x58] sm:$0xff]
      %v417 = vld [vmem:[%s3 + $0x60] sm:$0xff]
      %v418 = vld [vmem:[%s3 + $0x68] sm:$0xff]
      %v419 = vld [vmem:[%s3 + $0x70] sm:$0xff]
      %v420 = vld [vmem:[%s3 + $0x78] sm:$0xff]
      %v437 = vunpack.c.l.b16 %v405
      %v438 = vunpack.c.h.b16 %v405
      %v439 = vunpack.c.l.b16 %v406
      %v440 = vunpack.c.h.b16 %v406
      %v441 = vunpack.c.l.b16 %v407
      %v442 = vunpack.c.h.b16 %v407
      %v443 = vunpack.c.l.b16 %v408
      %v444 = vunpack.c.h.b16 %v408
      %v445 = vunpack.c.l.b16 %v409
      %v446 = vunpack.c.h.b16 %v409
      %v447 = vunpack.c.l.b16 %v410
      %v448 = vunpack.c.h.b16 %v410
      %v449 = vunpack.c.l.b16 %v411
      %v450 = vunpack.c.h.b16 %v411
      %v451 = vunpack.c.l.b16 %v412
      %v452 = vunpack.c.h.b16 %v412
      %v453 = vunpack.c.l.b16 %v413
      %v454 = vunpack.c.h.b16 %v413
      %v455 = vunpack.c.l.b16 %v414
      %v456 = vunpack.c.h.b16 %v414
      %v457 = vunpack.c.l.b16 %v415
      %v458 = vunpack.c.h.b16 %v415
      %v459 = vunpack.c.l.b16 %v416
      %v460 = vunpack.c.h.b16 %v416
      %v461 = vunpack.c.l.b16 %v417
      %v462 = vunpack.c.h.b16 %v417
      %v463 = vunpack.c.l.b16 %v418
      %v464 = vunpack.c.h.b16 %v418
      %v465 = vunpack.c.l.b16 %v419
      %v466 = vunpack.c.h.b16 %v419
      %v467 = vunpack.c.l.b16 %v420
      %v468 = vunpack.c.h.b16 %v420
      %v469 = vpack.c.b16 %v439, %v437
      %v470 = vpack.c.b16 %v440, %v438
      %v471 = vpack.c.b16 %v443, %v441
      %v472 = vpack.c.b16 %v444, %v442
      %v473 = vpack.c.b16 %v447, %v445
      %v474 = vpack.c.b16 %v448, %v446
      %v475 = vpack.c.b16 %v451, %v449
      %v476 = vpack.c.b16 %v452, %v450
      %v477 = vpack.c.b16 %v455, %v453
      %v478 = vpack.c.b16 %v456, %v454
      %v479 = vpack.c.b16 %v459, %v457
      %v480 = vpack.c.b16 %v460, %v458
      %v481 = vpack.c.b16 %v463, %v461
      %v482 = vpack.c.b16 %v464, %v462
      %v483 = vpack.c.b16 %v467, %v465
      %v484 = vpack.c.b16 %v468, %v466
      %501 = vmatpush.bf16.msra.mxu0 %v483
      %502 = vmatpush.bf16.msra.mxu0 %v481
      %503 = vmatpush.bf16.msra.mxu0 %v479
      %504 = vmatpush.bf16.msra.mxu0 %v477
      %505 = vmatpush.bf16.msra.mxu0 %v475
      %506 = vmatpush.bf16.msra.mxu0 %v473
      %507 = vmatpush.bf16.msra.mxu0 %v471
      %508 = vmatpush.bf16.msra.mxu0 %v469
      %509 = vmatmul.bf16.gmra.mxu0 %v404
      %v510 = vpop.f32.mrf.mxu0
      %v511 = vadd.f32 0.0, %v510
      %v512 = vpop.f32.mrf.mxu0
      %v513 = vadd.f32 0.0, %v512
      %514 = vdwg.mxu0
      %515 = vmatpush.bf16.msra.mxu0 %v484
      %516 = vmatpush.bf16.msra.mxu0 %v482
      %517 = vmatpush.bf16.msra.mxu0 %v480
      %518 = vmatpush.bf16.msra.mxu0 %v478
      %519 = vmatpush.bf16.msra.mxu0 %v476
      %520 = vmatpush.bf16.msra.mxu0 %v474
      %521 = vmatpush.bf16.msra.mxu0 %v472
      %522 = vmatpush.bf16.msra.mxu0 %v470
      %523 = vmatmul.bf16.gmra.mxu0 %v404
      %v524 = vpop.f32.mrf.mxu0
      %v525 = vadd.f32 0.0, %v524
      %v526 = vpop.f32.mrf.mxu0
      %v527 = vadd.f32 0.0, %v526
      %528 = vdwg.mxu0
      %v529 = vsub.f32 0.0, %v511
      %v530 = vsub.f32 0.0, %v525
      %v531 = vsub.f32 0.0, %v513
      %v532 = vsub.f32 0.0, %v527
      %v533 = vmul.f32 %v529, 100.0
      %v534 = vmul.f32 %v530, 100.0
      %v535 = vmul.f32 %v531, 100.0
      %v536 = vmul.f32 %v532, 100.0
      %v537 = vmul.f32 %v262, -0.05
      %v538 = vmul.f32 %v263, -0.05
      %v539 = vmul.f32 %v264, -0.05
      %v540 = vmul.f32 %v265, -0.05
      %v541 = vmul.f32 %v533, 0.05
      %v542 = vmul.f32 %v534, 0.05
      %v543 = vmul.f32 %v535, 0.05
      %v544 = vmul.f32 %v536, 0.05
      %v545 = vsub.f32 %v537, %v541
      %v546 = vsub.f32 %v538, %v542
      %v547 = vsub.f32 %v539, %v543
      %v548 = vsub.f32 %v540, %v544
      %v549 = vmul.f32 %v533, %v545
      %v550 = vmul.f32 %v534, %v546
      %v551 = vmul.f32 %v535, %v547
      %v552 = vmul.f32 %v536, %v548
      %v553 = vsel %vm367, %v550, 0.0
      %v554 = vadd.f32 %v549, %v553
      %555 = vadd.xlane.f32.xlu0 %v554
      %v556 = vpop.xlane.xlu0 %555
      %v557 = vsel %vm367, %v552, 0.0
      %v558 = vadd.f32 %v551, %v557
      %559 = vadd.xlane.f32.xlu0 %v558
      %v560 = vpop.xlane.xlu0 %559
      %v561 = vmul.f32 %v545, 0.06249875
      %v562 = vmul.f32 %v546, 0.06249875
      %v563 = vmul.f32 %v547, 0.06249875
      %v564 = vmul.f32 %v548, 0.06249875
      %v565 = vadd.f32 %v262, %v561
      %v566 = vadd.f32 %v263, %v562
      %v567 = vadd.f32 %v264, %v563
      %v568 = vadd.f32 %v265, %v564
      %v569 = vld [vmem:[%s4 + $0x1] sm:$0x1]
      %v570 = vpack.c.bf16 %v567, %v565
      %v571 = vpack.c.bf16 %v568, %v566
      %v573 = vsel %vm367, %v571, 0
      %575 = vmatpush.bf16.msra.mxu0 %v350
      %576 = vmatpush.bf16.msra.mxu0 %v349
      %577 = vmatpush.bf16.msra.mxu0 %v348
      %578 = vmatpush.bf16.msra.mxu0 %v347
      %579 = vmatpush.bf16.msra.mxu0 %v346
      %580 = vmatpush.bf16.msra.mxu0 %v345
      %581 = vmatpush.bf16.msra.mxu0 %v344
      %582 = vmatpush.bf16.msra.mxu0 %v343
      %583 = vmatmul.bf16.gmra.mxu0 %v570
      %v584 = vpop.f32.mrf.mxu0
      %v585 = vadd.f32 %v293, %v584
      %v586 = vpop.f32.mrf.mxu0
      %v587 = vadd.f32 %v294, %v586
      %588 = vdwg.mxu0
      %589 = vmatpush.bf16.msra.mxu0 0
      %590 = vmatpush.bf16.msra.mxu0 0
      %591 = vmatpush.bf16.msra.mxu0 0
      %592 = vmatpush.bf16.msra.mxu0 0
      %593 = vmatpush.bf16.msra.mxu0 %v354
      %594 = vmatpush.bf16.msra.mxu0 %v353
      %595 = vmatpush.bf16.msra.mxu0 %v352
      %596 = vmatpush.bf16.msra.mxu0 %v351
      %597 = vmatmul.bf16.gmra.mxu0 %v573
      %v598 = vpop.f32.mrf.mxu0
      %v599 = vadd.f32 %v585, %v598
      %v600 = vpop.f32.mrf.mxu0
      %v601 = vadd.f32 %v587, %v600
      %602 = vdwg.mxu0
      %v603 = vperm.slane %v569, 0
      %v604 = vadd.f32 %v599, %v603
      %v605 = vadd.f32 %v601, %v603
      %v606 = vtanh.pop %v604
      %v607 = vtanh.pop %v605
      %v608 = vpack.c.bf16 %v607, %v606
      %609 = vmatpush.bf16.msra.mxu0 %v483
      %610 = vmatpush.bf16.msra.mxu0 %v481
      %611 = vmatpush.bf16.msra.mxu0 %v479
      %612 = vmatpush.bf16.msra.mxu0 %v477
      %613 = vmatpush.bf16.msra.mxu0 %v475
      %614 = vmatpush.bf16.msra.mxu0 %v473
      %615 = vmatpush.bf16.msra.mxu0 %v471
      %616 = vmatpush.bf16.msra.mxu0 %v469
      %617 = vmatmul.bf16.gmra.mxu0 %v608
      %v618 = vpop.f32.mrf.mxu0
      %v619 = vadd.f32 0.0, %v618
      %v620 = vpop.f32.mrf.mxu0
      %v621 = vadd.f32 0.0, %v620
      %622 = vdwg.mxu0
      %623 = vmatpush.bf16.msra.mxu0 %v484
      %624 = vmatpush.bf16.msra.mxu0 %v482
      %625 = vmatpush.bf16.msra.mxu0 %v480
      %626 = vmatpush.bf16.msra.mxu0 %v478
      %627 = vmatpush.bf16.msra.mxu0 %v476
      %628 = vmatpush.bf16.msra.mxu0 %v474
      %629 = vmatpush.bf16.msra.mxu0 %v472
      %630 = vmatpush.bf16.msra.mxu0 %v470
      %631 = vmatmul.bf16.gmra.mxu0 %v608
      %v632 = vpop.f32.mrf.mxu0
      %v633 = vadd.f32 0.0, %v632
      %v634 = vpop.f32.mrf.mxu0
      %v635 = vadd.f32 0.0, %v634
      %636 = vdwg.mxu0
      %v637 = vsub.f32 0.0, %v619
      %v638 = vsub.f32 0.0, %v633
      %v639 = vsub.f32 0.0, %v621
      %v640 = vsub.f32 0.0, %v635
      %v641 = vmul.f32 %v637, 4.6874723
      %v642 = vmul.f32 %v638, 4.6874723
      %v643 = vmul.f32 %v639, 4.6874723
      %v644 = vmul.f32 %v640, 4.6874723
      %v645 = vmul.f32 %v565, -0.6774775
      %v646 = vmul.f32 %v566, -0.6774775
      %v647 = vmul.f32 %v567, -0.6774775
      %v648 = vmul.f32 %v568, -0.6774775
      %v649 = vmul.f32 %v641, 0.6774775
      %v650 = vmul.f32 %v642, 0.6774775
      %v651 = vmul.f32 %v643, 0.6774775
      %v652 = vmul.f32 %v644, 0.6774775
      %v653 = vsub.f32 %v645, %v649
      %v654 = vsub.f32 %v646, %v650
      %v655 = vsub.f32 %v647, %v651
      %v656 = vsub.f32 %v648, %v652
      %v657 = vmul.f32 %v641, %v653
      %v658 = vmul.f32 %v642, %v654
      %v659 = vmul.f32 %v643, %v655
      %v660 = vmul.f32 %v644, %v656
      %v661 = vsel %vm367, %v658, 0.0
      %v662 = vadd.f32 %v657, %v661
      %663 = vadd.xlane.f32.xlu0 %v662
      %v664 = vpop.xlane.xlu0 %663
      %v665 = vsel %vm367, %v660, 0.0
      %v666 = vadd.f32 %v659, %v665
      %667 = vadd.xlane.f32.xlu0 %v666
      %v668 = vpop.xlane.xlu0 %667
      %v669 = vmul.f32 %v653, 0.06249875
      %v670 = vmul.f32 %v654, 0.06249875
      %v671 = vmul.f32 %v655, 0.06249875
      %v672 = vmul.f32 %v656, 0.06249875
      %v673 = vadd.f32 %v262, %v669
      %v674 = vadd.f32 %v263, %v670
      %v675 = vadd.f32 %v264, %v671
      %v676 = vadd.f32 %v265, %v672
      %v677 = vpack.c.bf16 %v675, %v673
      %v678 = vpack.c.bf16 %v676, %v674
      %v680 = vsel %vm367, %v678, 0
      %682 = vmatpush.bf16.msra.mxu0 %v350
      %683 = vmatpush.bf16.msra.mxu0 %v349
      %684 = vmatpush.bf16.msra.mxu0 %v348
      %685 = vmatpush.bf16.msra.mxu0 %v347
      %686 = vmatpush.bf16.msra.mxu0 %v346
      %687 = vmatpush.bf16.msra.mxu0 %v345
      %688 = vmatpush.bf16.msra.mxu0 %v344
      %689 = vmatpush.bf16.msra.mxu0 %v343
      %690 = vmatmul.bf16.gmra.mxu0 %v677
      %v691 = vpop.f32.mrf.mxu0
      %v692 = vadd.f32 %v293, %v691
      %v693 = vpop.f32.mrf.mxu0
      %v694 = vadd.f32 %v294, %v693
      %695 = vdwg.mxu0
      %696 = vmatpush.bf16.msra.mxu0 0
      %697 = vmatpush.bf16.msra.mxu0 0
      %698 = vmatpush.bf16.msra.mxu0 0
      %699 = vmatpush.bf16.msra.mxu0 0
      %700 = vmatpush.bf16.msra.mxu0 %v354
      %701 = vmatpush.bf16.msra.mxu0 %v353
      %702 = vmatpush.bf16.msra.mxu0 %v352
      %703 = vmatpush.bf16.msra.mxu0 %v351
      %704 = vmatmul.bf16.gmra.mxu0 %v680
      %v705 = vpop.f32.mrf.mxu0
      %v706 = vadd.f32 %v692, %v705
      %v707 = vpop.f32.mrf.mxu0
      %v708 = vadd.f32 %v694, %v707
      %709 = vdwg.mxu0
      %v710 = vadd.f32 %v706, %v603
      %v711 = vadd.f32 %v708, %v603
      %v712 = vtanh.pop %v710
      %v713 = vtanh.pop %v711
      %v714 = vpack.c.bf16 %v713, %v712
      %715 = vmatpush.bf16.msra.mxu0 %v483
      %716 = vmatpush.bf16.msra.mxu0 %v481
      %717 = vmatpush.bf16.msra.mxu0 %v479
      %718 = vmatpush.bf16.msra.mxu0 %v477
      %719 = vmatpush.bf16.msra.mxu0 %v475
      %720 = vmatpush.bf16.msra.mxu0 %v473
      %721 = vmatpush.bf16.msra.mxu0 %v471
      %722 = vmatpush.bf16.msra.mxu0 %v469
      %723 = vmatmul.bf16.gmra.mxu0 %v714
      %v724 = vpop.f32.mrf.mxu0
      %v725 = vadd.f32 0.0, %v724
      %v726 = vpop.f32.mrf.mxu0
      %v727 = vadd.f32 0.0, %v726
      %728 = vdwg.mxu0
      %729 = vmatpush.bf16.msra.mxu0 %v484
      %730 = vmatpush.bf16.msra.mxu0 %v482
      %731 = vmatpush.bf16.msra.mxu0 %v480
      %732 = vmatpush.bf16.msra.mxu0 %v478
      %733 = vmatpush.bf16.msra.mxu0 %v476
      %734 = vmatpush.bf16.msra.mxu0 %v474
      %735 = vmatpush.bf16.msra.mxu0 %v472
      %736 = vmatpush.bf16.msra.mxu0 %v470
      %737 = vmatmul.bf16.gmra.mxu0 %v714
      %v738 = vpop.f32.mrf.mxu0
      %v739 = vadd.f32 0.0, %v738
      %v740 = vpop.f32.mrf.mxu0
      %v741 = vadd.f32 0.0, %v740
      %742 = vdwg.mxu0
      %v743 = vsub.f32 0.0, %v725
      %v744 = vsub.f32 0.0, %v739
      %v745 = vsub.f32 0.0, %v727
      %v746 = vsub.f32 0.0, %v741
      %v747 = vmul.f32 %v743, 4.6874723
      %v748 = vmul.f32 %v744, 4.6874723
      %v749 = vmul.f32 %v745, 4.6874723
      %v750 = vmul.f32 %v746, 4.6874723
      %v751 = vmul.f32 %v673, -0.6774775
      %v752 = vmul.f32 %v674, -0.6774775
      %v753 = vmul.f32 %v675, -0.6774775
      %v754 = vmul.f32 %v676, -0.6774775
      %v755 = vmul.f32 %v747, 0.6774775
      %v756 = vmul.f32 %v748, 0.6774775
      %v757 = vmul.f32 %v749, 0.6774775
      %v758 = vmul.f32 %v750, 0.6774775
      %v759 = vsub.f32 %v751, %v755
      %v760 = vsub.f32 %v752, %v756
      %v761 = vsub.f32 %v753, %v757
      %v762 = vsub.f32 %v754, %v758
      %v763 = vmul.f32 %v747, %v759
      %v764 = vmul.f32 %v748, %v760
      %v765 = vmul.f32 %v749, %v761
      %v766 = vmul.f32 %v750, %v762
      %v767 = vsel %vm367, %v764, 0.0
      %v768 = vadd.f32 %v763, %v767
      %769 = vadd.xlane.f32.xlu0 %v768
      %v770 = vpop.xlane.xlu0 %769
      %v771 = vsel %vm367, %v766, 0.0
      %v772 = vadd.f32 %v765, %v771
      %773 = vadd.xlane.f32.xlu0 %v772
      %v774 = vpop.xlane.xlu0 %773
      %v775 = vmul.f32 %v759, 0.1249975
      %v776 = vmul.f32 %v760, 0.1249975
      %v777 = vmul.f32 %v761, 0.1249975
      %v778 = vmul.f32 %v762, 0.1249975
      %v779 = vadd.f32 %v262, %v775
      %v780 = vadd.f32 %v263, %v776
      %v781 = vadd.f32 %v264, %v777
      %v782 = vadd.f32 %v265, %v778
      %v783 = vld [vmem:[%s4 + $0x2] sm:$0x1]
      %v784 = vpack.c.bf16 %v781, %v779
      %v785 = vpack.c.bf16 %v782, %v780
      %v787 = vsel %vm367, %v785, 0
      %789 = vmatpush.bf16.msra.mxu0 %v350
      %790 = vmatpush.bf16.msra.mxu0 %v349
      %791 = vmatpush.bf16.msra.mxu0 %v348
      %792 = vmatpush.bf16.msra.mxu0 %v347
      %793 = vmatpush.bf16.msra.mxu0 %v346
      %794 = vmatpush.bf16.msra.mxu0 %v345
      %795 = vmatpush.bf16.msra.mxu0 %v344
      %796 = vmatpush.bf16.msra.mxu0 %v343
      %797 = vmatmul.bf16.gmra.mxu0 %v784
      %v798 = vpop.f32.mrf.mxu0
      %v799 = vadd.f32 %v293, %v798
      %v800 = vpop.f32.mrf.mxu0
      %v801 = vadd.f32 %v294, %v800
      %802 = vdwg.mxu0
      %803 = vmatpush.bf16.msra.mxu0 0
      %804 = vmatpush.bf16.msra.mxu0 0
      %805 = vmatpush.bf16.msra.mxu0 0
      %806 = vmatpush.bf16.msra.mxu0 0
      %807 = vmatpush.bf16.msra.mxu0 %v354
      %808 = vmatpush.bf16.msra.mxu0 %v353
      %809 = vmatpush.bf16.msra.mxu0 %v352
      %810 = vmatpush.bf16.msra.mxu0 %v351
      %811 = vmatmul.bf16.gmra.mxu0 %v787
      %v812 = vpop.f32.mrf.mxu0
      %v813 = vadd.f32 %v799, %v812
      %v814 = vpop.f32.mrf.mxu0
      %v815 = vadd.f32 %v801, %v814
      %816 = vdwg.mxu0
      %v817 = vperm.slane %v783, 0
      %v818 = vadd.f32 %v813, %v817
      %v819 = vadd.f32 %v815, %v817
      %v820 = vtanh.pop %v818
      %v821 = vtanh.pop %v819
      %v822 = vpack.c.bf16 %v821, %v820
      %823 = vmatpush.bf16.msra.mxu0 %v483
      %824 = vmatpush.bf16.msra.mxu0 %v481
      %825 = vmatpush.bf16.msra.mxu0 %v479
      %826 = vmatpush.bf16.msra.mxu0 %v477
      %827 = vmatpush.bf16.msra.mxu0 %v475
      %828 = vmatpush.bf16.msra.mxu0 %v473
      %829 = vmatpush.bf16.msra.mxu0 %v471
      %830 = vmatpush.bf16.msra.mxu0 %v469
      %831 = vmatmul.bf16.gmra.mxu0 %v822
      %v832 = vpop.f32.mrf.mxu0
      %v833 = vadd.f32 0.0, %v832
      %v834 = vpop.f32.mrf.mxu0
      %v835 = vadd.f32 0.0, %v834
      %836 = vdwg.mxu0
      %837 = vmatpush.bf16.msra.mxu0 %v484
      %838 = vmatpush.bf16.msra.mxu0 %v482
      %839 = vmatpush.bf16.msra.mxu0 %v480
      %840 = vmatpush.bf16.msra.mxu0 %v478
      %841 = vmatpush.bf16.msra.mxu0 %v476
      %842 = vmatpush.bf16.msra.mxu0 %v474
      %843 = vmatpush.bf16.msra.mxu0 %v472
      %844 = vmatpush.bf16.msra.mxu0 %v470
      %845 = vmatmul.bf16.gmra.mxu0 %v822
      %v846 = vpop.f32.mrf.mxu0
      %v847 = vadd.f32 0.0, %v846
      %v848 = vpop.f32.mrf.mxu0
      %v849 = vadd.f32 0.0, %v848
      %850 = vdwg.mxu0
      %v851 = vsub.f32 0.0, %v833
      %v852 = vsub.f32 0.0, %v847
      %v853 = vsub.f32 0.0, %v835
      %v854 = vsub.f32 0.0, %v849
      %v855 = vmul.f32 %v851, 2.5317538
      %v856 = vmul.f32 %v852, 2.5317538
      %v857 = vmul.f32 %v853, 2.5317538
      %v858 = vmul.f32 %v854, 2.5317538
      %v859 = vmul.f32 %v779, -1.294995
      %v860 = vmul.f32 %v780, -1.294995
      %v861 = vmul.f32 %v781, -1.294995
      %v862 = vmul.f32 %v782, -1.294995
      %v863 = vmul.f32 %v855, 1.294995
      %v864 = vmul.f32 %v856, 1.294995
      %v865 = vmul.f32 %v857, 1.294995
      %v866 = vmul.f32 %v858, 1.294995
      %v867 = vsub.f32 %v859, %v863
      %v868 = vsub.f32 %v860, %v864
      %v869 = vsub.f32 %v861, %v865
      %v870 = vsub.f32 %v862, %v866
      %v871 = vmul.f32 %v855, %v867
      %v872 = vmul.f32 %v856, %v868
      %v873 = vmul.f32 %v857, %v869
      %v874 = vmul.f32 %v858, %v870
      %v875 = vsel %vm367, %v872, 0.0
      %v876 = vadd.f32 %v871, %v875
      %877 = vadd.xlane.f32.xlu0 %v876
      %v878 = vpop.xlane.xlu0 %877
      %v879 = vsel %vm367, %v874, 0.0
      %v880 = vadd.f32 %v873, %v879
      %881 = vadd.xlane.f32.xlu0 %v880
      %v882 = vpop.xlane.xlu0 %881
      %v883 = vmul.f32 %v653, 2.0
      %v884 = vmul.f32 %v654, 2.0
      %v885 = vmul.f32 %v655, 2.0
      %v886 = vmul.f32 %v656, 2.0
      %v887 = vadd.f32 %v545, %v883
      %v888 = vadd.f32 %v546, %v884
      %v889 = vadd.f32 %v547, %v885
      %v890 = vadd.f32 %v548, %v886
      %v891 = vmul.f32 %v759, 2.0
      %v892 = vmul.f32 %v760, 2.0
      %v893 = vmul.f32 %v761, 2.0
      %v894 = vmul.f32 %v762, 2.0
      %v895 = vadd.f32 %v887, %v891
      %v896 = vadd.f32 %v888, %v892
      %v897 = vadd.f32 %v889, %v893
      %v898 = vadd.f32 %v890, %v894
      %v899 = vadd.f32 %v895, %v867
      %v900 = vadd.f32 %v896, %v868
      %v901 = vadd.f32 %v897, %v869
      %v902 = vadd.f32 %v898, %v870
      %v903 = vmul.f32 %v899, 0.020832917
      %v904 = vmul.f32 %v900, 0.020832917
      %v905 = vmul.f32 %v901, 0.020832917
      %v906 = vmul.f32 %v902, 0.020832917
      %v907 = vadd.f32 %v262, %v903
      %v908 = vadd.f32 %v263, %v904
      %v909 = vadd.f32 %v264, %v905
      %v910 = vadd.f32 %v265, %v906
      %v911 = vmul.f32 %v664, 2.0
      %v912 = vmul.f32 %v668, 2.0
      %v913 = vadd.f32 %v556, %v911
      %v914 = vadd.f32 %v560, %v912
      %v915 = vmul.f32 %v770, 2.0
      %v916 = vmul.f32 %v774, 2.0
      %v917 = vadd.f32 %v913, %v915
      %v918 = vadd.f32 %v914, %v916
      %v919 = vadd.f32 %v917, %v878
      %v920 = vadd.f32 %v918, %v882
      %v921 = vmul.f32 %v919, 0.020832917
      %v922 = vmul.f32 %v920, 0.020832917
      %v923 = vadd.f32 %v921, 0.0
      %v924 = vadd.f32 %v922, 0.0
      %v925 = vpack.c.bf16 %v909, %v907
      %v926 = vpack.c.bf16 %v910, %v908
      %v928 = vsel %vm367, %v926, 0
      %930 = vmatpush.bf16.msra.mxu0 %v350
      %931 = vmatpush.bf16.msra.mxu0 %v349
      %932 = vmatpush.bf16.msra.mxu0 %v348
      %933 = vmatpush.bf16.msra.mxu0 %v347
      %934 = vmatpush.bf16.msra.mxu0 %v346
      %935 = vmatpush.bf16.msra.mxu0 %v345
      %936 = vmatpush.bf16.msra.mxu0 %v344
      %937 = vmatpush.bf16.msra.mxu0 %v343
      %938 = vmatmul.bf16.gmra.mxu0 %v925
      %v939 = vpop.f32.mrf.mxu0
      %v940 = vadd.f32 %v293, %v939
      %v941 = vpop.f32.mrf.mxu0
      %v942 = vadd.f32 %v294, %v941
      %943 = vdwg.mxu0
      %944 = vmatpush.bf16.msra.mxu0 0
      %945 = vmatpush.bf16.msra.mxu0 0
      %946 = vmatpush.bf16.msra.mxu0 0
      %947 = vmatpush.bf16.msra.mxu0 0
      %948 = vmatpush.bf16.msra.mxu0 %v354
      %949 = vmatpush.bf16.msra.mxu0 %v353
      %950 = vmatpush.bf16.msra.mxu0 %v352
      %951 = vmatpush.bf16.msra.mxu0 %v351
      %952 = vmatmul.bf16.gmra.mxu0 %v928
      %v953 = vpop.f32.mrf.mxu0
      %v954 = vadd.f32 %v940, %v953
      %v955 = vpop.f32.mrf.mxu0
      %v956 = vadd.f32 %v942, %v955
      %957 = vdwg.mxu0
      %v958 = vadd.f32 %v954, %v817
      %v959 = vadd.f32 %v956, %v817
      %v960 = vtanh.pop %v958
      %v961 = vtanh.pop %v959
      %v962 = vpack.c.bf16 %v961, %v960
      %963 = vmatpush.bf16.msra.mxu0 %v483
      %964 = vmatpush.bf16.msra.mxu0 %v481
      %965 = vmatpush.bf16.msra.mxu0 %v479
      %966 = vmatpush.bf16.msra.mxu0 %v477
      %967 = vmatpush.bf16.msra.mxu0 %v475
      %968 = vmatpush.bf16.msra.mxu0 %v473
      %969 = vmatpush.bf16.msra.mxu0 %v471
      %970 = vmatpush.bf16.msra.mxu0 %v469
      %971 = vmatmul.bf16.gmra.mxu0 %v962
      %v972 = vpop.f32.mrf.mxu0
      %v973 = vadd.f32 0.0, %v972
      %v974 = vpop.f32.mrf.mxu0
      %v975 = vadd.f32 0.0, %v974
      %976 = vdwg.mxu0
      %977 = vmatpush.bf16.msra.mxu0 %v484
      %978 = vmatpush.bf16.msra.mxu0 %v482
      %979 = vmatpush.bf16.msra.mxu0 %v480
      %980 = vmatpush.bf16.msra.mxu0 %v478
      %981 = vmatpush.bf16.msra.mxu0 %v476
      %982 = vmatpush.bf16.msra.mxu0 %v474
      %983 = vmatpush.bf16.msra.mxu0 %v472
      %984 = vmatpush.bf16.msra.mxu0 %v470
      %985 = vmatmul.bf16.gmra.mxu0 %v962
      %v986 = vpop.f32.mrf.mxu0
      %v987 = vadd.f32 0.0, %v986
      %v988 = vpop.f32.mrf.mxu0
      %v989 = vadd.f32 0.0, %v988
      %990 = vdwg.mxu0
      %v991 = vsub.f32 0.0, %v973
      %v992 = vsub.f32 0.0, %v987
      %v993 = vsub.f32 0.0, %v975
      %v994 = vsub.f32 0.0, %v989
      %v995 = vmul.f32 %v991, 2.5317538
      %v996 = vmul.f32 %v992, 2.5317538
      %v997 = vmul.f32 %v993, 2.5317538
      %v998 = vmul.f32 %v994, 2.5317538
      %v999 = vmul.f32 %v907, -1.294995
      %v1000 = vmul.f32 %v908, -1.294995
      %v1001 = vmul.f32 %v909, -1.294995
      %v1002 = vmul.f32 %v910, -1.294995
      %v1003 = vmul.f32 %v995, 1.294995
      %v1004 = vmul.f32 %v996, 1.294995
      %v1005 = vmul.f32 %v997, 1.294995
      %v1006 = vmul.f32 %v998, 1.294995
      %v1007 = vsub.f32 %v999, %v1003
      %v1008 = vsub.f32 %v1000, %v1004
      %v1009 = vsub.f32 %v1001, %v1005
      %v1010 = vsub.f32 %v1002, %v1006
      %v1011 = vmul.f32 %v995, %v1007
      %v1012 = vmul.f32 %v996, %v1008
      %v1013 = vmul.f32 %v997, %v1009
      %v1014 = vmul.f32 %v998, %v1010
      %v1015 = vsel %vm367, %v1012, 0.0
      %v1016 = vadd.f32 %v1011, %v1015
      %1017 = vadd.xlane.f32.xlu0 %v1016
      %v1018 = vpop.xlane.xlu0 %1017
      %v1019 = vsel %vm367, %v1014, 0.0
      %v1020 = vadd.f32 %v1013, %v1019
      %1021 = vadd.xlane.f32.xlu0 %v1020
      %v1022 = vpop.xlane.xlu0 %1021
      %v1023 = vmul.f32 %v1007, 0.06249875
      %v1024 = vmul.f32 %v1008, 0.06249875
      %v1025 = vmul.f32 %v1009, 0.06249875
      %v1026 = vmul.f32 %v1010, 0.06249875
      %v1027 = vadd.f32 %v907, %v1023
      %v1028 = vadd.f32 %v908, %v1024
      %v1029 = vadd.f32 %v909, %v1025
      %v1030 = vadd.f32 %v910, %v1026
      %v1031 = vld [vmem:[%s4 + $0x3] sm:$0x1]
      %v1032 = vpack.c.bf16 %v1029, %v1027
      %v1033 = vpack.c.bf16 %v1030, %v1028
      %v1035 = vsel %vm367, %v1033, 0
      %1037 = vmatpush.bf16.msra.mxu0 %v350
      %1038 = vmatpush.bf16.msra.mxu0 %v349
      %1039 = vmatpush.bf16.msra.mxu0 %v348
      %1040 = vmatpush.bf16.msra.mxu0 %v347
      %1041 = vmatpush.bf16.msra.mxu0 %v346
      %1042 = vmatpush.bf16.msra.mxu0 %v345
      %1043 = vmatpush.bf16.msra.mxu0 %v344
      %1044 = vmatpush.bf16.msra.mxu0 %v343
      %1045 = vmatmul.bf16.gmra.mxu0 %v1032
      %v1046 = vpop.f32.mrf.mxu0
      %v1047 = vadd.f32 %v293, %v1046
      %v1048 = vpop.f32.mrf.mxu0
      %v1049 = vadd.f32 %v294, %v1048
      %1050 = vdwg.mxu0
      %1051 = vmatpush.bf16.msra.mxu0 0
      %1052 = vmatpush.bf16.msra.mxu0 0
      %1053 = vmatpush.bf16.msra.mxu0 0
      %1054 = vmatpush.bf16.msra.mxu0 0
      %1055 = vmatpush.bf16.msra.mxu0 %v354
      %1056 = vmatpush.bf16.msra.mxu0 %v353
      %1057 = vmatpush.bf16.msra.mxu0 %v352
      %1058 = vmatpush.bf16.msra.mxu0 %v351
      %1059 = vmatmul.bf16.gmra.mxu0 %v1035
      %v1060 = vpop.f32.mrf.mxu0
      %v1061 = vadd.f32 %v1047, %v1060
      %v1062 = vpop.f32.mrf.mxu0
      %v1063 = vadd.f32 %v1049, %v1062
      %1064 = vdwg.mxu0
      %v1065 = vperm.slane %v1031, 0
      %v1066 = vadd.f32 %v1061, %v1065
      %v1067 = vadd.f32 %v1063, %v1065
      %v1068 = vtanh.pop %v1066
      %v1069 = vtanh.pop %v1067
      %v1070 = vpack.c.bf16 %v1069, %v1068
      %1071 = vmatpush.bf16.msra.mxu0 %v483
      %1072 = vmatpush.bf16.msra.mxu0 %v481
      %1073 = vmatpush.bf16.msra.mxu0 %v479
      %1074 = vmatpush.bf16.msra.mxu0 %v477
      %1075 = vmatpush.bf16.msra.mxu0 %v475
      %1076 = vmatpush.bf16.msra.mxu0 %v473
      %1077 = vmatpush.bf16.msra.mxu0 %v471
      %1078 = vmatpush.bf16.msra.mxu0 %v469
      %1079 = vmatmul.bf16.gmra.mxu0 %v1070
      %v1080 = vpop.f32.mrf.mxu0
      %v1081 = vadd.f32 0.0, %v1080
      %v1082 = vpop.f32.mrf.mxu0
      %v1083 = vadd.f32 0.0, %v1082
      %1084 = vdwg.mxu0
      %1085 = vmatpush.bf16.msra.mxu0 %v484
      %1086 = vmatpush.bf16.msra.mxu0 %v482
      %1087 = vmatpush.bf16.msra.mxu0 %v480
      %1088 = vmatpush.bf16.msra.mxu0 %v478
      %1089 = vmatpush.bf16.msra.mxu0 %v476
      %1090 = vmatpush.bf16.msra.mxu0 %v474
      %1091 = vmatpush.bf16.msra.mxu0 %v472
      %1092 = vmatpush.bf16.msra.mxu0 %v470
      %1093 = vmatmul.bf16.gmra.mxu0 %v1070
      %v1094 = vpop.f32.mrf.mxu0
      %v1095 = vadd.f32 0.0, %v1094
      %v1096 = vpop.f32.mrf.mxu0
      %v1097 = vadd.f32 0.0, %v1096
      %1098 = vdwg.mxu0
      %v1099 = vsub.f32 0.0, %v1081
      %v1100 = vsub.f32 0.0, %v1095
      %v1101 = vsub.f32 0.0, %v1083
      %v1102 = vsub.f32 0.0, %v1097
      %v1103 = vmul.f32 %v1099, 1.7916491
      %v1104 = vmul.f32 %v1100, 1.7916491
      %v1105 = vmul.f32 %v1101, 1.7916491
      %v1106 = vmul.f32 %v1102, 1.7916491
      %v1107 = vmul.f32 %v1027, -1.9224725
      %v1108 = vmul.f32 %v1028, -1.9224725
      %v1109 = vmul.f32 %v1029, -1.9224725
      %v1110 = vmul.f32 %v1030, -1.9224725
      %v1111 = vmul.f32 %v1103, 1.9224725
      %v1112 = vmul.f32 %v1104, 1.9224725
      %v1113 = vmul.f32 %v1105, 1.9224725
      %v1114 = vmul.f32 %v1106, 1.9224725
      %v1115 = vsub.f32 %v1107, %v1111
      %v1116 = vsub.f32 %v1108, %v1112
      %v1117 = vsub.f32 %v1109, %v1113
      %v1118 = vsub.f32 %v1110, %v1114
      %v1119 = vmul.f32 %v1103, %v1115
      %v1120 = vmul.f32 %v1104, %v1116
      %v1121 = vmul.f32 %v1105, %v1117
      %v1122 = vmul.f32 %v1106, %v1118
      %v1123 = vsel %vm367, %v1120, 0.0
      %v1124 = vadd.f32 %v1119, %v1123
      %1125 = vadd.xlane.f32.xlu0 %v1124
      %v1126 = vpop.xlane.xlu0 %1125
      %v1127 = vsel %vm367, %v1122, 0.0
      %v1128 = vadd.f32 %v1121, %v1127
      %1129 = vadd.xlane.f32.xlu0 %v1128
      %v1130 = vpop.xlane.xlu0 %1129
      %v1131 = vmul.f32 %v1115, 0.06249875
      %v1132 = vmul.f32 %v1116, 0.06249875
      %v1133 = vmul.f32 %v1117, 0.06249875
      %v1134 = vmul.f32 %v1118, 0.06249875
      %v1135 = vadd.f32 %v907, %v1131
      %v1136 = vadd.f32 %v908, %v1132
      %v1137 = vadd.f32 %v909, %v1133
      %v1138 = vadd.f32 %v910, %v1134
      %v1139 = vpack.c.bf16 %v1137, %v1135
      %v1140 = vpack.c.bf16 %v1138, %v1136
      %v1142 = vsel %vm367, %v1140, 0
      %1144 = vmatpush.bf16.msra.mxu0 %v350
      %1145 = vmatpush.bf16.msra.mxu0 %v349
      %1146 = vmatpush.bf16.msra.mxu0 %v348
      %1147 = vmatpush.bf16.msra.mxu0 %v347
      %1148 = vmatpush.bf16.msra.mxu0 %v346
      %1149 = vmatpush.bf16.msra.mxu0 %v345
      %1150 = vmatpush.bf16.msra.mxu0 %v344
      %1151 = vmatpush.bf16.msra.mxu0 %v343
      %1152 = vmatmul.bf16.gmra.mxu0 %v1139
      %v1153 = vpop.f32.mrf.mxu0
      %v1154 = vadd.f32 %v293, %v1153
      %v1155 = vpop.f32.mrf.mxu0
      %v1156 = vadd.f32 %v294, %v1155
      %1157 = vdwg.mxu0
      %1158 = vmatpush.bf16.msra.mxu0 0
      %1159 = vmatpush.bf16.msra.mxu0 0
      %1160 = vmatpush.bf16.msra.mxu0 0
      %1161 = vmatpush.bf16.msra.mxu0 0
      %1162 = vmatpush.bf16.msra.mxu0 %v354
      %1163 = vmatpush.bf16.msra.mxu0 %v353
      %1164 = vmatpush.bf16.msra.mxu0 %v352
      %1165 = vmatpush.bf16.msra.mxu0 %v351
      %1166 = vmatmul.bf16.gmra.mxu0 %v1142
      %v1167 = vpop.f32.mrf.mxu0
      %v1168 = vadd.f32 %v1154, %v1167
      %v1169 = vpop.f32.mrf.mxu0
      %v1170 = vadd.f32 %v1156, %v1169
      %1171 = vdwg.mxu0
      %v1172 = vadd.f32 %v1168, %v1065
      %v1173 = vadd.f32 %v1170, %v1065
      %v1174 = vtanh.pop %v1172
      %v1175 = vtanh.pop %v1173
      %v1176 = vpack.c.bf16 %v1175, %v1174
      %1177 = vmatpush.bf16.msra.mxu0 %v483
      %1178 = vmatpush.bf16.msra.mxu0 %v481
      %1179 = vmatpush.bf16.msra.mxu0 %v479
      %1180 = vmatpush.bf16.msra.mxu0 %v477
      %1181 = vmatpush.bf16.msra.mxu0 %v475
      %1182 = vmatpush.bf16.msra.mxu0 %v473
      %1183 = vmatpush.bf16.msra.mxu0 %v471
      %1184 = vmatpush.bf16.msra.mxu0 %v469
      %1185 = vmatmul.bf16.gmra.mxu0 %v1176
      %v1186 = vpop.f32.mrf.mxu0
      %v1187 = vadd.f32 0.0, %v1186
      %v1188 = vpop.f32.mrf.mxu0
      %v1189 = vadd.f32 0.0, %v1188
      %1190 = vdwg.mxu0
      %1191 = vmatpush.bf16.msra.mxu0 %v484
      %1192 = vmatpush.bf16.msra.mxu0 %v482
      %1193 = vmatpush.bf16.msra.mxu0 %v480
      %1194 = vmatpush.bf16.msra.mxu0 %v478
      %1195 = vmatpush.bf16.msra.mxu0 %v476
      %1196 = vmatpush.bf16.msra.mxu0 %v474
      %1197 = vmatpush.bf16.msra.mxu0 %v472
      %1198 = vmatpush.bf16.msra.mxu0 %v470
      %1199 = vmatmul.bf16.gmra.mxu0 %v1176
      %v1200 = vpop.f32.mrf.mxu0
      %v1201 = vadd.f32 0.0, %v1200
      %v1202 = vpop.f32.mrf.mxu0
      %v1203 = vadd.f32 0.0, %v1202
      %1204 = vdwg.mxu0
      %v1205 = vsub.f32 0.0, %v1187
      %v1206 = vsub.f32 0.0, %v1201
      %v1207 = vsub.f32 0.0, %v1189
      %v1208 = vsub.f32 0.0, %v1203
      %v1209 = vmul.f32 %v1205, 1.7916491
      %v1210 = vmul.f32 %v1206, 1.7916491
      %v1211 = vmul.f32 %v1207, 1.7916491
      %v1212 = vmul.f32 %v1208, 1.7916491
      %v1213 = vmul.f32 %v1135, -1.9224725
      %v1214 = vmul.f32 %v1136, -1.9224725
      %v1215 = vmul.f32 %v1137, -1.9224725
      %v1216 = vmul.f32 %v1138, -1.9224725
      %v1217 = vmul.f32 %v1209, 1.9224725
      %v1218 = vmul.f32 %v1210, 1.9224725
      %v1219 = vmul.f32 %v1211, 1.9224725
      %v1220 = vmul.f32 %v1212, 1.9224725
      %v1221 = vsub.f32 %v1213, %v1217
      %v1222 = vsub.f32 %v1214, %v1218
      %v1223 = vsub.f32 %v1215, %v1219
      %v1224 = vsub.f32 %v1216, %v1220
      %v1225 = vmul.f32 %v1209, %v1221
      %v1226 = vmul.f32 %v1210, %v1222
      %v1227 = vmul.f32 %v1211, %v1223
      %v1228 = vmul.f32 %v1212, %v1224
      %v1229 = vsel %vm367, %v1226, 0.0
      %v1230 = vadd.f32 %v1225, %v1229
      %1231 = vadd.xlane.f32.xlu0 %v1230
      %v1232 = vpop.xlane.xlu0 %1231
      %v1233 = vsel %vm367, %v1228, 0.0
      %v1234 = vadd.f32 %v1227, %v1233
      %1235 = vadd.xlane.f32.xlu0 %v1234
      %v1236 = vpop.xlane.xlu0 %1235
      %v1237 = vmul.f32 %v1221, 0.1249975
      %v1238 = vmul.f32 %v1222, 0.1249975
      %v1239 = vmul.f32 %v1223, 0.1249975
      %v1240 = vmul.f32 %v1224, 0.1249975
      %v1241 = vadd.f32 %v907, %v1237
      %v1242 = vadd.f32 %v908, %v1238
      %v1243 = vadd.f32 %v909, %v1239
      %v1244 = vadd.f32 %v910, %v1240
      %v1245 = vld [vmem:[%s4 + $0x4] sm:$0x1]
      %v1246 = vpack.c.bf16 %v1243, %v1241
      %v1247 = vpack.c.bf16 %v1244, %v1242
      %v1249 = vsel %vm367, %v1247, 0
      %1251 = vmatpush.bf16.msra.mxu0 %v350
      %1252 = vmatpush.bf16.msra.mxu0 %v349
      %1253 = vmatpush.bf16.msra.mxu0 %v348
      %1254 = vmatpush.bf16.msra.mxu0 %v347
      %1255 = vmatpush.bf16.msra.mxu0 %v346
      %1256 = vmatpush.bf16.msra.mxu0 %v345
      %1257 = vmatpush.bf16.msra.mxu0 %v344
      %1258 = vmatpush.bf16.msra.mxu0 %v343
      %1259 = vmatmul.bf16.gmra.mxu0 %v1246
      %v1260 = vpop.f32.mrf.mxu0
      %v1261 = vadd.f32 %v293, %v1260
      %v1262 = vpop.f32.mrf.mxu0
      %v1263 = vadd.f32 %v294, %v1262
      %1264 = vdwg.mxu0
      %1265 = vmatpush.bf16.msra.mxu0 0
      %1266 = vmatpush.bf16.msra.mxu0 0
      %1267 = vmatpush.bf16.msra.mxu0 0
      %1268 = vmatpush.bf16.msra.mxu0 0
      %1269 = vmatpush.bf16.msra.mxu0 %v354
      %1270 = vmatpush.bf16.msra.mxu0 %v353
      %1271 = vmatpush.bf16.msra.mxu0 %v352
      %1272 = vmatpush.bf16.msra.mxu0 %v351
      %1273 = vmatmul.bf16.gmra.mxu0 %v1249
      %v1274 = vpop.f32.mrf.mxu0
      %v1275 = vadd.f32 %v1261, %v1274
      %v1276 = vpop.f32.mrf.mxu0
      %v1277 = vadd.f32 %v1263, %v1276
      %1278 = vdwg.mxu0
      %v1279 = vperm.slane %v1245, 0
      %v1280 = vadd.f32 %v1275, %v1279
      %v1281 = vadd.f32 %v1277, %v1279
      %v1282 = vtanh.pop %v1280
      %v1283 = vtanh.pop %v1281
      %v1284 = vpack.c.bf16 %v1283, %v1282
      %1285 = vmatpush.bf16.msra.mxu0 %v483
      %1286 = vmatpush.bf16.msra.mxu0 %v481
      %1287 = vmatpush.bf16.msra.mxu0 %v479
      %1288 = vmatpush.bf16.msra.mxu0 %v477
      %1289 = vmatpush.bf16.msra.mxu0 %v475
      %1290 = vmatpush.bf16.msra.mxu0 %v473
      %1291 = vmatpush.bf16.msra.mxu0 %v471
      %1292 = vmatpush.bf16.msra.mxu0 %v469
      %1293 = vmatmul.bf16.gmra.mxu0 %v1284
      %v1294 = vpop.f32.mrf.mxu0
      %v1295 = vadd.f32 0.0, %v1294
      %v1296 = vpop.f32.mrf.mxu0
      %v1297 = vadd.f32 0.0, %v1296
      %1298 = vdwg.mxu0
      %1299 = vmatpush.bf16.msra.mxu0 %v484
      %1300 = vmatpush.bf16.msra.mxu0 %v482
      %1301 = vmatpush.bf16.msra.mxu0 %v480
      %1302 = vmatpush.bf16.msra.mxu0 %v478
      %1303 = vmatpush.bf16.msra.mxu0 %v476
      %1304 = vmatpush.bf16.msra.mxu0 %v474
      %1305 = vmatpush.bf16.msra.mxu0 %v472
      %1306 = vmatpush.bf16.msra.mxu0 %v470
      %1307 = vmatmul.bf16.gmra.mxu0 %v1284
      %v1308 = vpop.f32.mrf.mxu0
      %v1309 = vadd.f32 0.0, %v1308
      %v1310 = vpop.f32.mrf.mxu0
      %v1311 = vadd.f32 0.0, %v1310
      %1312 = vdwg.mxu0
      %v1313 = vsub.f32 0.0, %v1295
      %v1314 = vsub.f32 0.0, %v1309
      %v1315 = vsub.f32 0.0, %v1297
      %v1316 = vsub.f32 0.0, %v1311
      %v1317 = vmul.f32 %v1313, 1.44552
      %v1318 = vmul.f32 %v1314, 1.44552
      %v1319 = vmul.f32 %v1315, 1.44552
      %v1320 = vmul.f32 %v1316, 1.44552
      %v1321 = vmul.f32 %v1241, -2.53999
      %v1322 = vmul.f32 %v1242, -2.53999
      %v1323 = vmul.f32 %v1243, -2.53999
      %v1324 = vmul.f32 %v1244, -2.53999
      %v1325 = vmul.f32 %v1317, 2.53999
      %v1326 = vmul.f32 %v1318, 2.53999
      %v1327 = vmul.f32 %v1319, 2.53999
      %v1328 = vmul.f32 %v1320, 2.53999
      %v1329 = vsub.f32 %v1321, %v1325
      %v1330 = vsub.f32 %v1322, %v1326
      %v1331 = vsub.f32 %v1323, %v1327
      %v1332 = vsub.f32 %v1324, %v1328
      %v1333 = vmul.f32 %v1317, %v1329
      %v1334 = vmul.f32 %v1318, %v1330
      %v1335 = vmul.f32 %v1319, %v1331
      %v1336 = vmul.f32 %v1320, %v1332
      %v1337 = vsel %vm367, %v1334, 0.0
      %v1338 = vadd.f32 %v1333, %v1337
      %1339 = vadd.xlane.f32.xlu0 %v1338
      %v1340 = vpop.xlane.xlu0 %1339
      %v1341 = vsel %vm367, %v1336, 0.0
      %v1342 = vadd.f32 %v1335, %v1341
      %1343 = vadd.xlane.f32.xlu0 %v1342
      %v1344 = vpop.xlane.xlu0 %1343
      %v1345 = vmul.f32 %v1115, 2.0
      %v1346 = vmul.f32 %v1116, 2.0
      %v1347 = vmul.f32 %v1117, 2.0
      %v1348 = vmul.f32 %v1118, 2.0
      %v1349 = vadd.f32 %v1007, %v1345
      %v1350 = vadd.f32 %v1008, %v1346
      %v1351 = vadd.f32 %v1009, %v1347
      %v1352 = vadd.f32 %v1010, %v1348
      %v1353 = vmul.f32 %v1221, 2.0
      %v1354 = vmul.f32 %v1222, 2.0
      %v1355 = vmul.f32 %v1223, 2.0
      %v1356 = vmul.f32 %v1224, 2.0
      %v1357 = vadd.f32 %v1349, %v1353
      %v1358 = vadd.f32 %v1350, %v1354
      %v1359 = vadd.f32 %v1351, %v1355
      %v1360 = vadd.f32 %v1352, %v1356
      %v1361 = vadd.f32 %v1357, %v1329
      %v1362 = vadd.f32 %v1358, %v1330
      %v1363 = vadd.f32 %v1359, %v1331
      %v1364 = vadd.f32 %v1360, %v1332
      %v1365 = vmul.f32 %v1361, 0.020832917
      %v1366 = vmul.f32 %v1362, 0.020832917
      %v1367 = vmul.f32 %v1363, 0.020832917
      %v1368 = vmul.f32 %v1364, 0.020832917
      %v1369 = vadd.f32 %v907, %v1365
      %v1370 = vadd.f32 %v908, %v1366
      %v1371 = vadd.f32 %v909, %v1367
      %v1372 = vadd.f32 %v910, %v1368
      %v1373 = vmul.f32 %v1126, 2.0
      %v1374 = vmul.f32 %v1130, 2.0
      %v1375 = vadd.f32 %v1018, %v1373
      %v1376 = vadd.f32 %v1022, %v1374
      %v1377 = vmul.f32 %v1232, 2.0
      %v1378 = vmul.f32 %v1236, 2.0
      %v1379 = vadd.f32 %v1375, %v1377
      %v1380 = vadd.f32 %v1376, %v1378
      %v1381 = vadd.f32 %v1379, %v1340
      %v1382 = vadd.f32 %v1380, %v1344
      %v1383 = vmul.f32 %v1381, 0.020832917
      %v1384 = vmul.f32 %v1382, 0.020832917
      %v1385 = vadd.f32 %v923, %v1383
      %v1386 = vadd.f32 %v924, %v1384
      %v1387 = vpack.c.bf16 %v1371, %v1369
      %v1388 = vpack.c.bf16 %v1372, %v1370
      %v1390 = vsel %vm367, %v1388, 0
      %1392 = vmatpush.bf16.msra.mxu0 %v350
      %1393 = vmatpush.bf16.msra.mxu0 %v349
      %1394 = vmatpush.bf16.msra.mxu0 %v348
      %1395 = vmatpush.bf16.msra.mxu0 %v347
      %1396 = vmatpush.bf16.msra.mxu0 %v346
      %1397 = vmatpush.bf16.msra.mxu0 %v345
      %1398 = vmatpush.bf16.msra.mxu0 %v344
      %1399 = vmatpush.bf16.msra.mxu0 %v343
      %1400 = vmatmul.bf16.gmra.mxu0 %v1387
      %v1401 = vpop.f32.mrf.mxu0
      %v1402 = vadd.f32 %v293, %v1401
      %v1403 = vpop.f32.mrf.mxu0
      %v1404 = vadd.f32 %v294, %v1403
      %1405 = vdwg.mxu0
      %1406 = vmatpush.bf16.msra.mxu0 0
      %1407 = vmatpush.bf16.msra.mxu0 0
      %1408 = vmatpush.bf16.msra.mxu0 0
      %1409 = vmatpush.bf16.msra.mxu0 0
      %1410 = vmatpush.bf16.msra.mxu0 %v354
      %1411 = vmatpush.bf16.msra.mxu0 %v353
      %1412 = vmatpush.bf16.msra.mxu0 %v352
      %1413 = vmatpush.bf16.msra.mxu0 %v351
      %1414 = vmatmul.bf16.gmra.mxu0 %v1390
      %v1415 = vpop.f32.mrf.mxu0
      %v1416 = vadd.f32 %v1402, %v1415
      %v1417 = vpop.f32.mrf.mxu0
      %v1418 = vadd.f32 %v1404, %v1417
      %1419 = vdwg.mxu0
      %v1420 = vadd.f32 %v1416, %v1279
      %v1421 = vadd.f32 %v1418, %v1279
      %v1422 = vtanh.pop %v1420
      %v1423 = vtanh.pop %v1421
      %v1424 = vpack.c.bf16 %v1423, %v1422
      %1425 = vmatpush.bf16.msra.mxu0 %v483
      %1426 = vmatpush.bf16.msra.mxu0 %v481
      %1427 = vmatpush.bf16.msra.mxu0 %v479
      %1428 = vmatpush.bf16.msra.mxu0 %v477
      %1429 = vmatpush.bf16.msra.mxu0 %v475
      %1430 = vmatpush.bf16.msra.mxu0 %v473
      %1431 = vmatpush.bf16.msra.mxu0 %v471
      %1432 = vmatpush.bf16.msra.mxu0 %v469
      %1433 = vmatmul.bf16.gmra.mxu0 %v1424
      %v1434 = vpop.f32.mrf.mxu0
      %v1435 = vadd.f32 0.0, %v1434
      %v1436 = vpop.f32.mrf.mxu0
      %v1437 = vadd.f32 0.0, %v1436
      %1438 = vdwg.mxu0
      %1439 = vmatpush.bf16.msra.mxu0 %v484
      %1440 = vmatpush.bf16.msra.mxu0 %v482
      %1441 = vmatpush.bf16.msra.mxu0 %v480
      %1442 = vmatpush.bf16.msra.mxu0 %v478
      %1443 = vmatpush.bf16.msra.mxu0 %v476
      %1444 = vmatpush.bf16.msra.mxu0 %v474
      %1445 = vmatpush.bf16.msra.mxu0 %v472
      %1446 = vmatpush.bf16.msra.mxu0 %v470
      %1447 = vmatmul.bf16.gmra.mxu0 %v1424
      %v1448 = vpop.f32.mrf.mxu0
      %v1449 = vadd.f32 0.0, %v1448
      %v1450 = vpop.f32.mrf.mxu0
      %v1451 = vadd.f32 0.0, %v1450
      %1452 = vdwg.mxu0
      %v1453 = vsub.f32 0.0, %v1435
      %v1454 = vsub.f32 0.0, %v1449
      %v1455 = vsub.f32 0.0, %v1437
      %v1456 = vsub.f32 0.0, %v1451
      %v1457 = vmul.f32 %v1453, 1.44552
      %v1458 = vmul.f32 %v1454, 1.44552
      %v1459 = vmul.f32 %v1455, 1.44552
      %v1460 = vmul.f32 %v1456, 1.44552
      %v1461 = vmul.f32 %v1369, -2.53999
      %v1462 = vmul.f32 %v1370, -2.53999
      %v1463 = vmul.f32 %v1371, -2.53999
      %v1464 = vmul.f32 %v1372, -2.53999
      %v1465 = vmul.f32 %v1457, 2.53999
      %v1466 = vmul.f32 %v1458, 2.53999
      %v1467 = vmul.f32 %v1459, 2.53999
      %v1468 = vmul.f32 %v1460, 2.53999
      %v1469 = vsub.f32 %v1461, %v1465
      %v1470 = vsub.f32 %v1462, %v1466
      %v1471 = vsub.f32 %v1463, %v1467
      %v1472 = vsub.f32 %v1464, %v1468
      %v1473 = vmul.f32 %v1457, %v1469
      %v1474 = vmul.f32 %v1458, %v1470
      %v1475 = vmul.f32 %v1459, %v1471
      %v1476 = vmul.f32 %v1460, %v1472
      %v1477 = vsel %vm367, %v1474, 0.0
      %v1478 = vadd.f32 %v1473, %v1477
      %1479 = vadd.xlane.f32.xlu0 %v1478
      %v1480 = vpop.xlane.xlu0 %1479
      %v1481 = vsel %vm367, %v1476, 0.0
      %v1482 = vadd.f32 %v1475, %v1481
      %1483 = vadd.xlane.f32.xlu0 %v1482
      %v1484 = vpop.xlane.xlu0 %1483
      %v1485 = vmul.f32 %v1469, 0.06249875
      %v1486 = vmul.f32 %v1470, 0.06249875
      %v1487 = vmul.f32 %v1471, 0.06249875
      %v1488 = vmul.f32 %v1472, 0.06249875
      %v1489 = vadd.f32 %v1369, %v1485
      %v1490 = vadd.f32 %v1370, %v1486
      %v1491 = vadd.f32 %v1371, %v1487
      %v1492 = vadd.f32 %v1372, %v1488
      %v1493 = vld [vmem:[%s4 + $0x5] sm:$0x1]
      %v1494 = vpack.c.bf16 %v1491, %v1489
      %v1495 = vpack.c.bf16 %v1492, %v1490
      %v1497 = vsel %vm367, %v1495, 0
      %1499 = vmatpush.bf16.msra.mxu0 %v350
      %1500 = vmatpush.bf16.msra.mxu0 %v349
      %1501 = vmatpush.bf16.msra.mxu0 %v348
      %1502 = vmatpush.bf16.msra.mxu0 %v347
      %1503 = vmatpush.bf16.msra.mxu0 %v346
      %1504 = vmatpush.bf16.msra.mxu0 %v345
      %1505 = vmatpush.bf16.msra.mxu0 %v344
      %1506 = vmatpush.bf16.msra.mxu0 %v343
      %1507 = vmatmul.bf16.gmra.mxu0 %v1494
      %v1508 = vpop.f32.mrf.mxu0
      %v1509 = vadd.f32 %v293, %v1508
      %v1510 = vpop.f32.mrf.mxu0
      %v1511 = vadd.f32 %v294, %v1510
      %1512 = vdwg.mxu0
      %1513 = vmatpush.bf16.msra.mxu0 0
      %1514 = vmatpush.bf16.msra.mxu0 0
      %1515 = vmatpush.bf16.msra.mxu0 0
      %1516 = vmatpush.bf16.msra.mxu0 0
      %1517 = vmatpush.bf16.msra.mxu0 %v354
      %1518 = vmatpush.bf16.msra.mxu0 %v353
      %1519 = vmatpush.bf16.msra.mxu0 %v352
      %1520 = vmatpush.bf16.msra.mxu0 %v351
      %1521 = vmatmul.bf16.gmra.mxu0 %v1497
      %v1522 = vpop.f32.mrf.mxu0
      %v1523 = vadd.f32 %v1509, %v1522
      %v1524 = vpop.f32.mrf.mxu0
      %v1525 = vadd.f32 %v1511, %v1524
      %1526 = vdwg.mxu0
      %v1527 = vperm.slane %v1493, 0
      %v1528 = vadd.f32 %v1523, %v1527
      %v1529 = vadd.f32 %v1525, %v1527
      %v1530 = vtanh.pop %v1528
      %v1531 = vtanh.pop %v1529
      %v1532 = vpack.c.bf16 %v1531, %v1530
      %1533 = vmatpush.bf16.msra.mxu0 %v483
      %1534 = vmatpush.bf16.msra.mxu0 %v481
      %1535 = vmatpush.bf16.msra.mxu0 %v479
      %1536 = vmatpush.bf16.msra.mxu0 %v477
      %1537 = vmatpush.bf16.msra.mxu0 %v475
      %1538 = vmatpush.bf16.msra.mxu0 %v473
      %1539 = vmatpush.bf16.msra.mxu0 %v471
      %1540 = vmatpush.bf16.msra.mxu0 %v469
      %1541 = vmatmul.bf16.gmra.mxu0 %v1532
      %v1542 = vpop.f32.mrf.mxu0
      %v1543 = vadd.f32 0.0, %v1542
      %v1544 = vpop.f32.mrf.mxu0
      %v1545 = vadd.f32 0.0, %v1544
      %1546 = vdwg.mxu0
      %1547 = vmatpush.bf16.msra.mxu0 %v484
      %1548 = vmatpush.bf16.msra.mxu0 %v482
      %1549 = vmatpush.bf16.msra.mxu0 %v480
      %1550 = vmatpush.bf16.msra.mxu0 %v478
      %1551 = vmatpush.bf16.msra.mxu0 %v476
      %1552 = vmatpush.bf16.msra.mxu0 %v474
      %1553 = vmatpush.bf16.msra.mxu0 %v472
      %1554 = vmatpush.bf16.msra.mxu0 %v470
      %1555 = vmatmul.bf16.gmra.mxu0 %v1532
      %v1556 = vpop.f32.mrf.mxu0
      %v1557 = vadd.f32 0.0, %v1556
      %v1558 = vpop.f32.mrf.mxu0
      %v1559 = vadd.f32 0.0, %v1558
      %1560 = vdwg.mxu0
      %v1561 = vsub.f32 0.0, %v1543
      %v1562 = vsub.f32 0.0, %v1557
      %v1563 = vsub.f32 0.0, %v1545
      %v1564 = vsub.f32 0.0, %v1559
      %v1565 = vmul.f32 %v1561, 1.25327
      %v1566 = vmul.f32 %v1562, 1.25327
      %v1567 = vmul.f32 %v1563, 1.25327
      %v1568 = vmul.f32 %v1564, 1.25327
      %v1569 = vmul.f32 %v1489, -3.1674674
      %v1570 = vmul.f32 %v1490, -3.1674674
      %v1571 = vmul.f32 %v1491, -3.1674674
      %v1572 = vmul.f32 %v1492, -3.1674674
      %v1573 = vmul.f32 %v1565, 3.1674674
      %v1574 = vmul.f32 %v1566, 3.1674674
      %v1575 = vmul.f32 %v1567, 3.1674674
      %v1576 = vmul.f32 %v1568, 3.1674674
      %v1577 = vsub.f32 %v1569, %v1573
      %v1578 = vsub.f32 %v1570, %v1574
      %v1579 = vsub.f32 %v1571, %v1575
      %v1580 = vsub.f32 %v1572, %v1576
      %v1581 = vmul.f32 %v1565, %v1577
      %v1582 = vmul.f32 %v1566, %v1578
      %v1583 = vmul.f32 %v1567, %v1579
      %v1584 = vmul.f32 %v1568, %v1580
      %v1585 = vsel %vm367, %v1582, 0.0
      %v1586 = vadd.f32 %v1581, %v1585
      %1587 = vadd.xlane.f32.xlu0 %v1586
      %v1588 = vpop.xlane.xlu0 %1587
      %v1589 = vsel %vm367, %v1584, 0.0
      %v1590 = vadd.f32 %v1583, %v1589
      %1591 = vadd.xlane.f32.xlu0 %v1590
      %v1592 = vpop.xlane.xlu0 %1591
      %v1593 = vmul.f32 %v1577, 0.06249875
      %v1594 = vmul.f32 %v1578, 0.06249875
      %v1595 = vmul.f32 %v1579, 0.06249875
      %v1596 = vmul.f32 %v1580, 0.06249875
      %v1597 = vadd.f32 %v1369, %v1593
      %v1598 = vadd.f32 %v1370, %v1594
      %v1599 = vadd.f32 %v1371, %v1595
      %v1600 = vadd.f32 %v1372, %v1596
      %v1601 = vpack.c.bf16 %v1599, %v1597
      %v1602 = vpack.c.bf16 %v1600, %v1598
      %v1604 = vsel %vm367, %v1602, 0
      %1606 = vmatpush.bf16.msra.mxu0 %v350
      %1607 = vmatpush.bf16.msra.mxu0 %v349
      %1608 = vmatpush.bf16.msra.mxu0 %v348
      %1609 = vmatpush.bf16.msra.mxu0 %v347
      %1610 = vmatpush.bf16.msra.mxu0 %v346
      %1611 = vmatpush.bf16.msra.mxu0 %v345
      %1612 = vmatpush.bf16.msra.mxu0 %v344
      %1613 = vmatpush.bf16.msra.mxu0 %v343
      %1614 = vmatmul.bf16.gmra.mxu0 %v1601
      %v1615 = vpop.f32.mrf.mxu0
      %v1616 = vadd.f32 %v293, %v1615
      %v1617 = vpop.f32.mrf.mxu0
      %v1618 = vadd.f32 %v294, %v1617
      %1619 = vdwg.mxu0
      %1620 = vmatpush.bf16.msra.mxu0 0
      %1621 = vmatpush.bf16.msra.mxu0 0
      %1622 = vmatpush.bf16.msra.mxu0 0
      %1623 = vmatpush.bf16.msra.mxu0 0
      %1624 = vmatpush.bf16.msra.mxu0 %v354
      %1625 = vmatpush.bf16.msra.mxu0 %v353
      %1626 = vmatpush.bf16.msra.mxu0 %v352
      %1627 = vmatpush.bf16.msra.mxu0 %v351
      %1628 = vmatmul.bf16.gmra.mxu0 %v1604
      %v1629 = vpop.f32.mrf.mxu0
      %v1630 = vadd.f32 %v1616, %v1629
      %v1631 = vpop.f32.mrf.mxu0
      %v1632 = vadd.f32 %v1618, %v1631
      %1633 = vdwg.mxu0
      %v1634 = vadd.f32 %v1630, %v1527
      %v1635 = vadd.f32 %v1632, %v1527
      %v1636 = vtanh.pop %v1634
      %v1637 = vtanh.pop %v1635
      %v1638 = vpack.c.bf16 %v1637, %v1636
      %1639 = vmatpush.bf16.msra.mxu0 %v483
      %1640 = vmatpush.bf16.msra.mxu0 %v481
      %1641 = vmatpush.bf16.msra.mxu0 %v479
      %1642 = vmatpush.bf16.msra.mxu0 %v477
      %1643 = vmatpush.bf16.msra.mxu0 %v475
      %1644 = vmatpush.bf16.msra.mxu0 %v473
      %1645 = vmatpush.bf16.msra.mxu0 %v471
      %1646 = vmatpush.bf16.msra.mxu0 %v469
      %1647 = vmatmul.bf16.gmra.mxu0 %v1638
      %v1648 = vpop.f32.mrf.mxu0
      %v1649 = vadd.f32 0.0, %v1648
      %v1650 = vpop.f32.mrf.mxu0
      %v1651 = vadd.f32 0.0, %v1650
      %1652 = vdwg.mxu0
      %1653 = vmatpush.bf16.msra.mxu0 %v484
      %1654 = vmatpush.bf16.msra.mxu0 %v482
      %1655 = vmatpush.bf16.msra.mxu0 %v480
      %1656 = vmatpush.bf16.msra.mxu0 %v478
      %1657 = vmatpush.bf16.msra.mxu0 %v476
      %1658 = vmatpush.bf16.msra.mxu0 %v474
      %1659 = vmatpush.bf16.msra.mxu0 %v472
      %1660 = vmatpush.bf16.msra.mxu0 %v470
      %1661 = vmatmul.bf16.gmra.mxu0 %v1638
      %v1662 = vpop.f32.mrf.mxu0
      %v1663 = vadd.f32 0.0, %v1662
      %v1664 = vpop.f32.mrf.mxu0
      %v1665 = vadd.f32 0.0, %v1664
      %1666 = vdwg.mxu0
      %v1667 = vsub.f32 0.0, %v1649
      %v1668 = vsub.f32 0.0, %v1663
      %v1669 = vsub.f32 0.0, %v1651
      %v1670 = vsub.f32 0.0, %v1665
      %v1671 = vmul.f32 %v1667, 1.25327
      %v1672 = vmul.f32 %v1668, 1.25327
      %v1673 = vmul.f32 %v1669, 1.25327
      %v1674 = vmul.f32 %v1670, 1.25327
      %v1675 = vmul.f32 %v1597, -3.1674674
      %v1676 = vmul.f32 %v1598, -3.1674674
      %v1677 = vmul.f32 %v1599, -3.1674674
      %v1678 = vmul.f32 %v1600, -3.1674674
      %v1679 = vmul.f32 %v1671, 3.1674674
      %v1680 = vmul.f32 %v1672, 3.1674674
      %v1681 = vmul.f32 %v1673, 3.1674674
      %v1682 = vmul.f32 %v1674, 3.1674674
      %v1683 = vsub.f32 %v1675, %v1679
      %v1684 = vsub.f32 %v1676, %v1680
      %v1685 = vsub.f32 %v1677, %v1681
      %v1686 = vsub.f32 %v1678, %v1682
      %v1687 = vmul.f32 %v1671, %v1683
      %v1688 = vmul.f32 %v1672, %v1684
      %v1689 = vmul.f32 %v1673, %v1685
      %v1690 = vmul.f32 %v1674, %v1686
      %v1691 = vsel %vm367, %v1688, 0.0
      %v1692 = vadd.f32 %v1687, %v1691
      %1693 = vadd.xlane.f32.xlu0 %v1692
      %v1694 = vpop.xlane.xlu0 %1693
      %v1695 = vsel %vm367, %v1690, 0.0
      %v1696 = vadd.f32 %v1689, %v1695
      %1697 = vadd.xlane.f32.xlu0 %v1696
      %v1698 = vpop.xlane.xlu0 %1697
      %v1699 = vmul.f32 %v1683, 0.1249975
      %v1700 = vmul.f32 %v1684, 0.1249975
      %v1701 = vmul.f32 %v1685, 0.1249975
      %v1702 = vmul.f32 %v1686, 0.1249975
      %v1703 = vadd.f32 %v1369, %v1699
      %v1704 = vadd.f32 %v1370, %v1700
      %v1705 = vadd.f32 %v1371, %v1701
      %v1706 = vadd.f32 %v1372, %v1702
      %v1707 = vld [vmem:[%s4 + $0x6] sm:$0x1]
      %v1708 = vpack.c.bf16 %v1705, %v1703
      %v1709 = vpack.c.bf16 %v1706, %v1704
      %v1711 = vsel %vm367, %v1709, 0
      %1713 = vmatpush.bf16.msra.mxu0 %v350
      %1714 = vmatpush.bf16.msra.mxu0 %v349
      %1715 = vmatpush.bf16.msra.mxu0 %v348
      %1716 = vmatpush.bf16.msra.mxu0 %v347
      %1717 = vmatpush.bf16.msra.mxu0 %v346
      %1718 = vmatpush.bf16.msra.mxu0 %v345
      %1719 = vmatpush.bf16.msra.mxu0 %v344
      %1720 = vmatpush.bf16.msra.mxu0 %v343
      %1721 = vmatmul.bf16.gmra.mxu0 %v1708
      %v1722 = vpop.f32.mrf.mxu0
      %v1723 = vadd.f32 %v293, %v1722
      %v1724 = vpop.f32.mrf.mxu0
      %v1725 = vadd.f32 %v294, %v1724
      %1726 = vdwg.mxu0
      %1727 = vmatpush.bf16.msra.mxu0 0
      %1728 = vmatpush.bf16.msra.mxu0 0
      %1729 = vmatpush.bf16.msra.mxu0 0
      %1730 = vmatpush.bf16.msra.mxu0 0
      %1731 = vmatpush.bf16.msra.mxu0 %v354
      %1732 = vmatpush.bf16.msra.mxu0 %v353
      %1733 = vmatpush.bf16.msra.mxu0 %v352
      %1734 = vmatpush.bf16.msra.mxu0 %v351
      %1735 = vmatmul.bf16.gmra.mxu0 %v1711
      %v1736 = vpop.f32.mrf.mxu0
      %v1737 = vadd.f32 %v1723, %v1736
      %v1738 = vpop.f32.mrf.mxu0
      %v1739 = vadd.f32 %v1725, %v1738
      %1740 = vdwg.mxu0
      %v1741 = vperm.slane %v1707, 0
      %v1742 = vadd.f32 %v1737, %v1741
      %v1743 = vadd.f32 %v1739, %v1741
      %v1744 = vtanh.pop %v1742
      %v1745 = vtanh.pop %v1743
      %v1746 = vpack.c.bf16 %v1745, %v1744
      %1747 = vmatpush.bf16.msra.mxu0 %v483
      %1748 = vmatpush.bf16.msra.mxu0 %v481
      %1749 = vmatpush.bf16.msra.mxu0 %v479
      %1750 = vmatpush.bf16.msra.mxu0 %v477
      %1751 = vmatpush.bf16.msra.mxu0 %v475
      %1752 = vmatpush.bf16.msra.mxu0 %v473
      %1753 = vmatpush.bf16.msra.mxu0 %v471
      %1754 = vmatpush.bf16.msra.mxu0 %v469
      %1755 = vmatmul.bf16.gmra.mxu0 %v1746
      %v1756 = vpop.f32.mrf.mxu0
      %v1757 = vadd.f32 0.0, %v1756
      %v1758 = vpop.f32.mrf.mxu0
      %v1759 = vadd.f32 0.0, %v1758
      %1760 = vdwg.mxu0
      %1761 = vmatpush.bf16.msra.mxu0 %v484
      %1762 = vmatpush.bf16.msra.mxu0 %v482
      %1763 = vmatpush.bf16.msra.mxu0 %v480
      %1764 = vmatpush.bf16.msra.mxu0 %v478
      %1765 = vmatpush.bf16.msra.mxu0 %v476
      %1766 = vmatpush.bf16.msra.mxu0 %v474
      %1767 = vmatpush.bf16.msra.mxu0 %v472
      %1768 = vmatpush.bf16.msra.mxu0 %v470
      %1769 = vmatmul.bf16.gmra.mxu0 %v1746
      %v1770 = vpop.f32.mrf.mxu0
      %v1771 = vadd.f32 0.0, %v1770
      %v1772 = vpop.f32.mrf.mxu0
      %v1773 = vadd.f32 0.0, %v1772
      %1774 = vdwg.mxu0
      %v1775 = vsub.f32 0.0, %v1757
      %v1776 = vsub.f32 0.0, %v1771
      %v1777 = vsub.f32 0.0, %v1759
      %v1778 = vsub.f32 0.0, %v1773
      %v1779 = vmul.f32 %v1775, 1.1437739
      %v1780 = vmul.f32 %v1776, 1.1437739
      %v1781 = vmul.f32 %v1777, 1.1437739
      %v1782 = vmul.f32 %v1778, 1.1437739
      %v1783 = vmul.f32 %v1703, -3.784985
      %v1784 = vmul.f32 %v1704, -3.784985
      %v1785 = vmul.f32 %v1705, -3.784985
      %v1786 = vmul.f32 %v1706, -3.784985
      %v1787 = vmul.f32 %v1779, 3.784985
      %v1788 = vmul.f32 %v1780, 3.784985
      %v1789 = vmul.f32 %v1781, 3.784985
      %v1790 = vmul.f32 %v1782, 3.784985
      %v1791 = vsub.f32 %v1783, %v1787
      %v1792 = vsub.f32 %v1784, %v1788
      %v1793 = vsub.f32 %v1785, %v1789
      %v1794 = vsub.f32 %v1786, %v1790
      %v1795 = vmul.f32 %v1779, %v1791
      %v1796 = vmul.f32 %v1780, %v1792
      %v1797 = vmul.f32 %v1781, %v1793
      %v1798 = vmul.f32 %v1782, %v1794
      %v1799 = vsel %vm367, %v1796, 0.0
      %v1800 = vadd.f32 %v1795, %v1799
      %1801 = vadd.xlane.f32.xlu0 %v1800
      %v1802 = vpop.xlane.xlu0 %1801
      %v1803 = vsel %vm367, %v1798, 0.0
      %v1804 = vadd.f32 %v1797, %v1803
      %1805 = vadd.xlane.f32.xlu0 %v1804
      %v1806 = vpop.xlane.xlu0 %1805
      %v1807 = vmul.f32 %v1577, 2.0
      %v1808 = vmul.f32 %v1578, 2.0
      %v1809 = vmul.f32 %v1579, 2.0
      %v1810 = vmul.f32 %v1580, 2.0
      %v1811 = vadd.f32 %v1469, %v1807
      %v1812 = vadd.f32 %v1470, %v1808
      %v1813 = vadd.f32 %v1471, %v1809
      %v1814 = vadd.f32 %v1472, %v1810
      %v1815 = vmul.f32 %v1683, 2.0
      %v1816 = vmul.f32 %v1684, 2.0
      %v1817 = vmul.f32 %v1685, 2.0
      %v1818 = vmul.f32 %v1686, 2.0
      %v1819 = vadd.f32 %v1811, %v1815
      %v1820 = vadd.f32 %v1812, %v1816
      %v1821 = vadd.f32 %v1813, %v1817
      %v1822 = vadd.f32 %v1814, %v1818
      %v1823 = vadd.f32 %v1819, %v1791
      %v1824 = vadd.f32 %v1820, %v1792
      %v1825 = vadd.f32 %v1821, %v1793
      %v1826 = vadd.f32 %v1822, %v1794
      %v1827 = vmul.f32 %v1823, 0.020832917
      %v1828 = vmul.f32 %v1824, 0.020832917
      %v1829 = vmul.f32 %v1825, 0.020832917
      %v1830 = vmul.f32 %v1826, 0.020832917
      %v1831 = vadd.f32 %v1369, %v1827
      %v1832 = vadd.f32 %v1370, %v1828
      %v1833 = vadd.f32 %v1371, %v1829
      %v1834 = vadd.f32 %v1372, %v1830
      %v1835 = vmul.f32 %v1588, 2.0
      %v1836 = vmul.f32 %v1592, 2.0
      %v1837 = vadd.f32 %v1480, %v1835
      %v1838 = vadd.f32 %v1484, %v1836
      %v1839 = vmul.f32 %v1694, 2.0
      %v1840 = vmul.f32 %v1698, 2.0
      %v1841 = vadd.f32 %v1837, %v1839
      %v1842 = vadd.f32 %v1838, %v1840
      %v1843 = vadd.f32 %v1841, %v1802
      %v1844 = vadd.f32 %v1842, %v1806
      %v1845 = vmul.f32 %v1843, 0.020832917
      %v1846 = vmul.f32 %v1844, 0.020832917
      %v1847 = vadd.f32 %v1385, %v1845
      %v1848 = vadd.f32 %v1386, %v1846
      %v1849 = vpack.c.bf16 %v1833, %v1831
      %v1850 = vpack.c.bf16 %v1834, %v1832
      %v1852 = vsel %vm367, %v1850, 0
      %1854 = vmatpush.bf16.msra.mxu0 %v350
      %1855 = vmatpush.bf16.msra.mxu0 %v349
      %1856 = vmatpush.bf16.msra.mxu0 %v348
      %1857 = vmatpush.bf16.msra.mxu0 %v347
      %1858 = vmatpush.bf16.msra.mxu0 %v346
      %1859 = vmatpush.bf16.msra.mxu0 %v345
      %1860 = vmatpush.bf16.msra.mxu0 %v344
      %1861 = vmatpush.bf16.msra.mxu0 %v343
      %1862 = vmatmul.bf16.gmra.mxu0 %v1849
      %v1863 = vpop.f32.mrf.mxu0
      %v1864 = vadd.f32 %v293, %v1863
      %v1865 = vpop.f32.mrf.mxu0
      %v1866 = vadd.f32 %v294, %v1865
      %1867 = vdwg.mxu0
      %1868 = vmatpush.bf16.msra.mxu0 0
      %1869 = vmatpush.bf16.msra.mxu0 0
      %1870 = vmatpush.bf16.msra.mxu0 0
      %1871 = vmatpush.bf16.msra.mxu0 0
      %1872 = vmatpush.bf16.msra.mxu0 %v354
      %1873 = vmatpush.bf16.msra.mxu0 %v353
      %1874 = vmatpush.bf16.msra.mxu0 %v352
      %1875 = vmatpush.bf16.msra.mxu0 %v351
      %1876 = vmatmul.bf16.gmra.mxu0 %v1852
      %v1877 = vpop.f32.mrf.mxu0
      %v1878 = vadd.f32 %v1864, %v1877
      %v1879 = vpop.f32.mrf.mxu0
      %v1880 = vadd.f32 %v1866, %v1879
      %1881 = vdwg.mxu0
      %v1882 = vadd.f32 %v1878, %v1741
      %v1883 = vadd.f32 %v1880, %v1741
      %v1884 = vtanh.pop %v1882
      %v1885 = vtanh.pop %v1883
      %v1886 = vpack.c.bf16 %v1885, %v1884
      %1887 = vmatpush.bf16.msra.mxu0 %v483
      %1888 = vmatpush.bf16.msra.mxu0 %v481
      %1889 = vmatpush.bf16.msra.mxu0 %v479
      %1890 = vmatpush.bf16.msra.mxu0 %v477
      %1891 = vmatpush.bf16.msra.mxu0 %v475
      %1892 = vmatpush.bf16.msra.mxu0 %v473
      %1893 = vmatpush.bf16.msra.mxu0 %v471
      %1894 = vmatpush.bf16.msra.mxu0 %v469
      %1895 = vmatmul.bf16.gmra.mxu0 %v1886
      %v1896 = vpop.f32.mrf.mxu0
      %v1897 = vadd.f32 0.0, %v1896
      %v1898 = vpop.f32.mrf.mxu0
      %v1899 = vadd.f32 0.0, %v1898
      %1900 = vdwg.mxu0
      %1901 = vmatpush.bf16.msra.mxu0 %v484
      %1902 = vmatpush.bf16.msra.mxu0 %v482
      %1903 = vmatpush.bf16.msra.mxu0 %v480
      %1904 = vmatpush.bf16.msra.mxu0 %v478
      %1905 = vmatpush.bf16.msra.mxu0 %v476
      %1906 = vmatpush.bf16.msra.mxu0 %v474
      %1907 = vmatpush.bf16.msra.mxu0 %v472
      %1908 = vmatpush.bf16.msra.mxu0 %v470
      %1909 = vmatmul.bf16.gmra.mxu0 %v1886
      %v1910 = vpop.f32.mrf.mxu0
      %v1911 = vadd.f32 0.0, %v1910
      %v1912 = vpop.f32.mrf.mxu0
      %v1913 = vadd.f32 0.0, %v1912
      %1914 = vdwg.mxu0
      %v1915 = vsub.f32 0.0, %v1897
      %v1916 = vsub.f32 0.0, %v1911
      %v1917 = vsub.f32 0.0, %v1899
      %v1918 = vsub.f32 0.0, %v1913
      %v1919 = vmul.f32 %v1915, 1.1437739
      %v1920 = vmul.f32 %v1916, 1.1437739
      %v1921 = vmul.f32 %v1917, 1.1437739
      %v1922 = vmul.f32 %v1918, 1.1437739
      %v1923 = vmul.f32 %v1831, -3.784985
      %v1924 = vmul.f32 %v1832, -3.784985
      %v1925 = vmul.f32 %v1833, -3.784985
      %v1926 = vmul.f32 %v1834, -3.784985
      %v1927 = vmul.f32 %v1919, 3.784985
      %v1928 = vmul.f32 %v1920, 3.784985
      %v1929 = vmul.f32 %v1921, 3.784985
      %v1930 = vmul.f32 %v1922, 3.784985
      %v1931 = vsub.f32 %v1923, %v1927
      %v1932 = vsub.f32 %v1924, %v1928
      %v1933 = vsub.f32 %v1925, %v1929
      %v1934 = vsub.f32 %v1926, %v1930
      %v1935 = vmul.f32 %v1919, %v1931
      %v1936 = vmul.f32 %v1920, %v1932
      %v1937 = vmul.f32 %v1921, %v1933
      %v1938 = vmul.f32 %v1922, %v1934
      %v1939 = vsel %vm367, %v1936, 0.0
      %v1940 = vadd.f32 %v1935, %v1939
      %1941 = vadd.xlane.f32.xlu0 %v1940
      %v1942 = vpop.xlane.xlu0 %1941
      %v1943 = vsel %vm367, %v1938, 0.0
      %v1944 = vadd.f32 %v1937, %v1943
      %1945 = vadd.xlane.f32.xlu0 %v1944
      %v1946 = vpop.xlane.xlu0 %1945
      %v1947 = vmul.f32 %v1931, 0.06249875
      %v1948 = vmul.f32 %v1932, 0.06249875
      %v1949 = vmul.f32 %v1933, 0.06249875
      %v1950 = vmul.f32 %v1934, 0.06249875
      %v1951 = vadd.f32 %v1831, %v1947
      %v1952 = vadd.f32 %v1832, %v1948
      %v1953 = vadd.f32 %v1833, %v1949
      %v1954 = vadd.f32 %v1834, %v1950
      %v1955 = vld [vmem:[%s4 + $0x7] sm:$0x1]
      %v1956 = vpack.c.bf16 %v1953, %v1951
      %v1957 = vpack.c.bf16 %v1954, %v1952
      %v1959 = vsel %vm367, %v1957, 0
      %1961 = vmatpush.bf16.msra.mxu0 %v350
      %1962 = vmatpush.bf16.msra.mxu0 %v349
      %1963 = vmatpush.bf16.msra.mxu0 %v348
      %1964 = vmatpush.bf16.msra.mxu0 %v347
      %1965 = vmatpush.bf16.msra.mxu0 %v346
      %1966 = vmatpush.bf16.msra.mxu0 %v345
      %1967 = vmatpush.bf16.msra.mxu0 %v344
      %1968 = vmatpush.bf16.msra.mxu0 %v343
      %1969 = vmatmul.bf16.gmra.mxu0 %v1956
      %v1970 = vpop.f32.mrf.mxu0
      %v1971 = vadd.f32 %v293, %v1970
      %v1972 = vpop.f32.mrf.mxu0
      %v1973 = vadd.f32 %v294, %v1972
      %1974 = vdwg.mxu0
      %1975 = vmatpush.bf16.msra.mxu0 0
      %1976 = vmatpush.bf16.msra.mxu0 0
      %1977 = vmatpush.bf16.msra.mxu0 0
      %1978 = vmatpush.bf16.msra.mxu0 0
      %1979 = vmatpush.bf16.msra.mxu0 %v354
      %1980 = vmatpush.bf16.msra.mxu0 %v353
      %1981 = vmatpush.bf16.msra.mxu0 %v352
      %1982 = vmatpush.bf16.msra.mxu0 %v351
      %1983 = vmatmul.bf16.gmra.mxu0 %v1959
      %v1984 = vpop.f32.mrf.mxu0
      %v1985 = vadd.f32 %v1971, %v1984
      %v1986 = vpop.f32.mrf.mxu0
      %v1987 = vadd.f32 %v1973, %v1986
      %1988 = vdwg.mxu0
      %v1989 = vperm.slane %v1955, 0
      %v1990 = vadd.f32 %v1985, %v1989
      %v1991 = vadd.f32 %v1987, %v1989
      %v1992 = vtanh.pop %v1990
      %v1993 = vtanh.pop %v1991
      %v1994 = vpack.c.bf16 %v1993, %v1992
      %1995 = vmatpush.bf16.msra.mxu0 %v483
      %1996 = vmatpush.bf16.msra.mxu0 %v481
      %1997 = vmatpush.bf16.msra.mxu0 %v479
      %1998 = vmatpush.bf16.msra.mxu0 %v477
      %1999 = vmatpush.bf16.msra.mxu0 %v475
      %2000 = vmatpush.bf16.msra.mxu0 %v473
      %2001 = vmatpush.bf16.msra.mxu0 %v471
      %2002 = vmatpush.bf16.msra.mxu0 %v469
      %2003 = vmatmul.bf16.gmra.mxu0 %v1994
      %v2004 = vpop.f32.mrf.mxu0
      %v2005 = vadd.f32 0.0, %v2004
      %v2006 = vpop.f32.mrf.mxu0
      %v2007 = vadd.f32 0.0, %v2006
      %2008 = vdwg.mxu0
      %2009 = vmatpush.bf16.msra.mxu0 %v484
      %2010 = vmatpush.bf16.msra.mxu0 %v482
      %2011 = vmatpush.bf16.msra.mxu0 %v480
      %2012 = vmatpush.bf16.msra.mxu0 %v478
      %2013 = vmatpush.bf16.msra.mxu0 %v476
      %2014 = vmatpush.bf16.msra.mxu0 %v474
      %2015 = vmatpush.bf16.msra.mxu0 %v472
      %2016 = vmatpush.bf16.msra.mxu0 %v470
      %2017 = vmatmul.bf16.gmra.mxu0 %v1994
      %v2018 = vpop.f32.mrf.mxu0
      %v2019 = vadd.f32 0.0, %v2018
      %v2020 = vpop.f32.mrf.mxu0
      %v2021 = vadd.f32 0.0, %v2020
      %2022 = vdwg.mxu0
      %v2023 = vsub.f32 0.0, %v2005
      %v2024 = vsub.f32 0.0, %v2019
      %v2025 = vsub.f32 0.0, %v2007
      %v2026 = vsub.f32 0.0, %v2021
      %v2027 = vmul.f32 %v2023, 1.0784416
      %v2028 = vmul.f32 %v2024, 1.0784416
      %v2029 = vmul.f32 %v2025, 1.0784416
      %v2030 = vmul.f32 %v2026, 1.0784416
      %v2031 = vmul.f32 %v1951, -4.412462
      %v2032 = vmul.f32 %v1952, -4.412462
      %v2033 = vmul.f32 %v1953, -4.412462
      %v2034 = vmul.f32 %v1954, -4.412462
      %v2035 = vmul.f32 %v2027, 4.412462
      %v2036 = vmul.f32 %v2028, 4.412462
      %v2037 = vmul.f32 %v2029, 4.412462
      %v2038 = vmul.f32 %v2030, 4.412462
      %v2039 = vsub.f32 %v2031, %v2035
      %v2040 = vsub.f32 %v2032, %v2036
      %v2041 = vsub.f32 %v2033, %v2037
      %v2042 = vsub.f32 %v2034, %v2038
      %v2043 = vmul.f32 %v2027, %v2039
      %v2044 = vmul.f32 %v2028, %v2040
      %v2045 = vmul.f32 %v2029, %v2041
      %v2046 = vmul.f32 %v2030, %v2042
      %v2047 = vsel %vm367, %v2044, 0.0
      %v2048 = vadd.f32 %v2043, %v2047
      %2049 = vadd.xlane.f32.xlu0 %v2048
      %v2050 = vpop.xlane.xlu0 %2049
      %v2051 = vsel %vm367, %v2046, 0.0
      %v2052 = vadd.f32 %v2045, %v2051
      %2053 = vadd.xlane.f32.xlu0 %v2052
      %v2054 = vpop.xlane.xlu0 %2053
      %v2055 = vmul.f32 %v2039, 0.06249875
      %v2056 = vmul.f32 %v2040, 0.06249875
      %v2057 = vmul.f32 %v2041, 0.06249875
      %v2058 = vmul.f32 %v2042, 0.06249875
      %v2059 = vadd.f32 %v1831, %v2055
      %v2060 = vadd.f32 %v1832, %v2056
      %v2061 = vadd.f32 %v1833, %v2057
      %v2062 = vadd.f32 %v1834, %v2058
      %v2063 = vpack.c.bf16 %v2061, %v2059
      %v2064 = vpack.c.bf16 %v2062, %v2060
      %v2066 = vsel %vm367, %v2064, 0
      %2068 = vmatpush.bf16.msra.mxu0 %v350
      %2069 = vmatpush.bf16.msra.mxu0 %v349
      %2070 = vmatpush.bf16.msra.mxu0 %v348
      %2071 = vmatpush.bf16.msra.mxu0 %v347
      %2072 = vmatpush.bf16.msra.mxu0 %v346
      %2073 = vmatpush.bf16.msra.mxu0 %v345
      %2074 = vmatpush.bf16.msra.mxu0 %v344
      %2075 = vmatpush.bf16.msra.mxu0 %v343
      %2076 = vmatmul.bf16.gmra.mxu0 %v2063
      %v2077 = vpop.f32.mrf.mxu0
      %v2078 = vadd.f32 %v293, %v2077
      %v2079 = vpop.f32.mrf.mxu0
      %v2080 = vadd.f32 %v294, %v2079
      %2081 = vdwg.mxu0
      %2082 = vmatpush.bf16.msra.mxu0 0
      %2083 = vmatpush.bf16.msra.mxu0 0
      %2084 = vmatpush.bf16.msra.mxu0 0
      %2085 = vmatpush.bf16.msra.mxu0 0
      %2086 = vmatpush.bf16.msra.mxu0 %v354
      %2087 = vmatpush.bf16.msra.mxu0 %v353
      %2088 = vmatpush.bf16.msra.mxu0 %v352
      %2089 = vmatpush.bf16.msra.mxu0 %v351
      %2090 = vmatmul.bf16.gmra.mxu0 %v2066
      %v2091 = vpop.f32.mrf.mxu0
      %v2092 = vadd.f32 %v2078, %v2091
      %v2093 = vpop.f32.mrf.mxu0
      %v2094 = vadd.f32 %v2080, %v2093
      %2095 = vdwg.mxu0
      %v2096 = vadd.f32 %v2092, %v1989
      %v2097 = vadd.f32 %v2094, %v1989
      %v2098 = vtanh.pop %v2096
      %v2099 = vtanh.pop %v2097
      %v2100 = vpack.c.bf16 %v2099, %v2098
      %2101 = vmatpush.bf16.msra.mxu0 %v483
      %2102 = vmatpush.bf16.msra.mxu0 %v481
      %2103 = vmatpush.bf16.msra.mxu0 %v479
      %2104 = vmatpush.bf16.msra.mxu0 %v477
      %2105 = vmatpush.bf16.msra.mxu0 %v475
      %2106 = vmatpush.bf16.msra.mxu0 %v473
      %2107 = vmatpush.bf16.msra.mxu0 %v471
      %2108 = vmatpush.bf16.msra.mxu0 %v469
      %2109 = vmatmul.bf16.gmra.mxu0 %v2100
      %v2110 = vpop.f32.mrf.mxu0
      %v2111 = vadd.f32 0.0, %v2110
      %v2112 = vpop.f32.mrf.mxu0
      %v2113 = vadd.f32 0.0, %v2112
      %2114 = vdwg.mxu0
      %2115 = vmatpush.bf16.msra.mxu0 %v484
      %2116 = vmatpush.bf16.msra.mxu0 %v482
      %2117 = vmatpush.bf16.msra.mxu0 %v480
      %2118 = vmatpush.bf16.msra.mxu0 %v478
      %2119 = vmatpush.bf16.msra.mxu0 %v476
      %2120 = vmatpush.bf16.msra.mxu0 %v474
      %2121 = vmatpush.bf16.msra.mxu0 %v472
      %2122 = vmatpush.bf16.msra.mxu0 %v470
      %2123 = vmatmul.bf16.gmra.mxu0 %v2100
      %v2124 = vpop.f32.mrf.mxu0
      %v2125 = vadd.f32 0.0, %v2124
      %v2126 = vpop.f32.mrf.mxu0
      %v2127 = vadd.f32 0.0, %v2126
      %2128 = vdwg.mxu0
      %v2129 = vsub.f32 0.0, %v2111
      %v2130 = vsub.f32 0.0, %v2125
      %v2131 = vsub.f32 0.0, %v2113
      %v2132 = vsub.f32 0.0, %v2127
      %v2133 = vmul.f32 %v2129, 1.0784416
      %v2134 = vmul.f32 %v2130, 1.0784416
      %v2135 = vmul.f32 %v2131, 1.0784416
      %v2136 = vmul.f32 %v2132, 1.0784416
      %v2137 = vmul.f32 %v2059, -4.412462
      %v2138 = vmul.f32 %v2060, -4.412462
      %v2139 = vmul.f32 %v2061, -4.412462
      %v2140 = vmul.f32 %v2062, -4.412462
      %v2141 = vmul.f32 %v2133, 4.412462
      %v2142 = vmul.f32 %v2134, 4.412462
      %v2143 = vmul.f32 %v2135, 4.412462
      %v2144 = vmul.f32 %v2136, 4.412462
      %v2145 = vsub.f32 %v2137, %v2141
      %v2146 = vsub.f32 %v2138, %v2142
      %v2147 = vsub.f32 %v2139, %v2143
      %v2148 = vsub.f32 %v2140, %v2144
      %v2149 = vmul.f32 %v2133, %v2145
      %v2150 = vmul.f32 %v2134, %v2146
      %v2151 = vmul.f32 %v2135, %v2147
      %v2152 = vmul.f32 %v2136, %v2148
      %v2153 = vsel %vm367, %v2150, 0.0
      %v2154 = vadd.f32 %v2149, %v2153
      %2155 = vadd.xlane.f32.xlu0 %v2154
      %v2156 = vpop.xlane.xlu0 %2155
      %v2157 = vsel %vm367, %v2152, 0.0
      %v2158 = vadd.f32 %v2151, %v2157
      %2159 = vadd.xlane.f32.xlu0 %v2158
      %v2160 = vpop.xlane.xlu0 %2159
      %v2161 = vmul.f32 %v2145, 0.1249975
      %v2162 = vmul.f32 %v2146, 0.1249975
      %v2163 = vmul.f32 %v2147, 0.1249975
      %v2164 = vmul.f32 %v2148, 0.1249975
      %v2165 = vadd.f32 %v1831, %v2161
      %v2166 = vadd.f32 %v1832, %v2162
      %v2167 = vadd.f32 %v1833, %v2163
      %v2168 = vadd.f32 %v1834, %v2164
      %v2169 = vld [vmem:[%s4 + $0x8] sm:$0x1]
      %v2170 = vpack.c.bf16 %v2167, %v2165
      %v2171 = vpack.c.bf16 %v2168, %v2166
      %v2173 = vsel %vm367, %v2171, 0
      %2175 = vmatpush.bf16.msra.mxu0 %v350
      %2176 = vmatpush.bf16.msra.mxu0 %v349
      %2177 = vmatpush.bf16.msra.mxu0 %v348
      %2178 = vmatpush.bf16.msra.mxu0 %v347
      %2179 = vmatpush.bf16.msra.mxu0 %v346
      %2180 = vmatpush.bf16.msra.mxu0 %v345
      %2181 = vmatpush.bf16.msra.mxu0 %v344
      %2182 = vmatpush.bf16.msra.mxu0 %v343
      %2183 = vmatmul.bf16.gmra.mxu0 %v2170
      %v2184 = vpop.f32.mrf.mxu0
      %v2185 = vadd.f32 %v293, %v2184
      %v2186 = vpop.f32.mrf.mxu0
      %v2187 = vadd.f32 %v294, %v2186
      %2188 = vdwg.mxu0
      %2189 = vmatpush.bf16.msra.mxu0 0
      %2190 = vmatpush.bf16.msra.mxu0 0
      %2191 = vmatpush.bf16.msra.mxu0 0
      %2192 = vmatpush.bf16.msra.mxu0 0
      %2193 = vmatpush.bf16.msra.mxu0 %v354
      %2194 = vmatpush.bf16.msra.mxu0 %v353
      %2195 = vmatpush.bf16.msra.mxu0 %v352
      %2196 = vmatpush.bf16.msra.mxu0 %v351
      %2197 = vmatmul.bf16.gmra.mxu0 %v2173
      %v2198 = vpop.f32.mrf.mxu0
      %v2199 = vadd.f32 %v2185, %v2198
      %v2200 = vpop.f32.mrf.mxu0
      %v2201 = vadd.f32 %v2187, %v2200
      %2202 = vdwg.mxu0
      %v2203 = vperm.slane %v2169, 0
      %v2204 = vadd.f32 %v2199, %v2203
      %v2205 = vadd.f32 %v2201, %v2203
      %v2206 = vtanh.pop %v2204
      %v2207 = vtanh.pop %v2205
      %v2208 = vpack.c.bf16 %v2207, %v2206
      %2209 = vmatpush.bf16.msra.mxu0 %v483
      %2210 = vmatpush.bf16.msra.mxu0 %v481
      %2211 = vmatpush.bf16.msra.mxu0 %v479
      %2212 = vmatpush.bf16.msra.mxu0 %v477
      %2213 = vmatpush.bf16.msra.mxu0 %v475
      %2214 = vmatpush.bf16.msra.mxu0 %v473
      %2215 = vmatpush.bf16.msra.mxu0 %v471
      %2216 = vmatpush.bf16.msra.mxu0 %v469
      %2217 = vmatmul.bf16.gmra.mxu0 %v2208
      %v2218 = vpop.f32.mrf.mxu0
      %v2219 = vadd.f32 0.0, %v2218
      %v2220 = vpop.f32.mrf.mxu0
      %v2221 = vadd.f32 0.0, %v2220
      %2222 = vdwg.mxu0
      %2223 = vmatpush.bf16.msra.mxu0 %v484
      %2224 = vmatpush.bf16.msra.mxu0 %v482
      %2225 = vmatpush.bf16.msra.mxu0 %v480
      %2226 = vmatpush.bf16.msra.mxu0 %v478
      %2227 = vmatpush.bf16.msra.mxu0 %v476
      %2228 = vmatpush.bf16.msra.mxu0 %v474
      %2229 = vmatpush.bf16.msra.mxu0 %v472
      %2230 = vmatpush.bf16.msra.mxu0 %v470
      %2231 = vmatmul.bf16.gmra.mxu0 %v2208
      %v2232 = vpop.f32.mrf.mxu0
      %v2233 = vadd.f32 0.0, %v2232
      %v2234 = vpop.f32.mrf.mxu0
      %v2235 = vadd.f32 0.0, %v2234
      %2236 = vdwg.mxu0
      %v2237 = vsub.f32 0.0, %v2219
      %v2238 = vsub.f32 0.0, %v2233
      %v2239 = vsub.f32 0.0, %v2221
      %v2240 = vsub.f32 0.0, %v2235
      %v2241 = vmul.f32 %v2237, 1.0413258
      %v2242 = vmul.f32 %v2238, 1.0413258
      %v2243 = vmul.f32 %v2239, 1.0413258
      %v2244 = vmul.f32 %v2240, 1.0413258
      %v2245 = vmul.f32 %v2165, -5.02998
      %v2246 = vmul.f32 %v2166, -5.02998
      %v2247 = vmul.f32 %v2167, -5.02998
      %v2248 = vmul.f32 %v2168, -5.02998
      %v2249 = vmul.f32 %v2241, 5.02998
      %v2250 = vmul.f32 %v2242, 5.02998
      %v2251 = vmul.f32 %v2243, 5.02998
      %v2252 = vmul.f32 %v2244, 5.02998
      %v2253 = vsub.f32 %v2245, %v2249
      %v2254 = vsub.f32 %v2246, %v2250
      %v2255 = vsub.f32 %v2247, %v2251
      %v2256 = vsub.f32 %v2248, %v2252
      %v2257 = vmul.f32 %v2241, %v2253
      %v2258 = vmul.f32 %v2242, %v2254
      %v2259 = vmul.f32 %v2243, %v2255
      %v2260 = vmul.f32 %v2244, %v2256
      %v2261 = vsel %vm367, %v2258, 0.0
      %v2262 = vadd.f32 %v2257, %v2261
      %2263 = vadd.xlane.f32.xlu0 %v2262
      %v2264 = vpop.xlane.xlu0 %2263
      %v2265 = vsel %vm367, %v2260, 0.0
      %v2266 = vadd.f32 %v2259, %v2265
      %2267 = vadd.xlane.f32.xlu0 %v2266
      %v2268 = vpop.xlane.xlu0 %2267
      %v2269 = vmul.f32 %v2039, 2.0
      %v2270 = vmul.f32 %v2040, 2.0
      %v2271 = vmul.f32 %v2041, 2.0
      %v2272 = vmul.f32 %v2042, 2.0
      %v2273 = vadd.f32 %v1931, %v2269
      %v2274 = vadd.f32 %v1932, %v2270
      %v2275 = vadd.f32 %v1933, %v2271
      %v2276 = vadd.f32 %v1934, %v2272
      %v2277 = vmul.f32 %v2145, 2.0
      %v2278 = vmul.f32 %v2146, 2.0
      %v2279 = vmul.f32 %v2147, 2.0
      %v2280 = vmul.f32 %v2148, 2.0
      %v2281 = vadd.f32 %v2273, %v2277
      %v2282 = vadd.f32 %v2274, %v2278
      %v2283 = vadd.f32 %v2275, %v2279
      %v2284 = vadd.f32 %v2276, %v2280
      %v2285 = vadd.f32 %v2281, %v2253
      %v2286 = vadd.f32 %v2282, %v2254
      %v2287 = vadd.f32 %v2283, %v2255
      %v2288 = vadd.f32 %v2284, %v2256
      %v2289 = vmul.f32 %v2285, 0.020832917
      %v2290 = vmul.f32 %v2286, 0.020832917
      %v2291 = vmul.f32 %v2287, 0.020832917
      %v2292 = vmul.f32 %v2288, 0.020832917
      %v2293 = vadd.f32 %v1831, %v2289
      %v2294 = vadd.f32 %v1832, %v2290
      %v2295 = vadd.f32 %v1833, %v2291
      %v2296 = vadd.f32 %v1834, %v2292
      %v2297 = vmul.f32 %v2050, 2.0
      %v2298 = vmul.f32 %v2054, 2.0
      %v2299 = vadd.f32 %v1942, %v2297
      %v2300 = vadd.f32 %v1946, %v2298
      %v2301 = vmul.f32 %v2156, 2.0
      %v2302 = vmul.f32 %v2160, 2.0
      %v2303 = vadd.f32 %v2299, %v2301
      %v2304 = vadd.f32 %v2300, %v2302
      %v2305 = vadd.f32 %v2303, %v2264
      %v2306 = vadd.f32 %v2304, %v2268
      %v2307 = vmul.f32 %v2305, 0.020832917
      %v2308 = vmul.f32 %v2306, 0.020832917
      %v2309 = vadd.f32 %v1847, %v2307
      %v2310 = vadd.f32 %v1848, %v2308
      %v2311 = vpack.c.bf16 %v2295, %v2293
      %v2312 = vpack.c.bf16 %v2296, %v2294
      %v2314 = vsel %vm367, %v2312, 0
      %2316 = vmatpush.bf16.msra.mxu0 %v350
      %2317 = vmatpush.bf16.msra.mxu0 %v349
      %2318 = vmatpush.bf16.msra.mxu0 %v348
      %2319 = vmatpush.bf16.msra.mxu0 %v347
      %2320 = vmatpush.bf16.msra.mxu0 %v346
      %2321 = vmatpush.bf16.msra.mxu0 %v345
      %2322 = vmatpush.bf16.msra.mxu0 %v344
      %2323 = vmatpush.bf16.msra.mxu0 %v343
      %2324 = vmatmul.bf16.gmra.mxu0 %v2311
      %v2325 = vpop.f32.mrf.mxu0
      %v2326 = vadd.f32 %v293, %v2325
      %v2327 = vpop.f32.mrf.mxu0
      %v2328 = vadd.f32 %v294, %v2327
      %2329 = vdwg.mxu0
      %2330 = vmatpush.bf16.msra.mxu0 0
      %2331 = vmatpush.bf16.msra.mxu0 0
      %2332 = vmatpush.bf16.msra.mxu0 0
      %2333 = vmatpush.bf16.msra.mxu0 0
      %2334 = vmatpush.bf16.msra.mxu0 %v354
      %2335 = vmatpush.bf16.msra.mxu0 %v353
      %2336 = vmatpush.bf16.msra.mxu0 %v352
      %2337 = vmatpush.bf16.msra.mxu0 %v351
      %2338 = vmatmul.bf16.gmra.mxu0 %v2314
      %v2339 = vpop.f32.mrf.mxu0
      %v2340 = vadd.f32 %v2326, %v2339
      %v2341 = vpop.f32.mrf.mxu0
      %v2342 = vadd.f32 %v2328, %v2341
      %2343 = vdwg.mxu0
      %v2344 = vadd.f32 %v2340, %v2203
      %v2345 = vadd.f32 %v2342, %v2203
      %v2346 = vtanh.pop %v2344
      %v2347 = vtanh.pop %v2345
      %v2348 = vpack.c.bf16 %v2347, %v2346
      %2349 = vmatpush.bf16.msra.mxu0 %v483
      %2350 = vmatpush.bf16.msra.mxu0 %v481
      %2351 = vmatpush.bf16.msra.mxu0 %v479
      %2352 = vmatpush.bf16.msra.mxu0 %v477
      %2353 = vmatpush.bf16.msra.mxu0 %v475
      %2354 = vmatpush.bf16.msra.mxu0 %v473
      %2355 = vmatpush.bf16.msra.mxu0 %v471
      %2356 = vmatpush.bf16.msra.mxu0 %v469
      %2357 = vmatmul.bf16.gmra.mxu0 %v2348
      %v2358 = vpop.f32.mrf.mxu0
      %v2359 = vadd.f32 0.0, %v2358
      %v2360 = vpop.f32.mrf.mxu0
      %v2361 = vadd.f32 0.0, %v2360
      %2362 = vdwg.mxu0
      %2363 = vmatpush.bf16.msra.mxu0 %v484
      %2364 = vmatpush.bf16.msra.mxu0 %v482
      %2365 = vmatpush.bf16.msra.mxu0 %v480
      %2366 = vmatpush.bf16.msra.mxu0 %v478
      %2367 = vmatpush.bf16.msra.mxu0 %v476
      %2368 = vmatpush.bf16.msra.mxu0 %v474
      %2369 = vmatpush.bf16.msra.mxu0 %v472
      %2370 = vmatpush.bf16.msra.mxu0 %v470
      %2371 = vmatmul.bf16.gmra.mxu0 %v2348
      %v2372 = vpop.f32.mrf.mxu0
      %v2373 = vadd.f32 0.0, %v2372
      %v2374 = vpop.f32.mrf.mxu0
      %v2375 = vadd.f32 0.0, %v2374
      %2376 = vdwg.mxu0
      %v2377 = vsub.f32 0.0, %v2359
      %v2378 = vsub.f32 0.0, %v2373
      %v2379 = vsub.f32 0.0, %v2361
      %v2380 = vsub.f32 0.0, %v2375
      %v2381 = vmul.f32 %v2377, 1.0413258
      %v2382 = vmul.f32 %v2378, 1.0413258
      %v2383 = vmul.f32 %v2379, 1.0413258
      %v2384 = vmul.f32 %v2380, 1.0413258
      %v2385 = vmul.f32 %v2293, -5.02998
      %v2386 = vmul.f32 %v2294, -5.02998
      %v2387 = vmul.f32 %v2295, -5.02998
      %v2388 = vmul.f32 %v2296, -5.02998
      %v2389 = vmul.f32 %v2381, 5.02998
      %v2390 = vmul.f32 %v2382, 5.02998
      %v2391 = vmul.f32 %v2383, 5.02998
      %v2392 = vmul.f32 %v2384, 5.02998
      %v2393 = vsub.f32 %v2385, %v2389
      %v2394 = vsub.f32 %v2386, %v2390
      %v2395 = vsub.f32 %v2387, %v2391
      %v2396 = vsub.f32 %v2388, %v2392
      %v2397 = vmul.f32 %v2381, %v2393
      %v2398 = vmul.f32 %v2382, %v2394
      %v2399 = vmul.f32 %v2383, %v2395
      %v2400 = vmul.f32 %v2384, %v2396
      %v2401 = vsel %vm367, %v2398, 0.0
      %v2402 = vadd.f32 %v2397, %v2401
      %2403 = vadd.xlane.f32.xlu0 %v2402
      %v2404 = vpop.xlane.xlu0 %2403
      %v2405 = vsel %vm367, %v2400, 0.0
      %v2406 = vadd.f32 %v2399, %v2405
      %2407 = vadd.xlane.f32.xlu0 %v2406
      %v2408 = vpop.xlane.xlu0 %2407
      %v2409 = vmul.f32 %v2393, 0.06249875
      %v2410 = vmul.f32 %v2394, 0.06249875
      %v2411 = vmul.f32 %v2395, 0.06249875
      %v2412 = vmul.f32 %v2396, 0.06249875
      %v2413 = vadd.f32 %v2293, %v2409
      %v2414 = vadd.f32 %v2294, %v2410
      %v2415 = vadd.f32 %v2295, %v2411
      %v2416 = vadd.f32 %v2296, %v2412
      %v2417 = vld [vmem:[%s4 + $0x9] sm:$0x1]
      %v2418 = vpack.c.bf16 %v2415, %v2413
      %v2419 = vpack.c.bf16 %v2416, %v2414
      %v2421 = vsel %vm367, %v2419, 0
      %2423 = vmatpush.bf16.msra.mxu0 %v350
      %2424 = vmatpush.bf16.msra.mxu0 %v349
      %2425 = vmatpush.bf16.msra.mxu0 %v348
      %2426 = vmatpush.bf16.msra.mxu0 %v347
      %2427 = vmatpush.bf16.msra.mxu0 %v346
      %2428 = vmatpush.bf16.msra.mxu0 %v345
      %2429 = vmatpush.bf16.msra.mxu0 %v344
      %2430 = vmatpush.bf16.msra.mxu0 %v343
      %2431 = vmatmul.bf16.gmra.mxu0 %v2418
      %v2432 = vpop.f32.mrf.mxu0
      %v2433 = vadd.f32 %v293, %v2432
      %v2434 = vpop.f32.mrf.mxu0
      %v2435 = vadd.f32 %v294, %v2434
      %2436 = vdwg.mxu0
      %2437 = vmatpush.bf16.msra.mxu0 0
      %2438 = vmatpush.bf16.msra.mxu0 0
      %2439 = vmatpush.bf16.msra.mxu0 0
      %2440 = vmatpush.bf16.msra.mxu0 0
      %2441 = vmatpush.bf16.msra.mxu0 %v354
      %2442 = vmatpush.bf16.msra.mxu0 %v353
      %2443 = vmatpush.bf16.msra.mxu0 %v352
      %2444 = vmatpush.bf16.msra.mxu0 %v351
      %2445 = vmatmul.bf16.gmra.mxu0 %v2421
      %v2446 = vpop.f32.mrf.mxu0
      %v2447 = vadd.f32 %v2433, %v2446
      %v2448 = vpop.f32.mrf.mxu0
      %v2449 = vadd.f32 %v2435, %v2448
      %2450 = vdwg.mxu0
      %v2451 = vperm.slane %v2417, 0
      %v2452 = vadd.f32 %v2447, %v2451
      %v2453 = vadd.f32 %v2449, %v2451
      %v2454 = vtanh.pop %v2452
      %v2455 = vtanh.pop %v2453
      %v2456 = vpack.c.bf16 %v2455, %v2454
      %2457 = vmatpush.bf16.msra.mxu0 %v483
      %2458 = vmatpush.bf16.msra.mxu0 %v481
      %2459 = vmatpush.bf16.msra.mxu0 %v479
      %2460 = vmatpush.bf16.msra.mxu0 %v477
      %2461 = vmatpush.bf16.msra.mxu0 %v475
      %2462 = vmatpush.bf16.msra.mxu0 %v473
      %2463 = vmatpush.bf16.msra.mxu0 %v471
      %2464 = vmatpush.bf16.msra.mxu0 %v469
      %2465 = vmatmul.bf16.gmra.mxu0 %v2456
      %v2466 = vpop.f32.mrf.mxu0
      %v2467 = vadd.f32 0.0, %v2466
      %v2468 = vpop.f32.mrf.mxu0
      %v2469 = vadd.f32 0.0, %v2468
      %2470 = vdwg.mxu0
      %2471 = vmatpush.bf16.msra.mxu0 %v484
      %2472 = vmatpush.bf16.msra.mxu0 %v482
      %2473 = vmatpush.bf16.msra.mxu0 %v480
      %2474 = vmatpush.bf16.msra.mxu0 %v478
      %2475 = vmatpush.bf16.msra.mxu0 %v476
      %2476 = vmatpush.bf16.msra.mxu0 %v474
      %2477 = vmatpush.bf16.msra.mxu0 %v472
      %2478 = vmatpush.bf16.msra.mxu0 %v470
      %2479 = vmatmul.bf16.gmra.mxu0 %v2456
      %v2480 = vpop.f32.mrf.mxu0
      %v2481 = vadd.f32 0.0, %v2480
      %v2482 = vpop.f32.mrf.mxu0
      %v2483 = vadd.f32 0.0, %v2482
      %2484 = vdwg.mxu0
      %v2485 = vsub.f32 0.0, %v2467
      %v2486 = vsub.f32 0.0, %v2481
      %v2487 = vsub.f32 0.0, %v2469
      %v2488 = vsub.f32 0.0, %v2483
      %v2489 = vmul.f32 %v2485, 1.0206001
      %v2490 = vmul.f32 %v2486, 1.0206001
      %v2491 = vmul.f32 %v2487, 1.0206001
      %v2492 = vmul.f32 %v2488, 1.0206001
      %v2493 = vmul.f32 %v2413, -5.6474977
      %v2494 = vmul.f32 %v2414, -5.6474977
      %v2495 = vmul.f32 %v2415, -5.6474977
      %v2496 = vmul.f32 %v2416, -5.6474977
      %v2497 = vmul.f32 %v2489, 5.6474977
      %v2498 = vmul.f32 %v2490, 5.6474977
      %v2499 = vmul.f32 %v2491, 5.6474977
      %v2500 = vmul.f32 %v2492, 5.6474977
      %v2501 = vsub.f32 %v2493, %v2497
      %v2502 = vsub.f32 %v2494, %v2498
      %v2503 = vsub.f32 %v2495, %v2499
      %v2504 = vsub.f32 %v2496, %v2500
      %v2505 = vmul.f32 %v2489, %v2501
      %v2506 = vmul.f32 %v2490, %v2502
      %v2507 = vmul.f32 %v2491, %v2503
      %v2508 = vmul.f32 %v2492, %v2504
      %v2509 = vsel %vm367, %v2506, 0.0
      %v2510 = vadd.f32 %v2505, %v2509
      %2511 = vadd.xlane.f32.xlu0 %v2510
      %v2512 = vpop.xlane.xlu0 %2511
      %v2513 = vsel %vm367, %v2508, 0.0
      %v2514 = vadd.f32 %v2507, %v2513
      %2515 = vadd.xlane.f32.xlu0 %v2514
      %v2516 = vpop.xlane.xlu0 %2515
      %v2517 = vmul.f32 %v2501, 0.06249875
      %v2518 = vmul.f32 %v2502, 0.06249875
      %v2519 = vmul.f32 %v2503, 0.06249875
      %v2520 = vmul.f32 %v2504, 0.06249875
      %v2521 = vadd.f32 %v2293, %v2517
      %v2522 = vadd.f32 %v2294, %v2518
      %v2523 = vadd.f32 %v2295, %v2519
      %v2524 = vadd.f32 %v2296, %v2520
      %v2525 = vpack.c.bf16 %v2523, %v2521
      %v2526 = vpack.c.bf16 %v2524, %v2522
      %v2528 = vsel %vm367, %v2526, 0
      %2530 = vmatpush.bf16.msra.mxu0 %v350
      %2531 = vmatpush.bf16.msra.mxu0 %v349
      %2532 = vmatpush.bf16.msra.mxu0 %v348
      %2533 = vmatpush.bf16.msra.mxu0 %v347
      %2534 = vmatpush.bf16.msra.mxu0 %v346
      %2535 = vmatpush.bf16.msra.mxu0 %v345
      %2536 = vmatpush.bf16.msra.mxu0 %v344
      %2537 = vmatpush.bf16.msra.mxu0 %v343
      %2538 = vmatmul.bf16.gmra.mxu0 %v2525
      %v2539 = vpop.f32.mrf.mxu0
      %v2540 = vadd.f32 %v293, %v2539
      %v2541 = vpop.f32.mrf.mxu0
      %v2542 = vadd.f32 %v294, %v2541
      %2543 = vdwg.mxu0
      %2544 = vmatpush.bf16.msra.mxu0 0
      %2545 = vmatpush.bf16.msra.mxu0 0
      %2546 = vmatpush.bf16.msra.mxu0 0
      %2547 = vmatpush.bf16.msra.mxu0 0
      %2548 = vmatpush.bf16.msra.mxu0 %v354
      %2549 = vmatpush.bf16.msra.mxu0 %v353
      %2550 = vmatpush.bf16.msra.mxu0 %v352
      %2551 = vmatpush.bf16.msra.mxu0 %v351
      %2552 = vmatmul.bf16.gmra.mxu0 %v2528
      %v2553 = vpop.f32.mrf.mxu0
      %v2554 = vadd.f32 %v2540, %v2553
      %v2555 = vpop.f32.mrf.mxu0
      %v2556 = vadd.f32 %v2542, %v2555
      %2557 = vdwg.mxu0
      %v2558 = vadd.f32 %v2554, %v2451
      %v2559 = vadd.f32 %v2556, %v2451
      %v2560 = vtanh.pop %v2558
      %v2561 = vtanh.pop %v2559
      %v2562 = vpack.c.bf16 %v2561, %v2560
      %2563 = vmatpush.bf16.msra.mxu0 %v483
      %2564 = vmatpush.bf16.msra.mxu0 %v481
      %2565 = vmatpush.bf16.msra.mxu0 %v479
      %2566 = vmatpush.bf16.msra.mxu0 %v477
      %2567 = vmatpush.bf16.msra.mxu0 %v475
      %2568 = vmatpush.bf16.msra.mxu0 %v473
      %2569 = vmatpush.bf16.msra.mxu0 %v471
      %2570 = vmatpush.bf16.msra.mxu0 %v469
      %2571 = vmatmul.bf16.gmra.mxu0 %v2562
      %v2572 = vpop.f32.mrf.mxu0
      %v2573 = vadd.f32 0.0, %v2572
      %v2574 = vpop.f32.mrf.mxu0
      %v2575 = vadd.f32 0.0, %v2574
      %2576 = vdwg.mxu0
      %2577 = vmatpush.bf16.msra.mxu0 %v484
      %2578 = vmatpush.bf16.msra.mxu0 %v482
      %2579 = vmatpush.bf16.msra.mxu0 %v480
      %2580 = vmatpush.bf16.msra.mxu0 %v478
      %2581 = vmatpush.bf16.msra.mxu0 %v476
      %2582 = vmatpush.bf16.msra.mxu0 %v474
      %2583 = vmatpush.bf16.msra.mxu0 %v472
      %2584 = vmatpush.bf16.msra.mxu0 %v470
      %2585 = vmatmul.bf16.gmra.mxu0 %v2562
      %v2586 = vpop.f32.mrf.mxu0
      %v2587 = vadd.f32 0.0, %v2586
      %v2588 = vpop.f32.mrf.mxu0
      %v2589 = vadd.f32 0.0, %v2588
      %2590 = vdwg.mxu0
      %v2591 = vsub.f32 0.0, %v2573
      %v2592 = vsub.f32 0.0, %v2587
      %v2593 = vsub.f32 0.0, %v2575
      %v2594 = vsub.f32 0.0, %v2589
      %v2595 = vmul.f32 %v2591, 1.0206001
      %v2596 = vmul.f32 %v2592, 1.0206001
      %v2597 = vmul.f32 %v2593, 1.0206001
      %v2598 = vmul.f32 %v2594, 1.0206001
      %v2599 = vmul.f32 %v2521, -5.6474977
      %v2600 = vmul.f32 %v2522, -5.6474977
      %v2601 = vmul.f32 %v2523, -5.6474977
      %v2602 = vmul.f32 %v2524, -5.6474977
      %v2603 = vmul.f32 %v2595, 5.6474977
      %v2604 = vmul.f32 %v2596, 5.6474977
      %v2605 = vmul.f32 %v2597, 5.6474977
      %v2606 = vmul.f32 %v2598, 5.6474977
      %v2607 = vsub.f32 %v2599, %v2603
      %v2608 = vsub.f32 %v2600, %v2604
      %v2609 = vsub.f32 %v2601, %v2605
      %v2610 = vsub.f32 %v2602, %v2606
      %v2611 = vmul.f32 %v2595, %v2607
      %v2612 = vmul.f32 %v2596, %v2608
      %v2613 = vmul.f32 %v2597, %v2609
      %v2614 = vmul.f32 %v2598, %v2610
      %v2615 = vsel %vm367, %v2612, 0.0
      %v2616 = vadd.f32 %v2611, %v2615
      %2617 = vadd.xlane.f32.xlu0 %v2616
      %v2618 = vpop.xlane.xlu0 %2617
      %v2619 = vsel %vm367, %v2614, 0.0
      %v2620 = vadd.f32 %v2613, %v2619
      %2621 = vadd.xlane.f32.xlu0 %v2620
      %v2622 = vpop.xlane.xlu0 %2621
      %v2623 = vmul.f32 %v2607, 0.1249975
      %v2624 = vmul.f32 %v2608, 0.1249975
      %v2625 = vmul.f32 %v2609, 0.1249975
      %v2626 = vmul.f32 %v2610, 0.1249975
      %v2627 = vadd.f32 %v2293, %v2623
      %v2628 = vadd.f32 %v2294, %v2624
      %v2629 = vadd.f32 %v2295, %v2625
      %v2630 = vadd.f32 %v2296, %v2626
      %v2631 = vld [vmem:[%s4 + $0xa] sm:$0x1]
      %v2632 = vpack.c.bf16 %v2629, %v2627
      %v2633 = vpack.c.bf16 %v2630, %v2628
      %v2635 = vsel %vm367, %v2633, 0
      %2637 = vmatpush.bf16.msra.mxu0 %v350
      %2638 = vmatpush.bf16.msra.mxu0 %v349
      %2639 = vmatpush.bf16.msra.mxu0 %v348
      %2640 = vmatpush.bf16.msra.mxu0 %v347
      %2641 = vmatpush.bf16.msra.mxu0 %v346
      %2642 = vmatpush.bf16.msra.mxu0 %v345
      %2643 = vmatpush.bf16.msra.mxu0 %v344
      %2644 = vmatpush.bf16.msra.mxu0 %v343
      %2645 = vmatmul.bf16.gmra.mxu0 %v2632
      %v2646 = vpop.f32.mrf.mxu0
      %v2647 = vadd.f32 %v293, %v2646
      %v2648 = vpop.f32.mrf.mxu0
      %v2649 = vadd.f32 %v294, %v2648
      %2650 = vdwg.mxu0
      %2651 = vmatpush.bf16.msra.mxu0 0
      %2652 = vmatpush.bf16.msra.mxu0 0
      %2653 = vmatpush.bf16.msra.mxu0 0
      %2654 = vmatpush.bf16.msra.mxu0 0
      %2655 = vmatpush.bf16.msra.mxu0 %v354
      %2656 = vmatpush.bf16.msra.mxu0 %v353
      %2657 = vmatpush.bf16.msra.mxu0 %v352
      %2658 = vmatpush.bf16.msra.mxu0 %v351
      %2659 = vmatmul.bf16.gmra.mxu0 %v2635
      %v2660 = vpop.f32.mrf.mxu0
      %v2661 = vadd.f32 %v2647, %v2660
      %v2662 = vpop.f32.mrf.mxu0
      %v2663 = vadd.f32 %v2649, %v2662
      %2664 = vdwg.mxu0
      %v2665 = vperm.slane %v2631, 0
      %v2666 = vadd.f32 %v2661, %v2665
      %v2667 = vadd.f32 %v2663, %v2665
      %v2668 = vtanh.pop %v2666
      %v2669 = vtanh.pop %v2667
      %v2670 = vpack.c.bf16 %v2669, %v2668
      %2671 = vmatpush.bf16.msra.mxu0 %v483
      %2672 = vmatpush.bf16.msra.mxu0 %v481
      %2673 = vmatpush.bf16.msra.mxu0 %v479
      %2674 = vmatpush.bf16.msra.mxu0 %v477
      %2675 = vmatpush.bf16.msra.mxu0 %v475
      %2676 = vmatpush.bf16.msra.mxu0 %v473
      %2677 = vmatpush.bf16.msra.mxu0 %v471
      %2678 = vmatpush.bf16.msra.mxu0 %v469
      %2679 = vmatmul.bf16.gmra.mxu0 %v2670
      %v2680 = vpop.f32.mrf.mxu0
      %v2681 = vadd.f32 0.0, %v2680
      %v2682 = vpop.f32.mrf.mxu0
      %v2683 = vadd.f32 0.0, %v2682
      %2684 = vdwg.mxu0
      %2685 = vmatpush.bf16.msra.mxu0 %v484
      %2686 = vmatpush.bf16.msra.mxu0 %v482
      %2687 = vmatpush.bf16.msra.mxu0 %v480
      %2688 = vmatpush.bf16.msra.mxu0 %v478
      %2689 = vmatpush.bf16.msra.mxu0 %v476
      %2690 = vmatpush.bf16.msra.mxu0 %v474
      %2691 = vmatpush.bf16.msra.mxu0 %v472
      %2692 = vmatpush.bf16.msra.mxu0 %v470
      %2693 = vmatmul.bf16.gmra.mxu0 %v2670
      %v2694 = vpop.f32.mrf.mxu0
      %v2695 = vadd.f32 0.0, %v2694
      %v2696 = vpop.f32.mrf.mxu0
      %v2697 = vadd.f32 0.0, %v2696
      %2698 = vdwg.mxu0
      %v2699 = vsub.f32 0.0, %v2681
      %v2700 = vsub.f32 0.0, %v2695
      %v2701 = vsub.f32 0.0, %v2683
      %v2702 = vsub.f32 0.0, %v2697
      %v2703 = vmul.f32 %v2699, 1.0095133
      %v2704 = vmul.f32 %v2700, 1.0095133
      %v2705 = vmul.f32 %v2701, 1.0095133
      %v2706 = vmul.f32 %v2702, 1.0095133
      %v2707 = vmul.f32 %v2627, -6.274975
      %v2708 = vmul.f32 %v2628, -6.274975
      %v2709 = vmul.f32 %v2629, -6.274975
      %v2710 = vmul.f32 %v2630, -6.274975
      %v2711 = vmul.f32 %v2703, 6.274975
      %v2712 = vmul.f32 %v2704, 6.274975
      %v2713 = vmul.f32 %v2705, 6.274975
      %v2714 = vmul.f32 %v2706, 6.274975
      %v2715 = vsub.f32 %v2707, %v2711
      %v2716 = vsub.f32 %v2708, %v2712
      %v2717 = vsub.f32 %v2709, %v2713
      %v2718 = vsub.f32 %v2710, %v2714
      %v2719 = vmul.f32 %v2703, %v2715
      %v2720 = vmul.f32 %v2704, %v2716
      %v2721 = vmul.f32 %v2705, %v2717
      %v2722 = vmul.f32 %v2706, %v2718
      %v2723 = vsel %vm367, %v2720, 0.0
      %v2724 = vadd.f32 %v2719, %v2723
      %2725 = vadd.xlane.f32.xlu0 %v2724
      %v2726 = vpop.xlane.xlu0 %2725
      %v2727 = vsel %vm367, %v2722, 0.0
      %v2728 = vadd.f32 %v2721, %v2727
      %2729 = vadd.xlane.f32.xlu0 %v2728
      %v2730 = vpop.xlane.xlu0 %2729
      %v2731 = vmul.f32 %v2501, 2.0
      %v2732 = vmul.f32 %v2502, 2.0
      %v2733 = vmul.f32 %v2503, 2.0
      %v2734 = vmul.f32 %v2504, 2.0
      %v2735 = vadd.f32 %v2393, %v2731
      %v2736 = vadd.f32 %v2394, %v2732
      %v2737 = vadd.f32 %v2395, %v2733
      %v2738 = vadd.f32 %v2396, %v2734
      %v2739 = vmul.f32 %v2607, 2.0
      %v2740 = vmul.f32 %v2608, 2.0
      %v2741 = vmul.f32 %v2609, 2.0
      %v2742 = vmul.f32 %v2610, 2.0
      %v2743 = vadd.f32 %v2735, %v2739
      %v2744 = vadd.f32 %v2736, %v2740
      %v2745 = vadd.f32 %v2737, %v2741
      %v2746 = vadd.f32 %v2738, %v2742
      %v2747 = vadd.f32 %v2743, %v2715
      %v2748 = vadd.f32 %v2744, %v2716
      %v2749 = vadd.f32 %v2745, %v2717
      %v2750 = vadd.f32 %v2746, %v2718
      %v2751 = vmul.f32 %v2747, 0.020832917
      %v2752 = vmul.f32 %v2748, 0.020832917
      %v2753 = vmul.f32 %v2749, 0.020832917
      %v2754 = vmul.f32 %v2750, 0.020832917
      %v2755 = vadd.f32 %v2293, %v2751
      %v2756 = vadd.f32 %v2294, %v2752
      %v2757 = vadd.f32 %v2295, %v2753
      %v2758 = vadd.f32 %v2296, %v2754
      %v2759 = vmul.f32 %v2512, 2.0
      %v2760 = vmul.f32 %v2516, 2.0
      %v2761 = vadd.f32 %v2404, %v2759
      %v2762 = vadd.f32 %v2408, %v2760
      %v2763 = vmul.f32 %v2618, 2.0
      %v2764 = vmul.f32 %v2622, 2.0
      %v2765 = vadd.f32 %v2761, %v2763
      %v2766 = vadd.f32 %v2762, %v2764
      %v2767 = vadd.f32 %v2765, %v2726
      %v2768 = vadd.f32 %v2766, %v2730
      %v2769 = vmul.f32 %v2767, 0.020832917
      %v2770 = vmul.f32 %v2768, 0.020832917
      %v2771 = vadd.f32 %v2309, %v2769
      %v2772 = vadd.f32 %v2310, %v2770
      %v2773 = vpack.c.bf16 %v2757, %v2755
      %v2774 = vpack.c.bf16 %v2758, %v2756
      %v2776 = vsel %vm367, %v2774, 0
      %2778 = vmatpush.bf16.msra.mxu0 %v350
      %2779 = vmatpush.bf16.msra.mxu0 %v349
      %2780 = vmatpush.bf16.msra.mxu0 %v348
      %2781 = vmatpush.bf16.msra.mxu0 %v347
      %2782 = vmatpush.bf16.msra.mxu0 %v346
      %2783 = vmatpush.bf16.msra.mxu0 %v345
      %2784 = vmatpush.bf16.msra.mxu0 %v344
      %2785 = vmatpush.bf16.msra.mxu0 %v343
      %2786 = vmatmul.bf16.gmra.mxu0 %v2773
      %v2787 = vpop.f32.mrf.mxu0
      %v2788 = vadd.f32 %v293, %v2787
      %v2789 = vpop.f32.mrf.mxu0
      %v2790 = vadd.f32 %v294, %v2789
      %2791 = vdwg.mxu0
      %2792 = vmatpush.bf16.msra.mxu0 0
      %2793 = vmatpush.bf16.msra.mxu0 0
      %2794 = vmatpush.bf16.msra.mxu0 0
      %2795 = vmatpush.bf16.msra.mxu0 0
      %2796 = vmatpush.bf16.msra.mxu0 %v354
      %2797 = vmatpush.bf16.msra.mxu0 %v353
      %2798 = vmatpush.bf16.msra.mxu0 %v352
      %2799 = vmatpush.bf16.msra.mxu0 %v351
      %2800 = vmatmul.bf16.gmra.mxu0 %v2776
      %v2801 = vpop.f32.mrf.mxu0
      %v2802 = vadd.f32 %v2788, %v2801
      %v2803 = vpop.f32.mrf.mxu0
      %v2804 = vadd.f32 %v2790, %v2803
      %2805 = vdwg.mxu0
      %v2806 = vadd.f32 %v2802, %v2665
      %v2807 = vadd.f32 %v2804, %v2665
      %v2808 = vtanh.pop %v2806
      %v2809 = vtanh.pop %v2807
      %v2810 = vpack.c.bf16 %v2809, %v2808
      %2811 = vmatpush.bf16.msra.mxu0 %v483
      %2812 = vmatpush.bf16.msra.mxu0 %v481
      %2813 = vmatpush.bf16.msra.mxu0 %v479
      %2814 = vmatpush.bf16.msra.mxu0 %v477
      %2815 = vmatpush.bf16.msra.mxu0 %v475
      %2816 = vmatpush.bf16.msra.mxu0 %v473
      %2817 = vmatpush.bf16.msra.mxu0 %v471
      %2818 = vmatpush.bf16.msra.mxu0 %v469
      %2819 = vmatmul.bf16.gmra.mxu0 %v2810
      %v2820 = vpop.f32.mrf.mxu0
      %v2821 = vadd.f32 0.0, %v2820
      %v2822 = vpop.f32.mrf.mxu0
      %v2823 = vadd.f32 0.0, %v2822
      %2824 = vdwg.mxu0
      %2825 = vmatpush.bf16.msra.mxu0 %v484
      %2826 = vmatpush.bf16.msra.mxu0 %v482
      %2827 = vmatpush.bf16.msra.mxu0 %v480
      %2828 = vmatpush.bf16.msra.mxu0 %v478
      %2829 = vmatpush.bf16.msra.mxu0 %v476
      %2830 = vmatpush.bf16.msra.mxu0 %v474
      %2831 = vmatpush.bf16.msra.mxu0 %v472
      %2832 = vmatpush.bf16.msra.mxu0 %v470
      %2833 = vmatmul.bf16.gmra.mxu0 %v2810
      %v2834 = vpop.f32.mrf.mxu0
      %v2835 = vadd.f32 0.0, %v2834
      %v2836 = vpop.f32.mrf.mxu0
      %v2837 = vadd.f32 0.0, %v2836
      %2838 = vdwg.mxu0
      %v2839 = vsub.f32 0.0, %v2821
      %v2840 = vsub.f32 0.0, %v2835
      %v2841 = vsub.f32 0.0, %v2823
      %v2842 = vsub.f32 0.0, %v2837
      %v2843 = vmul.f32 %v2839, 1.0095133
      %v2844 = vmul.f32 %v2840, 1.0095133
      %v2845 = vmul.f32 %v2841, 1.0095133
      %v2846 = vmul.f32 %v2842, 1.0095133
      %v2847 = vmul.f32 %v2755, -6.274975
      %v2848 = vmul.f32 %v2756, -6.274975
      %v2849 = vmul.f32 %v2757, -6.274975
      %v2850 = vmul.f32 %v2758, -6.274975
      %v2851 = vmul.f32 %v2843, 6.274975
      %v2852 = vmul.f32 %v2844, 6.274975
      %v2853 = vmul.f32 %v2845, 6.274975
      %v2854 = vmul.f32 %v2846, 6.274975
      %v2855 = vsub.f32 %v2847, %v2851
      %v2856 = vsub.f32 %v2848, %v2852
      %v2857 = vsub.f32 %v2849, %v2853
      %v2858 = vsub.f32 %v2850, %v2854
      %v2859 = vmul.f32 %v2843, %v2855
      %v2860 = vmul.f32 %v2844, %v2856
      %v2861 = vmul.f32 %v2845, %v2857
      %v2862 = vmul.f32 %v2846, %v2858
      %v2863 = vsel %vm367, %v2860, 0.0
      %v2864 = vadd.f32 %v2859, %v2863
      %2865 = vadd.xlane.f32.xlu0 %v2864
      %v2866 = vpop.xlane.xlu0 %2865
      %v2867 = vsel %vm367, %v2862, 0.0
      %v2868 = vadd.f32 %v2861, %v2867
      %2869 = vadd.xlane.f32.xlu0 %v2868
      %v2870 = vpop.xlane.xlu0 %2869
      %v2871 = vmul.f32 %v2855, 0.06249875
      %v2872 = vmul.f32 %v2856, 0.06249875
      %v2873 = vmul.f32 %v2857, 0.06249875
      %v2874 = vmul.f32 %v2858, 0.06249875
      %v2875 = vadd.f32 %v2755, %v2871
      %v2876 = vadd.f32 %v2756, %v2872
      %v2877 = vadd.f32 %v2757, %v2873
      %v2878 = vadd.f32 %v2758, %v2874
      %v2879 = vld [vmem:[%s4 + $0xb] sm:$0x1]
      %v2880 = vpack.c.bf16 %v2877, %v2875
      %v2881 = vpack.c.bf16 %v2878, %v2876
      %v2883 = vsel %vm367, %v2881, 0
      %2885 = vmatpush.bf16.msra.mxu0 %v350
      %2886 = vmatpush.bf16.msra.mxu0 %v349
      %2887 = vmatpush.bf16.msra.mxu0 %v348
      %2888 = vmatpush.bf16.msra.mxu0 %v347
      %2889 = vmatpush.bf16.msra.mxu0 %v346
      %2890 = vmatpush.bf16.msra.mxu0 %v345
      %2891 = vmatpush.bf16.msra.mxu0 %v344
      %2892 = vmatpush.bf16.msra.mxu0 %v343
      %2893 = vmatmul.bf16.gmra.mxu0 %v2880
      %v2894 = vpop.f32.mrf.mxu0
      %v2895 = vadd.f32 %v293, %v2894
      %v2896 = vpop.f32.mrf.mxu0
      %v2897 = vadd.f32 %v294, %v2896
      %2898 = vdwg.mxu0
      %2899 = vmatpush.bf16.msra.mxu0 0
      %2900 = vmatpush.bf16.msra.mxu0 0
      %2901 = vmatpush.bf16.msra.mxu0 0
      %2902 = vmatpush.bf16.msra.mxu0 0
      %2903 = vmatpush.bf16.msra.mxu0 %v354
      %2904 = vmatpush.bf16.msra.mxu0 %v353
      %2905 = vmatpush.bf16.msra.mxu0 %v352
      %2906 = vmatpush.bf16.msra.mxu0 %v351
      %2907 = vmatmul.bf16.gmra.mxu0 %v2883
      %v2908 = vpop.f32.mrf.mxu0
      %v2909 = vadd.f32 %v2895, %v2908
      %v2910 = vpop.f32.mrf.mxu0
      %v2911 = vadd.f32 %v2897, %v2910
      %2912 = vdwg.mxu0
      %v2913 = vperm.slane %v2879, 0
      %v2914 = vadd.f32 %v2909, %v2913
      %v2915 = vadd.f32 %v2911, %v2913
      %v2916 = vtanh.pop %v2914
      %v2917 = vtanh.pop %v2915
      %v2918 = vpack.c.bf16 %v2917, %v2916
      %2919 = vmatpush.bf16.msra.mxu0 %v483
      %2920 = vmatpush.bf16.msra.mxu0 %v481
      %2921 = vmatpush.bf16.msra.mxu0 %v479
      %2922 = vmatpush.bf16.msra.mxu0 %v477
      %2923 = vmatpush.bf16.msra.mxu0 %v475
      %2924 = vmatpush.bf16.msra.mxu0 %v473
      %2925 = vmatpush.bf16.msra.mxu0 %v471
      %2926 = vmatpush.bf16.msra.mxu0 %v469
      %2927 = vmatmul.bf16.gmra.mxu0 %v2918
      %v2928 = vpop.f32.mrf.mxu0
      %v2929 = vadd.f32 0.0, %v2928
      %v2930 = vpop.f32.mrf.mxu0
      %v2931 = vadd.f32 0.0, %v2930
      %2932 = vdwg.mxu0
      %2933 = vmatpush.bf16.msra.mxu0 %v484
      %2934 = vmatpush.bf16.msra.mxu0 %v482
      %2935 = vmatpush.bf16.msra.mxu0 %v480
      %2936 = vmatpush.bf16.msra.mxu0 %v478
      %2937 = vmatpush.bf16.msra.mxu0 %v476
      %2938 = vmatpush.bf16.msra.mxu0 %v474
      %2939 = vmatpush.bf16.msra.mxu0 %v472
      %2940 = vmatpush.bf16.msra.mxu0 %v470
      %2941 = vmatmul.bf16.gmra.mxu0 %v2918
      %v2942 = vpop.f32.mrf.mxu0
      %v2943 = vadd.f32 0.0, %v2942
      %v2944 = vpop.f32.mrf.mxu0
      %v2945 = vadd.f32 0.0, %v2944
      %2946 = vdwg.mxu0
      %v2947 = vsub.f32 0.0, %v2929
      %v2948 = vsub.f32 0.0, %v2943
      %v2949 = vsub.f32 0.0, %v2931
      %v2950 = vsub.f32 0.0, %v2945
      %v2951 = vmul.f32 %v2947, 1.0041465
      %v2952 = vmul.f32 %v2948, 1.0041465
      %v2953 = vmul.f32 %v2949, 1.0041465
      %v2954 = vmul.f32 %v2950, 1.0041465
      %v2955 = vmul.f32 %v2875, -6.8924923
      %v2956 = vmul.f32 %v2876, -6.8924923
      %v2957 = vmul.f32 %v2877, -6.8924923
      %v2958 = vmul.f32 %v2878, -6.8924923
      %v2959 = vmul.f32 %v2951, 6.8924923
      %v2960 = vmul.f32 %v2952, 6.8924923
      %v2961 = vmul.f32 %v2953, 6.8924923
      %v2962 = vmul.f32 %v2954, 6.8924923
      %v2963 = vsub.f32 %v2955, %v2959
      %v2964 = vsub.f32 %v2956, %v2960
      %v2965 = vsub.f32 %v2957, %v2961
      %v2966 = vsub.f32 %v2958, %v2962
      %v2967 = vmul.f32 %v2951, %v2963
      %v2968 = vmul.f32 %v2952, %v2964
      %v2969 = vmul.f32 %v2953, %v2965
      %v2970 = vmul.f32 %v2954, %v2966
      %v2971 = vsel %vm367, %v2968, 0.0
      %v2972 = vadd.f32 %v2967, %v2971
      %2973 = vadd.xlane.f32.xlu0 %v2972
      %v2974 = vpop.xlane.xlu0 %2973
      %v2975 = vsel %vm367, %v2970, 0.0
      %v2976 = vadd.f32 %v2969, %v2975
      %2977 = vadd.xlane.f32.xlu0 %v2976
      %v2978 = vpop.xlane.xlu0 %2977
      %v2979 = vmul.f32 %v2963, 0.06249875
      %v2980 = vmul.f32 %v2964, 0.06249875
      %v2981 = vmul.f32 %v2965, 0.06249875
      %v2982 = vmul.f32 %v2966, 0.06249875
      %v2983 = vadd.f32 %v2755, %v2979
      %v2984 = vadd.f32 %v2756, %v2980
      %v2985 = vadd.f32 %v2757, %v2981
      %v2986 = vadd.f32 %v2758, %v2982
      %v2987 = vpack.c.bf16 %v2985, %v2983
      %v2988 = vpack.c.bf16 %v2986, %v2984
      %v2990 = vsel %vm367, %v2988, 0
      %2992 = vmatpush.bf16.msra.mxu0 %v350
      %2993 = vmatpush.bf16.msra.mxu0 %v349
      %2994 = vmatpush.bf16.msra.mxu0 %v348
      %2995 = vmatpush.bf16.msra.mxu0 %v347
      %2996 = vmatpush.bf16.msra.mxu0 %v346
      %2997 = vmatpush.bf16.msra.mxu0 %v345
      %2998 = vmatpush.bf16.msra.mxu0 %v344
      %2999 = vmatpush.bf16.msra.mxu0 %v343
      %3000 = vmatmul.bf16.gmra.mxu0 %v2987
      %v3001 = vpop.f32.mrf.mxu0
      %v3002 = vadd.f32 %v293, %v3001
      %v3003 = vpop.f32.mrf.mxu0
      %v3004 = vadd.f32 %v294, %v3003
      %3005 = vdwg.mxu0
      %3006 = vmatpush.bf16.msra.mxu0 0
      %3007 = vmatpush.bf16.msra.mxu0 0
      %3008 = vmatpush.bf16.msra.mxu0 0
      %3009 = vmatpush.bf16.msra.mxu0 0
      %3010 = vmatpush.bf16.msra.mxu0 %v354
      %3011 = vmatpush.bf16.msra.mxu0 %v353
      %3012 = vmatpush.bf16.msra.mxu0 %v352
      %3013 = vmatpush.bf16.msra.mxu0 %v351
      %3014 = vmatmul.bf16.gmra.mxu0 %v2990
      %v3015 = vpop.f32.mrf.mxu0
      %v3016 = vadd.f32 %v3002, %v3015
      %v3017 = vpop.f32.mrf.mxu0
      %v3018 = vadd.f32 %v3004, %v3017
      %3019 = vdwg.mxu0
      %v3020 = vadd.f32 %v3016, %v2913
      %v3021 = vadd.f32 %v3018, %v2913
      %v3022 = vtanh.pop %v3020
      %v3023 = vtanh.pop %v3021
      %v3024 = vpack.c.bf16 %v3023, %v3022
      %3025 = vmatpush.bf16.msra.mxu0 %v483
      %3026 = vmatpush.bf16.msra.mxu0 %v481
      %3027 = vmatpush.bf16.msra.mxu0 %v479
      %3028 = vmatpush.bf16.msra.mxu0 %v477
      %3029 = vmatpush.bf16.msra.mxu0 %v475
      %3030 = vmatpush.bf16.msra.mxu0 %v473
      %3031 = vmatpush.bf16.msra.mxu0 %v471
      %3032 = vmatpush.bf16.msra.mxu0 %v469
      %3033 = vmatmul.bf16.gmra.mxu0 %v3024
      %v3034 = vpop.f32.mrf.mxu0
      %v3035 = vadd.f32 0.0, %v3034
      %v3036 = vpop.f32.mrf.mxu0
      %v3037 = vadd.f32 0.0, %v3036
      %3038 = vdwg.mxu0
      %3039 = vmatpush.bf16.msra.mxu0 %v484
      %3040 = vmatpush.bf16.msra.mxu0 %v482
      %3041 = vmatpush.bf16.msra.mxu0 %v480
      %3042 = vmatpush.bf16.msra.mxu0 %v478
      %3043 = vmatpush.bf16.msra.mxu0 %v476
      %3044 = vmatpush.bf16.msra.mxu0 %v474
      %3045 = vmatpush.bf16.msra.mxu0 %v472
      %3046 = vmatpush.bf16.msra.mxu0 %v470
      %3047 = vmatmul.bf16.gmra.mxu0 %v3024
      %v3048 = vpop.f32.mrf.mxu0
      %v3049 = vadd.f32 0.0, %v3048
      %v3050 = vpop.f32.mrf.mxu0
      %v3051 = vadd.f32 0.0, %v3050
      %3052 = vdwg.mxu0
      %v3053 = vsub.f32 0.0, %v3035
      %v3054 = vsub.f32 0.0, %v3049
      %v3055 = vsub.f32 0.0, %v3037
      %v3056 = vsub.f32 0.0, %v3051
      %v3057 = vmul.f32 %v3053, 1.0041465
      %v3058 = vmul.f32 %v3054, 1.0041465
      %v3059 = vmul.f32 %v3055, 1.0041465
      %v3060 = vmul.f32 %v3056, 1.0041465
      %v3061 = vmul.f32 %v2983, -6.8924923
      %v3062 = vmul.f32 %v2984, -6.8924923
      %v3063 = vmul.f32 %v2985, -6.8924923
      %v3064 = vmul.f32 %v2986, -6.8924923
      %v3065 = vmul.f32 %v3057, 6.8924923
      %v3066 = vmul.f32 %v3058, 6.8924923
      %v3067 = vmul.f32 %v3059, 6.8924923
      %v3068 = vmul.f32 %v3060, 6.8924923
      %v3069 = vsub.f32 %v3061, %v3065
      %v3070 = vsub.f32 %v3062, %v3066
      %v3071 = vsub.f32 %v3063, %v3067
      %v3072 = vsub.f32 %v3064, %v3068
      %v3073 = vmul.f32 %v3057, %v3069
      %v3074 = vmul.f32 %v3058, %v3070
      %v3075 = vmul.f32 %v3059, %v3071
      %v3076 = vmul.f32 %v3060, %v3072
      %v3077 = vsel %vm367, %v3074, 0.0
      %v3078 = vadd.f32 %v3073, %v3077
      %3079 = vadd.xlane.f32.xlu0 %v3078
      %v3080 = vpop.xlane.xlu0 %3079
      %v3081 = vsel %vm367, %v3076, 0.0
      %v3082 = vadd.f32 %v3075, %v3081
      %3083 = vadd.xlane.f32.xlu0 %v3082
      %v3084 = vpop.xlane.xlu0 %3083
      %v3085 = vmul.f32 %v3069, 0.1249975
      %v3086 = vmul.f32 %v3070, 0.1249975
      %v3087 = vmul.f32 %v3071, 0.1249975
      %v3088 = vmul.f32 %v3072, 0.1249975
      %v3089 = vadd.f32 %v2755, %v3085
      %v3090 = vadd.f32 %v2756, %v3086
      %v3091 = vadd.f32 %v2757, %v3087
      %v3092 = vadd.f32 %v2758, %v3088
      %v3093 = vld [vmem:[%s4 + $0xc] sm:$0x1]
      %v3094 = vpack.c.bf16 %v3091, %v3089
      %v3095 = vpack.c.bf16 %v3092, %v3090
      %v3097 = vsel %vm367, %v3095, 0
      %3099 = vmatpush.bf16.msra.mxu0 %v350
      %3100 = vmatpush.bf16.msra.mxu0 %v349
      %3101 = vmatpush.bf16.msra.mxu0 %v348
      %3102 = vmatpush.bf16.msra.mxu0 %v347
      %3103 = vmatpush.bf16.msra.mxu0 %v346
      %3104 = vmatpush.bf16.msra.mxu0 %v345
      %3105 = vmatpush.bf16.msra.mxu0 %v344
      %3106 = vmatpush.bf16.msra.mxu0 %v343
      %3107 = vmatmul.bf16.gmra.mxu0 %v3094
      %v3108 = vpop.f32.mrf.mxu0
      %v3109 = vadd.f32 %v293, %v3108
      %v3110 = vpop.f32.mrf.mxu0
      %v3111 = vadd.f32 %v294, %v3110
      %3112 = vdwg.mxu0
      %3113 = vmatpush.bf16.msra.mxu0 0
      %3114 = vmatpush.bf16.msra.mxu0 0
      %3115 = vmatpush.bf16.msra.mxu0 0
      %3116 = vmatpush.bf16.msra.mxu0 0
      %3117 = vmatpush.bf16.msra.mxu0 %v354
      %3118 = vmatpush.bf16.msra.mxu0 %v353
      %3119 = vmatpush.bf16.msra.mxu0 %v352
      %3120 = vmatpush.bf16.msra.mxu0 %v351
      %3121 = vmatmul.bf16.gmra.mxu0 %v3097
      %v3122 = vpop.f32.mrf.mxu0
      %v3123 = vadd.f32 %v3109, %v3122
      %v3124 = vpop.f32.mrf.mxu0
      %v3125 = vadd.f32 %v3111, %v3124
      %3126 = vdwg.mxu0
      %v3127 = vperm.slane %v3093, 0
      %v3128 = vadd.f32 %v3123, %v3127
      %v3129 = vadd.f32 %v3125, %v3127
      %v3130 = vtanh.pop %v3128
      %v3131 = vtanh.pop %v3129
      %v3132 = vpack.c.bf16 %v3131, %v3130
      %3133 = vmatpush.bf16.msra.mxu0 %v483
      %3134 = vmatpush.bf16.msra.mxu0 %v481
      %3135 = vmatpush.bf16.msra.mxu0 %v479
      %3136 = vmatpush.bf16.msra.mxu0 %v477
      %3137 = vmatpush.bf16.msra.mxu0 %v475
      %3138 = vmatpush.bf16.msra.mxu0 %v473
      %3139 = vmatpush.bf16.msra.mxu0 %v471
      %3140 = vmatpush.bf16.msra.mxu0 %v469
      %3141 = vmatmul.bf16.gmra.mxu0 %v3132
      %v3142 = vpop.f32.mrf.mxu0
      %v3143 = vadd.f32 0.0, %v3142
      %v3144 = vpop.f32.mrf.mxu0
      %v3145 = vadd.f32 0.0, %v3144
      %3146 = vdwg.mxu0
      %3147 = vmatpush.bf16.msra.mxu0 %v484
      %3148 = vmatpush.bf16.msra.mxu0 %v482
      %3149 = vmatpush.bf16.msra.mxu0 %v480
      %3150 = vmatpush.bf16.msra.mxu0 %v478
      %3151 = vmatpush.bf16.msra.mxu0 %v476
      %3152 = vmatpush.bf16.msra.mxu0 %v474
      %3153 = vmatpush.bf16.msra.mxu0 %v472
      %3154 = vmatpush.bf16.msra.mxu0 %v470
      %3155 = vmatmul.bf16.gmra.mxu0 %v3132
      %v3156 = vpop.f32.mrf.mxu0
      %v3157 = vadd.f32 0.0, %v3156
      %v3158 = vpop.f32.mrf.mxu0
      %v3159 = vadd.f32 0.0, %v3158
      %3160 = vdwg.mxu0
      %v3161 = vsub.f32 0.0, %v3143
      %v3162 = vsub.f32 0.0, %v3157
      %v3163 = vsub.f32 0.0, %v3145
      %v3164 = vsub.f32 0.0, %v3159
      %v3165 = vmul.f32 %v3161, 1.0016541
      %v3166 = vmul.f32 %v3162, 1.0016541
      %v3167 = vmul.f32 %v3163, 1.0016541
      %v3168 = vmul.f32 %v3164, 1.0016541
      %v3169 = vmul.f32 %v3089, -7.51997
      %v3170 = vmul.f32 %v3090, -7.51997
      %v3171 = vmul.f32 %v3091, -7.51997
      %v3172 = vmul.f32 %v3092, -7.51997
      %v3173 = vmul.f32 %v3165, 7.51997
      %v3174 = vmul.f32 %v3166, 7.51997
      %v3175 = vmul.f32 %v3167, 7.51997
      %v3176 = vmul.f32 %v3168, 7.51997
      %v3177 = vsub.f32 %v3169, %v3173
      %v3178 = vsub.f32 %v3170, %v3174
      %v3179 = vsub.f32 %v3171, %v3175
      %v3180 = vsub.f32 %v3172, %v3176
      %v3181 = vmul.f32 %v3165, %v3177
      %v3182 = vmul.f32 %v3166, %v3178
      %v3183 = vmul.f32 %v3167, %v3179
      %v3184 = vmul.f32 %v3168, %v3180
      %v3185 = vsel %vm367, %v3182, 0.0
      %v3186 = vadd.f32 %v3181, %v3185
      %3187 = vadd.xlane.f32.xlu0 %v3186
      %v3188 = vpop.xlane.xlu0 %3187
      %v3189 = vsel %vm367, %v3184, 0.0
      %v3190 = vadd.f32 %v3183, %v3189
      %3191 = vadd.xlane.f32.xlu0 %v3190
      %v3192 = vpop.xlane.xlu0 %3191
      %v3193 = vmul.f32 %v2963, 2.0
      %v3194 = vmul.f32 %v2964, 2.0
      %v3195 = vmul.f32 %v2965, 2.0
      %v3196 = vmul.f32 %v2966, 2.0
      %v3197 = vadd.f32 %v2855, %v3193
      %v3198 = vadd.f32 %v2856, %v3194
      %v3199 = vadd.f32 %v2857, %v3195
      %v3200 = vadd.f32 %v2858, %v3196
      %v3201 = vmul.f32 %v3069, 2.0
      %v3202 = vmul.f32 %v3070, 2.0
      %v3203 = vmul.f32 %v3071, 2.0
      %v3204 = vmul.f32 %v3072, 2.0
      %v3205 = vadd.f32 %v3197, %v3201
      %v3206 = vadd.f32 %v3198, %v3202
      %v3207 = vadd.f32 %v3199, %v3203
      %v3208 = vadd.f32 %v3200, %v3204
      %v3209 = vadd.f32 %v3205, %v3177
      %v3210 = vadd.f32 %v3206, %v3178
      %v3211 = vadd.f32 %v3207, %v3179
      %v3212 = vadd.f32 %v3208, %v3180
      %v3213 = vmul.f32 %v3209, 0.020832917
      %v3214 = vmul.f32 %v3210, 0.020832917
      %v3215 = vmul.f32 %v3211, 0.020832917
      %v3216 = vmul.f32 %v3212, 0.020832917
      %v3217 = vadd.f32 %v2755, %v3213
      %v3218 = vadd.f32 %v2756, %v3214
      %v3219 = vadd.f32 %v2757, %v3215
      %v3220 = vadd.f32 %v2758, %v3216
      %v3221 = vmul.f32 %v2974, 2.0
      %v3222 = vmul.f32 %v2978, 2.0
      %v3223 = vadd.f32 %v2866, %v3221
      %v3224 = vadd.f32 %v2870, %v3222
      %v3225 = vmul.f32 %v3080, 2.0
      %v3226 = vmul.f32 %v3084, 2.0
      %v3227 = vadd.f32 %v3223, %v3225
      %v3228 = vadd.f32 %v3224, %v3226
      %v3229 = vadd.f32 %v3227, %v3188
      %v3230 = vadd.f32 %v3228, %v3192
      %v3231 = vmul.f32 %v3229, 0.020832917
      %v3232 = vmul.f32 %v3230, 0.020832917
      %v3233 = vadd.f32 %v2771, %v3231
      %v3234 = vadd.f32 %v2772, %v3232
      %v3235 = vpack.c.bf16 %v3219, %v3217
      %v3236 = vpack.c.bf16 %v3220, %v3218
      %v3238 = vsel %vm367, %v3236, 0
      %3240 = vmatpush.bf16.msra.mxu0 %v350
      %3241 = vmatpush.bf16.msra.mxu0 %v349
      %3242 = vmatpush.bf16.msra.mxu0 %v348
      %3243 = vmatpush.bf16.msra.mxu0 %v347
      %3244 = vmatpush.bf16.msra.mxu0 %v346
      %3245 = vmatpush.bf16.msra.mxu0 %v345
      %3246 = vmatpush.bf16.msra.mxu0 %v344
      %3247 = vmatpush.bf16.msra.mxu0 %v343
      %3248 = vmatmul.bf16.gmra.mxu0 %v3235
      %v3249 = vpop.f32.mrf.mxu0
      %v3250 = vadd.f32 %v293, %v3249
      %v3251 = vpop.f32.mrf.mxu0
      %v3252 = vadd.f32 %v294, %v3251
      %3253 = vdwg.mxu0
      %3254 = vmatpush.bf16.msra.mxu0 0
      %3255 = vmatpush.bf16.msra.mxu0 0
      %3256 = vmatpush.bf16.msra.mxu0 0
      %3257 = vmatpush.bf16.msra.mxu0 0
      %3258 = vmatpush.bf16.msra.mxu0 %v354
      %3259 = vmatpush.bf16.msra.mxu0 %v353
      %3260 = vmatpush.bf16.msra.mxu0 %v352
      %3261 = vmatpush.bf16.msra.mxu0 %v351
      %3262 = vmatmul.bf16.gmra.mxu0 %v3238
      %v3263 = vpop.f32.mrf.mxu0
      %v3264 = vadd.f32 %v3250, %v3263
      %v3265 = vpop.f32.mrf.mxu0
      %v3266 = vadd.f32 %v3252, %v3265
      %3267 = vdwg.mxu0
      %v3268 = vadd.f32 %v3264, %v3127
      %v3269 = vadd.f32 %v3266, %v3127
      %v3270 = vtanh.pop %v3268
      %v3271 = vtanh.pop %v3269
      %v3272 = vpack.c.bf16 %v3271, %v3270
      %3273 = vmatpush.bf16.msra.mxu0 %v483
      %3274 = vmatpush.bf16.msra.mxu0 %v481
      %3275 = vmatpush.bf16.msra.mxu0 %v479
      %3276 = vmatpush.bf16.msra.mxu0 %v477
      %3277 = vmatpush.bf16.msra.mxu0 %v475
      %3278 = vmatpush.bf16.msra.mxu0 %v473
      %3279 = vmatpush.bf16.msra.mxu0 %v471
      %3280 = vmatpush.bf16.msra.mxu0 %v469
      %3281 = vmatmul.bf16.gmra.mxu0 %v3272
      %v3282 = vpop.f32.mrf.mxu0
      %v3283 = vadd.f32 0.0, %v3282
      %v3284 = vpop.f32.mrf.mxu0
      %v3285 = vadd.f32 0.0, %v3284
      %3286 = vdwg.mxu0
      %3287 = vmatpush.bf16.msra.mxu0 %v484
      %3288 = vmatpush.bf16.msra.mxu0 %v482
      %3289 = vmatpush.bf16.msra.mxu0 %v480
      %3290 = vmatpush.bf16.msra.mxu0 %v478
      %3291 = vmatpush.bf16.msra.mxu0 %v476
      %3292 = vmatpush.bf16.msra.mxu0 %v474
      %3293 = vmatpush.bf16.msra.mxu0 %v472
      %3294 = vmatpush.bf16.msra.mxu0 %v470
      %3295 = vmatmul.bf16.gmra.mxu0 %v3272
      %v3296 = vpop.f32.mrf.mxu0
      %v3297 = vadd.f32 0.0, %v3296
      %v3298 = vpop.f32.mrf.mxu0
      %v3299 = vadd.f32 0.0, %v3298
      %3300 = vdwg.mxu0
      %v3301 = vsub.f32 0.0, %v3283
      %v3302 = vsub.f32 0.0, %v3297
      %v3303 = vsub.f32 0.0, %v3285
      %v3304 = vsub.f32 0.0, %v3299
      %v3305 = vmul.f32 %v3301, 1.0016541
      %v3306 = vmul.f32 %v3302, 1.0016541
      %v3307 = vmul.f32 %v3303, 1.0016541
      %v3308 = vmul.f32 %v3304, 1.0016541
      %v3309 = vmul.f32 %v3217, -7.51997
      %v3310 = vmul.f32 %v3218, -7.51997
      %v3311 = vmul.f32 %v3219, -7.51997
      %v3312 = vmul.f32 %v3220, -7.51997
      %v3313 = vmul.f32 %v3305, 7.51997
      %v3314 = vmul.f32 %v3306, 7.51997
      %v3315 = vmul.f32 %v3307, 7.51997
      %v3316 = vmul.f32 %v3308, 7.51997
      %v3317 = vsub.f32 %v3309, %v3313
      %v3318 = vsub.f32 %v3310, %v3314
      %v3319 = vsub.f32 %v3311, %v3315
      %v3320 = vsub.f32 %v3312, %v3316
      %v3321 = vmul.f32 %v3305, %v3317
      %v3322 = vmul.f32 %v3306, %v3318
      %v3323 = vmul.f32 %v3307, %v3319
      %v3324 = vmul.f32 %v3308, %v3320
      %v3325 = vsel %vm367, %v3322, 0.0
      %v3326 = vadd.f32 %v3321, %v3325
      %3327 = vadd.xlane.f32.xlu0 %v3326
      %v3328 = vpop.xlane.xlu0 %3327
      %v3329 = vsel %vm367, %v3324, 0.0
      %v3330 = vadd.f32 %v3323, %v3329
      %3331 = vadd.xlane.f32.xlu0 %v3330
      %v3332 = vpop.xlane.xlu0 %3331
      %v3333 = vmul.f32 %v3317, 0.06249875
      %v3334 = vmul.f32 %v3318, 0.06249875
      %v3335 = vmul.f32 %v3319, 0.06249875
      %v3336 = vmul.f32 %v3320, 0.06249875
      %v3337 = vadd.f32 %v3217, %v3333
      %v3338 = vadd.f32 %v3218, %v3334
      %v3339 = vadd.f32 %v3219, %v3335
      %v3340 = vadd.f32 %v3220, %v3336
      %v3341 = vld [vmem:[%s4 + $0xd] sm:$0x1]
      %v3342 = vpack.c.bf16 %v3339, %v3337
      %v3343 = vpack.c.bf16 %v3340, %v3338
      %v3345 = vsel %vm367, %v3343, 0
      %3347 = vmatpush.bf16.msra.mxu0 %v350
      %3348 = vmatpush.bf16.msra.mxu0 %v349
      %3349 = vmatpush.bf16.msra.mxu0 %v348
      %3350 = vmatpush.bf16.msra.mxu0 %v347
      %3351 = vmatpush.bf16.msra.mxu0 %v346
      %3352 = vmatpush.bf16.msra.mxu0 %v345
      %3353 = vmatpush.bf16.msra.mxu0 %v344
      %3354 = vmatpush.bf16.msra.mxu0 %v343
      %3355 = vmatmul.bf16.gmra.mxu0 %v3342
      %v3356 = vpop.f32.mrf.mxu0
      %v3357 = vadd.f32 %v293, %v3356
      %v3358 = vpop.f32.mrf.mxu0
      %v3359 = vadd.f32 %v294, %v3358
      %3360 = vdwg.mxu0
      %3361 = vmatpush.bf16.msra.mxu0 0
      %3362 = vmatpush.bf16.msra.mxu0 0
      %3363 = vmatpush.bf16.msra.mxu0 0
      %3364 = vmatpush.bf16.msra.mxu0 0
      %3365 = vmatpush.bf16.msra.mxu0 %v354
      %3366 = vmatpush.bf16.msra.mxu0 %v353
      %3367 = vmatpush.bf16.msra.mxu0 %v352
      %3368 = vmatpush.bf16.msra.mxu0 %v351
      %3369 = vmatmul.bf16.gmra.mxu0 %v3345
      %v3370 = vpop.f32.mrf.mxu0
      %v3371 = vadd.f32 %v3357, %v3370
      %v3372 = vpop.f32.mrf.mxu0
      %v3373 = vadd.f32 %v3359, %v3372
      %3374 = vdwg.mxu0
      %v3375 = vperm.slane %v3341, 0
      %v3376 = vadd.f32 %v3371, %v3375
      %v3377 = vadd.f32 %v3373, %v3375
      %v3378 = vtanh.pop %v3376
      %v3379 = vtanh.pop %v3377
      %v3380 = vpack.c.bf16 %v3379, %v3378
      %3381 = vmatpush.bf16.msra.mxu0 %v483
      %3382 = vmatpush.bf16.msra.mxu0 %v481
      %3383 = vmatpush.bf16.msra.mxu0 %v479
      %3384 = vmatpush.bf16.msra.mxu0 %v477
      %3385 = vmatpush.bf16.msra.mxu0 %v475
      %3386 = vmatpush.bf16.msra.mxu0 %v473
      %3387 = vmatpush.bf16.msra.mxu0 %v471
      %3388 = vmatpush.bf16.msra.mxu0 %v469
      %3389 = vmatmul.bf16.gmra.mxu0 %v3380
      %v3390 = vpop.f32.mrf.mxu0
      %v3391 = vadd.f32 0.0, %v3390
      %v3392 = vpop.f32.mrf.mxu0
      %v3393 = vadd.f32 0.0, %v3392
      %3394 = vdwg.mxu0
      %3395 = vmatpush.bf16.msra.mxu0 %v484
      %3396 = vmatpush.bf16.msra.mxu0 %v482
      %3397 = vmatpush.bf16.msra.mxu0 %v480
      %3398 = vmatpush.bf16.msra.mxu0 %v478
      %3399 = vmatpush.bf16.msra.mxu0 %v476
      %3400 = vmatpush.bf16.msra.mxu0 %v474
      %3401 = vmatpush.bf16.msra.mxu0 %v472
      %3402 = vmatpush.bf16.msra.mxu0 %v470
      %3403 = vmatmul.bf16.gmra.mxu0 %v3380
      %v3404 = vpop.f32.mrf.mxu0
      %v3405 = vadd.f32 0.0, %v3404
      %v3406 = vpop.f32.mrf.mxu0
      %v3407 = vadd.f32 0.0, %v3406
      %3408 = vdwg.mxu0
      %v3409 = vsub.f32 0.0, %v3391
      %v3410 = vsub.f32 0.0, %v3405
      %v3411 = vsub.f32 0.0, %v3393
      %v3412 = vsub.f32 0.0, %v3407
      %v3413 = vmul.f32 %v3409, 1.0006205
      %v3414 = vmul.f32 %v3410, 1.0006205
      %v3415 = vmul.f32 %v3411, 1.0006205
      %v3416 = vmul.f32 %v3412, 1.0006205
      %v3417 = vmul.f32 %v3337, -8.137487
      %v3418 = vmul.f32 %v3338, -8.137487
      %v3419 = vmul.f32 %v3339, -8.137487
      %v3420 = vmul.f32 %v3340, -8.137487
      %v3421 = vmul.f32 %v3413, 8.137487
      %v3422 = vmul.f32 %v3414, 8.137487
      %v3423 = vmul.f32 %v3415, 8.137487
      %v3424 = vmul.f32 %v3416, 8.137487
      %v3425 = vsub.f32 %v3417, %v3421
      %v3426 = vsub.f32 %v3418, %v3422
      %v3427 = vsub.f32 %v3419, %v3423
      %v3428 = vsub.f32 %v3420, %v3424
      %v3429 = vmul.f32 %v3413, %v3425
      %v3430 = vmul.f32 %v3414, %v3426
      %v3431 = vmul.f32 %v3415, %v3427
      %v3432 = vmul.f32 %v3416, %v3428
      %v3433 = vsel %vm367, %v3430, 0.0
      %v3434 = vadd.f32 %v3429, %v3433
      %3435 = vadd.xlane.f32.xlu0 %v3434
      %v3436 = vpop.xlane.xlu0 %3435
      %v3437 = vsel %vm367, %v3432, 0.0
      %v3438 = vadd.f32 %v3431, %v3437
      %3439 = vadd.xlane.f32.xlu0 %v3438
      %v3440 = vpop.xlane.xlu0 %3439
      %v3441 = vmul.f32 %v3425, 0.06249875
      %v3442 = vmul.f32 %v3426, 0.06249875
      %v3443 = vmul.f32 %v3427, 0.06249875
      %v3444 = vmul.f32 %v3428, 0.06249875
      %v3445 = vadd.f32 %v3217, %v3441
      %v3446 = vadd.f32 %v3218, %v3442
      %v3447 = vadd.f32 %v3219, %v3443
      %v3448 = vadd.f32 %v3220, %v3444
      %v3449 = vpack.c.bf16 %v3447, %v3445
      %v3450 = vpack.c.bf16 %v3448, %v3446
      %v3452 = vsel %vm367, %v3450, 0
      %3454 = vmatpush.bf16.msra.mxu0 %v350
      %3455 = vmatpush.bf16.msra.mxu0 %v349
      %3456 = vmatpush.bf16.msra.mxu0 %v348
      %3457 = vmatpush.bf16.msra.mxu0 %v347
      %3458 = vmatpush.bf16.msra.mxu0 %v346
      %3459 = vmatpush.bf16.msra.mxu0 %v345
      %3460 = vmatpush.bf16.msra.mxu0 %v344
      %3461 = vmatpush.bf16.msra.mxu0 %v343
      %3462 = vmatmul.bf16.gmra.mxu0 %v3449
      %v3463 = vpop.f32.mrf.mxu0
      %v3464 = vadd.f32 %v293, %v3463
      %v3465 = vpop.f32.mrf.mxu0
      %v3466 = vadd.f32 %v294, %v3465
      %3467 = vdwg.mxu0
      %3468 = vmatpush.bf16.msra.mxu0 0
      %3469 = vmatpush.bf16.msra.mxu0 0
      %3470 = vmatpush.bf16.msra.mxu0 0
      %3471 = vmatpush.bf16.msra.mxu0 0
      %3472 = vmatpush.bf16.msra.mxu0 %v354
      %3473 = vmatpush.bf16.msra.mxu0 %v353
      %3474 = vmatpush.bf16.msra.mxu0 %v352
      %3475 = vmatpush.bf16.msra.mxu0 %v351
      %3476 = vmatmul.bf16.gmra.mxu0 %v3452
      %v3477 = vpop.f32.mrf.mxu0
      %v3478 = vadd.f32 %v3464, %v3477
      %v3479 = vpop.f32.mrf.mxu0
      %v3480 = vadd.f32 %v3466, %v3479
      %3481 = vdwg.mxu0
      %v3482 = vadd.f32 %v3478, %v3375
      %v3483 = vadd.f32 %v3480, %v3375
      %v3484 = vtanh.pop %v3482
      %v3485 = vtanh.pop %v3483
      %v3486 = vpack.c.bf16 %v3485, %v3484
      %3487 = vmatpush.bf16.msra.mxu0 %v483
      %3488 = vmatpush.bf16.msra.mxu0 %v481
      %3489 = vmatpush.bf16.msra.mxu0 %v479
      %3490 = vmatpush.bf16.msra.mxu0 %v477
      %3491 = vmatpush.bf16.msra.mxu0 %v475
      %3492 = vmatpush.bf16.msra.mxu0 %v473
      %3493 = vmatpush.bf16.msra.mxu0 %v471
      %3494 = vmatpush.bf16.msra.mxu0 %v469
      %3495 = vmatmul.bf16.gmra.mxu0 %v3486
      %v3496 = vpop.f32.mrf.mxu0
      %v3497 = vadd.f32 0.0, %v3496
      %v3498 = vpop.f32.mrf.mxu0
      %v3499 = vadd.f32 0.0, %v3498
      %3500 = vdwg.mxu0
      %3501 = vmatpush.bf16.msra.mxu0 %v484
      %3502 = vmatpush.bf16.msra.mxu0 %v482
      %3503 = vmatpush.bf16.msra.mxu0 %v480
      %3504 = vmatpush.bf16.msra.mxu0 %v478
      %3505 = vmatpush.bf16.msra.mxu0 %v476
      %3506 = vmatpush.bf16.msra.mxu0 %v474
      %3507 = vmatpush.bf16.msra.mxu0 %v472
      %3508 = vmatpush.bf16.msra.mxu0 %v470
      %3509 = vmatmul.bf16.gmra.mxu0 %v3486
      %v3510 = vpop.f32.mrf.mxu0
      %v3511 = vadd.f32 0.0, %v3510
      %v3512 = vpop.f32.mrf.mxu0
      %v3513 = vadd.f32 0.0, %v3512
      %3514 = vdwg.mxu0
      %v3515 = vsub.f32 0.0, %v3497
      %v3516 = vsub.f32 0.0, %v3511
      %v3517 = vsub.f32 0.0, %v3499
      %v3518 = vsub.f32 0.0, %v3513
      %v3519 = vmul.f32 %v3515, 1.0006205
      %v3520 = vmul.f32 %v3516, 1.0006205
      %v3521 = vmul.f32 %v3517, 1.0006205
      %v3522 = vmul.f32 %v3518, 1.0006205
      %v3523 = vmul.f32 %v3445, -8.137487
      %v3524 = vmul.f32 %v3446, -8.137487
      %v3525 = vmul.f32 %v3447, -8.137487
      %v3526 = vmul.f32 %v3448, -8.137487
      %v3527 = vmul.f32 %v3519, 8.137487
      %v3528 = vmul.f32 %v3520, 8.137487
      %v3529 = vmul.f32 %v3521, 8.137487
      %v3530 = vmul.f32 %v3522, 8.137487
      %v3531 = vsub.f32 %v3523, %v3527
      %v3532 = vsub.f32 %v3524, %v3528
      %v3533 = vsub.f32 %v3525, %v3529
      %v3534 = vsub.f32 %v3526, %v3530
      %v3535 = vmul.f32 %v3519, %v3531
      %v3536 = vmul.f32 %v3520, %v3532
      %v3537 = vmul.f32 %v3521, %v3533
      %v3538 = vmul.f32 %v3522, %v3534
      %v3539 = vsel %vm367, %v3536, 0.0
      %v3540 = vadd.f32 %v3535, %v3539
      %3541 = vadd.xlane.f32.xlu0 %v3540
      %v3542 = vpop.xlane.xlu0 %3541
      %v3543 = vsel %vm367, %v3538, 0.0
      %v3544 = vadd.f32 %v3537, %v3543
      %3545 = vadd.xlane.f32.xlu0 %v3544
      %v3546 = vpop.xlane.xlu0 %3545
      %v3547 = vmul.f32 %v3531, 0.1249975
      %v3548 = vmul.f32 %v3532, 0.1249975
      %v3549 = vmul.f32 %v3533, 0.1249975
      %v3550 = vmul.f32 %v3534, 0.1249975
      %v3551 = vadd.f32 %v3217, %v3547
      %v3552 = vadd.f32 %v3218, %v3548
      %v3553 = vadd.f32 %v3219, %v3549
      %v3554 = vadd.f32 %v3220, %v3550
      %v3555 = vld [vmem:[%s4 + $0xe] sm:$0x1]
      %v3556 = vpack.c.bf16 %v3553, %v3551
      %v3557 = vpack.c.bf16 %v3554, %v3552
      %v3559 = vsel %vm367, %v3557, 0
      %3561 = vmatpush.bf16.msra.mxu0 %v350
      %3562 = vmatpush.bf16.msra.mxu0 %v349
      %3563 = vmatpush.bf16.msra.mxu0 %v348
      %3564 = vmatpush.bf16.msra.mxu0 %v347
      %3565 = vmatpush.bf16.msra.mxu0 %v346
      %3566 = vmatpush.bf16.msra.mxu0 %v345
      %3567 = vmatpush.bf16.msra.mxu0 %v344
      %3568 = vmatpush.bf16.msra.mxu0 %v343
      %3569 = vmatmul.bf16.gmra.mxu0 %v3556
      %v3570 = vpop.f32.mrf.mxu0
      %v3571 = vadd.f32 %v293, %v3570
      %v3572 = vpop.f32.mrf.mxu0
      %v3573 = vadd.f32 %v294, %v3572
      %3574 = vdwg.mxu0
      %3575 = vmatpush.bf16.msra.mxu0 0
      %3576 = vmatpush.bf16.msra.mxu0 0
      %3577 = vmatpush.bf16.msra.mxu0 0
      %3578 = vmatpush.bf16.msra.mxu0 0
      %3579 = vmatpush.bf16.msra.mxu0 %v354
      %3580 = vmatpush.bf16.msra.mxu0 %v353
      %3581 = vmatpush.bf16.msra.mxu0 %v352
      %3582 = vmatpush.bf16.msra.mxu0 %v351
      %3583 = vmatmul.bf16.gmra.mxu0 %v3559
      %v3584 = vpop.f32.mrf.mxu0
      %v3585 = vadd.f32 %v3571, %v3584
      %v3586 = vpop.f32.mrf.mxu0
      %v3587 = vadd.f32 %v3573, %v3586
      %3588 = vdwg.mxu0
      %v3589 = vperm.slane %v3555, 0
      %v3590 = vadd.f32 %v3585, %v3589
      %v3591 = vadd.f32 %v3587, %v3589
      %v3592 = vtanh.pop %v3590
      %v3593 = vtanh.pop %v3591
      %v3594 = vpack.c.bf16 %v3593, %v3592
      %3595 = vmatpush.bf16.msra.mxu0 %v483
      %3596 = vmatpush.bf16.msra.mxu0 %v481
      %3597 = vmatpush.bf16.msra.mxu0 %v479
      %3598 = vmatpush.bf16.msra.mxu0 %v477
      %3599 = vmatpush.bf16.msra.mxu0 %v475
      %3600 = vmatpush.bf16.msra.mxu0 %v473
      %3601 = vmatpush.bf16.msra.mxu0 %v471
      %3602 = vmatpush.bf16.msra.mxu0 %v469
      %3603 = vmatmul.bf16.gmra.mxu0 %v3594
      %v3604 = vpop.f32.mrf.mxu0
      %v3605 = vadd.f32 0.0, %v3604
      %v3606 = vpop.f32.mrf.mxu0
      %v3607 = vadd.f32 0.0, %v3606
      %3608 = vdwg.mxu0
      %3609 = vmatpush.bf16.msra.mxu0 %v484
      %3610 = vmatpush.bf16.msra.mxu0 %v482
      %3611 = vmatpush.bf16.msra.mxu0 %v480
      %3612 = vmatpush.bf16.msra.mxu0 %v478
      %3613 = vmatpush.bf16.msra.mxu0 %v476
      %3614 = vmatpush.bf16.msra.mxu0 %v474
      %3615 = vmatpush.bf16.msra.mxu0 %v472
      %3616 = vmatpush.bf16.msra.mxu0 %v470
      %3617 = vmatmul.bf16.gmra.mxu0 %v3594
      %v3618 = vpop.f32.mrf.mxu0
      %v3619 = vadd.f32 0.0, %v3618
      %v3620 = vpop.f32.mrf.mxu0
      %v3621 = vadd.f32 0.0, %v3620
      %3622 = vdwg.mxu0
      %v3623 = vsub.f32 0.0, %v3605
      %v3624 = vsub.f32 0.0, %v3619
      %v3625 = vsub.f32 0.0, %v3607
      %v3626 = vsub.f32 0.0, %v3621
      %v3627 = vmul.f32 %v3623, 1.0002117
      %v3628 = vmul.f32 %v3624, 1.0002117
      %v3629 = vmul.f32 %v3625, 1.0002117
      %v3630 = vmul.f32 %v3626, 1.0002117
      %v3631 = vmul.f32 %v3551, -8.764965
      %v3632 = vmul.f32 %v3552, -8.764965
      %v3633 = vmul.f32 %v3553, -8.764965
      %v3634 = vmul.f32 %v3554, -8.764965
      %v3635 = vmul.f32 %v3627, 8.764965
      %v3636 = vmul.f32 %v3628, 8.764965
      %v3637 = vmul.f32 %v3629, 8.764965
      %v3638 = vmul.f32 %v3630, 8.764965
      %v3639 = vsub.f32 %v3631, %v3635
      %v3640 = vsub.f32 %v3632, %v3636
      %v3641 = vsub.f32 %v3633, %v3637
      %v3642 = vsub.f32 %v3634, %v3638
      %v3643 = vmul.f32 %v3627, %v3639
      %v3644 = vmul.f32 %v3628, %v3640
      %v3645 = vmul.f32 %v3629, %v3641
      %v3646 = vmul.f32 %v3630, %v3642
      %v3647 = vsel %vm367, %v3644, 0.0
      %v3648 = vadd.f32 %v3643, %v3647
      %3649 = vadd.xlane.f32.xlu0 %v3648
      %v3650 = vpop.xlane.xlu0 %3649
      %v3651 = vsel %vm367, %v3646, 0.0
      %v3652 = vadd.f32 %v3645, %v3651
      %3653 = vadd.xlane.f32.xlu0 %v3652
      %v3654 = vpop.xlane.xlu0 %3653
      %v3655 = vmul.f32 %v3425, 2.0
      %v3656 = vmul.f32 %v3426, 2.0
      %v3657 = vmul.f32 %v3427, 2.0
      %v3658 = vmul.f32 %v3428, 2.0
      %v3659 = vadd.f32 %v3317, %v3655
      %v3660 = vadd.f32 %v3318, %v3656
      %v3661 = vadd.f32 %v3319, %v3657
      %v3662 = vadd.f32 %v3320, %v3658
      %v3663 = vmul.f32 %v3531, 2.0
      %v3664 = vmul.f32 %v3532, 2.0
      %v3665 = vmul.f32 %v3533, 2.0
      %v3666 = vmul.f32 %v3534, 2.0
      %v3667 = vadd.f32 %v3659, %v3663
      %v3668 = vadd.f32 %v3660, %v3664
      %v3669 = vadd.f32 %v3661, %v3665
      %v3670 = vadd.f32 %v3662, %v3666
      %v3671 = vadd.f32 %v3667, %v3639
      %v3672 = vadd.f32 %v3668, %v3640
      %v3673 = vadd.f32 %v3669, %v3641
      %v3674 = vadd.f32 %v3670, %v3642
      %v3675 = vmul.f32 %v3671, 0.020832917
      %v3676 = vmul.f32 %v3672, 0.020832917
      %v3677 = vmul.f32 %v3673, 0.020832917
      %v3678 = vmul.f32 %v3674, 0.020832917
      %v3679 = vadd.f32 %v3217, %v3675
      %v3680 = vadd.f32 %v3218, %v3676
      %v3681 = vadd.f32 %v3219, %v3677
      %v3682 = vadd.f32 %v3220, %v3678
      %v3683 = vmul.f32 %v3436, 2.0
      %v3684 = vmul.f32 %v3440, 2.0
      %v3685 = vadd.f32 %v3328, %v3683
      %v3686 = vadd.f32 %v3332, %v3684
      %v3687 = vmul.f32 %v3542, 2.0
      %v3688 = vmul.f32 %v3546, 2.0
      %v3689 = vadd.f32 %v3685, %v3687
      %v3690 = vadd.f32 %v3686, %v3688
      %v3691 = vadd.f32 %v3689, %v3650
      %v3692 = vadd.f32 %v3690, %v3654
      %v3693 = vmul.f32 %v3691, 0.020832917
      %v3694 = vmul.f32 %v3692, 0.020832917
      %v3695 = vadd.f32 %v3233, %v3693
      %v3696 = vadd.f32 %v3234, %v3694
      %v3697 = vpack.c.bf16 %v3681, %v3679
      %v3698 = vpack.c.bf16 %v3682, %v3680
      %v3700 = vsel %vm367, %v3698, 0
      %3702 = vmatpush.bf16.msra.mxu0 %v350
      %3703 = vmatpush.bf16.msra.mxu0 %v349
      %3704 = vmatpush.bf16.msra.mxu0 %v348
      %3705 = vmatpush.bf16.msra.mxu0 %v347
      %3706 = vmatpush.bf16.msra.mxu0 %v346
      %3707 = vmatpush.bf16.msra.mxu0 %v345
      %3708 = vmatpush.bf16.msra.mxu0 %v344
      %3709 = vmatpush.bf16.msra.mxu0 %v343
      %3710 = vmatmul.bf16.gmra.mxu0 %v3697
      %v3711 = vpop.f32.mrf.mxu0
      %v3712 = vadd.f32 %v293, %v3711
      %v3713 = vpop.f32.mrf.mxu0
      %v3714 = vadd.f32 %v294, %v3713
      %3715 = vdwg.mxu0
      %3716 = vmatpush.bf16.msra.mxu0 0
      %3717 = vmatpush.bf16.msra.mxu0 0
      %3718 = vmatpush.bf16.msra.mxu0 0
      %3719 = vmatpush.bf16.msra.mxu0 0
      %3720 = vmatpush.bf16.msra.mxu0 %v354
      %3721 = vmatpush.bf16.msra.mxu0 %v353
      %3722 = vmatpush.bf16.msra.mxu0 %v352
      %3723 = vmatpush.bf16.msra.mxu0 %v351
      %3724 = vmatmul.bf16.gmra.mxu0 %v3700
      %v3725 = vpop.f32.mrf.mxu0
      %v3726 = vadd.f32 %v3712, %v3725
      %v3727 = vpop.f32.mrf.mxu0
      %v3728 = vadd.f32 %v3714, %v3727
      %3729 = vdwg.mxu0
      %v3730 = vadd.f32 %v3726, %v3589
      %v3731 = vadd.f32 %v3728, %v3589
      %v3732 = vtanh.pop %v3730
      %v3733 = vtanh.pop %v3731
      %v3734 = vpack.c.bf16 %v3733, %v3732
      %3735 = vmatpush.bf16.msra.mxu0 %v483
      %3736 = vmatpush.bf16.msra.mxu0 %v481
      %3737 = vmatpush.bf16.msra.mxu0 %v479
      %3738 = vmatpush.bf16.msra.mxu0 %v477
      %3739 = vmatpush.bf16.msra.mxu0 %v475
      %3740 = vmatpush.bf16.msra.mxu0 %v473
      %3741 = vmatpush.bf16.msra.mxu0 %v471
      %3742 = vmatpush.bf16.msra.mxu0 %v469
      %3743 = vmatmul.bf16.gmra.mxu0 %v3734
      %v3744 = vpop.f32.mrf.mxu0
      %v3745 = vadd.f32 0.0, %v3744
      %v3746 = vpop.f32.mrf.mxu0
      %v3747 = vadd.f32 0.0, %v3746
      %3748 = vdwg.mxu0
      %3749 = vmatpush.bf16.msra.mxu0 %v484
      %3750 = vmatpush.bf16.msra.mxu0 %v482
      %3751 = vmatpush.bf16.msra.mxu0 %v480
      %3752 = vmatpush.bf16.msra.mxu0 %v478
      %3753 = vmatpush.bf16.msra.mxu0 %v476
      %3754 = vmatpush.bf16.msra.mxu0 %v474
      %3755 = vmatpush.bf16.msra.mxu0 %v472
      %3756 = vmatpush.bf16.msra.mxu0 %v470
      %3757 = vmatmul.bf16.gmra.mxu0 %v3734
      %v3758 = vpop.f32.mrf.mxu0
      %v3759 = vadd.f32 0.0, %v3758
      %v3760 = vpop.f32.mrf.mxu0
      %v3761 = vadd.f32 0.0, %v3760
      %3762 = vdwg.mxu0
      %v3763 = vsub.f32 0.0, %v3745
      %v3764 = vsub.f32 0.0, %v3759
      %v3765 = vsub.f32 0.0, %v3747
      %v3766 = vsub.f32 0.0, %v3761
      %v3767 = vmul.f32 %v3763, 1.0002117
      %v3768 = vmul.f32 %v3764, 1.0002117
      %v3769 = vmul.f32 %v3765, 1.0002117
      %v3770 = vmul.f32 %v3766, 1.0002117
      %v3771 = vmul.f32 %v3679, -8.764965
      %v3772 = vmul.f32 %v3680, -8.764965
      %v3773 = vmul.f32 %v3681, -8.764965
      %v3774 = vmul.f32 %v3682, -8.764965
      %v3775 = vmul.f32 %v3767, 8.764965
      %v3776 = vmul.f32 %v3768, 8.764965
      %v3777 = vmul.f32 %v3769, 8.764965
      %v3778 = vmul.f32 %v3770, 8.764965
      %v3779 = vsub.f32 %v3771, %v3775
      %v3780 = vsub.f32 %v3772, %v3776
      %v3781 = vsub.f32 %v3773, %v3777
      %v3782 = vsub.f32 %v3774, %v3778
      %v3783 = vmul.f32 %v3767, %v3779
      %v3784 = vmul.f32 %v3768, %v3780
      %v3785 = vmul.f32 %v3769, %v3781
      %v3786 = vmul.f32 %v3770, %v3782
      %v3787 = vsel %vm367, %v3784, 0.0
      %v3788 = vadd.f32 %v3783, %v3787
      %3789 = vadd.xlane.f32.xlu0 %v3788
      %v3790 = vpop.xlane.xlu0 %3789
      %v3791 = vsel %vm367, %v3786, 0.0
      %v3792 = vadd.f32 %v3785, %v3791
      %3793 = vadd.xlane.f32.xlu0 %v3792
      %v3794 = vpop.xlane.xlu0 %3793
      %v3795 = vmul.f32 %v3779, 0.06249875
      %v3796 = vmul.f32 %v3780, 0.06249875
      %v3797 = vmul.f32 %v3781, 0.06249875
      %v3798 = vmul.f32 %v3782, 0.06249875
      %v3799 = vadd.f32 %v3679, %v3795
      %v3800 = vadd.f32 %v3680, %v3796
      %v3801 = vadd.f32 %v3681, %v3797
      %v3802 = vadd.f32 %v3682, %v3798
      %v3803 = vld [vmem:[%s4 + $0xf] sm:$0x1]
      %v3804 = vpack.c.bf16 %v3801, %v3799
      %v3805 = vpack.c.bf16 %v3802, %v3800
      %v3807 = vsel %vm367, %v3805, 0
      %3809 = vmatpush.bf16.msra.mxu0 %v350
      %3810 = vmatpush.bf16.msra.mxu0 %v349
      %3811 = vmatpush.bf16.msra.mxu0 %v348
      %3812 = vmatpush.bf16.msra.mxu0 %v347
      %3813 = vmatpush.bf16.msra.mxu0 %v346
      %3814 = vmatpush.bf16.msra.mxu0 %v345
      %3815 = vmatpush.bf16.msra.mxu0 %v344
      %3816 = vmatpush.bf16.msra.mxu0 %v343
      %3817 = vmatmul.bf16.gmra.mxu0 %v3804
      %v3818 = vpop.f32.mrf.mxu0
      %v3819 = vadd.f32 %v293, %v3818
      %v3820 = vpop.f32.mrf.mxu0
      %v3821 = vadd.f32 %v294, %v3820
      %3822 = vdwg.mxu0
      %3823 = vmatpush.bf16.msra.mxu0 0
      %3824 = vmatpush.bf16.msra.mxu0 0
      %3825 = vmatpush.bf16.msra.mxu0 0
      %3826 = vmatpush.bf16.msra.mxu0 0
      %3827 = vmatpush.bf16.msra.mxu0 %v354
      %3828 = vmatpush.bf16.msra.mxu0 %v353
      %3829 = vmatpush.bf16.msra.mxu0 %v352
      %3830 = vmatpush.bf16.msra.mxu0 %v351
      %3831 = vmatmul.bf16.gmra.mxu0 %v3807
      %v3832 = vpop.f32.mrf.mxu0
      %v3833 = vadd.f32 %v3819, %v3832
      %v3834 = vpop.f32.mrf.mxu0
      %v3835 = vadd.f32 %v3821, %v3834
      %3836 = vdwg.mxu0
      %v3837 = vperm.slane %v3803, 0
      %v3838 = vadd.f32 %v3833, %v3837
      %v3839 = vadd.f32 %v3835, %v3837
      %v3840 = vtanh.pop %v3838
      %v3841 = vtanh.pop %v3839
      %v3842 = vpack.c.bf16 %v3841, %v3840
      %3843 = vmatpush.bf16.msra.mxu0 %v483
      %3844 = vmatpush.bf16.msra.mxu0 %v481
      %3845 = vmatpush.bf16.msra.mxu0 %v479
      %3846 = vmatpush.bf16.msra.mxu0 %v477
      %3847 = vmatpush.bf16.msra.mxu0 %v475
      %3848 = vmatpush.bf16.msra.mxu0 %v473
      %3849 = vmatpush.bf16.msra.mxu0 %v471
      %3850 = vmatpush.bf16.msra.mxu0 %v469
      %3851 = vmatmul.bf16.gmra.mxu0 %v3842
      %v3852 = vpop.f32.mrf.mxu0
      %v3853 = vadd.f32 0.0, %v3852
      %v3854 = vpop.f32.mrf.mxu0
      %v3855 = vadd.f32 0.0, %v3854
      %3856 = vdwg.mxu0
      %3857 = vmatpush.bf16.msra.mxu0 %v484
      %3858 = vmatpush.bf16.msra.mxu0 %v482
      %3859 = vmatpush.bf16.msra.mxu0 %v480
      %3860 = vmatpush.bf16.msra.mxu0 %v478
      %3861 = vmatpush.bf16.msra.mxu0 %v476
      %3862 = vmatpush.bf16.msra.mxu0 %v474
      %3863 = vmatpush.bf16.msra.mxu0 %v472
      %3864 = vmatpush.bf16.msra.mxu0 %v470
      %3865 = vmatmul.bf16.gmra.mxu0 %v3842
      %v3866 = vpop.f32.mrf.mxu0
      %v3867 = vadd.f32 0.0, %v3866
      %v3868 = vpop.f32.mrf.mxu0
      %v3869 = vadd.f32 0.0, %v3868
      %3870 = vdwg.mxu0
      %v3871 = vsub.f32 0.0, %v3853
      %v3872 = vsub.f32 0.0, %v3867
      %v3873 = vsub.f32 0.0, %v3855
      %v3874 = vsub.f32 0.0, %v3869
      %v3875 = vmul.f32 %v3871, 1.000068
      %v3876 = vmul.f32 %v3872, 1.000068
      %v3877 = vmul.f32 %v3873, 1.000068
      %v3878 = vmul.f32 %v3874, 1.000068
      %v3879 = vmul.f32 %v3799, -9.382483
      %v3880 = vmul.f32 %v3800, -9.382483
      %v3881 = vmul.f32 %v3801, -9.382483
      %v3882 = vmul.f32 %v3802, -9.382483
      %v3883 = vmul.f32 %v3875, 9.382483
      %v3884 = vmul.f32 %v3876, 9.382483
      %v3885 = vmul.f32 %v3877, 9.382483
      %v3886 = vmul.f32 %v3878, 9.382483
      %v3887 = vsub.f32 %v3879, %v3883
      %v3888 = vsub.f32 %v3880, %v3884
      %v3889 = vsub.f32 %v3881, %v3885
      %v3890 = vsub.f32 %v3882, %v3886
      %v3891 = vmul.f32 %v3875, %v3887
      %v3892 = vmul.f32 %v3876, %v3888
      %v3893 = vmul.f32 %v3877, %v3889
      %v3894 = vmul.f32 %v3878, %v3890
      %v3895 = vsel %vm367, %v3892, 0.0
      %v3896 = vadd.f32 %v3891, %v3895
      %3897 = vadd.xlane.f32.xlu0 %v3896
      %v3898 = vpop.xlane.xlu0 %3897
      %v3899 = vsel %vm367, %v3894, 0.0
      %v3900 = vadd.f32 %v3893, %v3899
      %3901 = vadd.xlane.f32.xlu0 %v3900
      %v3902 = vpop.xlane.xlu0 %3901
      %v3903 = vmul.f32 %v3887, 0.06249875
      %v3904 = vmul.f32 %v3888, 0.06249875
      %v3905 = vmul.f32 %v3889, 0.06249875
      %v3906 = vmul.f32 %v3890, 0.06249875
      %v3907 = vadd.f32 %v3679, %v3903
      %v3908 = vadd.f32 %v3680, %v3904
      %v3909 = vadd.f32 %v3681, %v3905
      %v3910 = vadd.f32 %v3682, %v3906
      %v3911 = vpack.c.bf16 %v3909, %v3907
      %v3912 = vpack.c.bf16 %v3910, %v3908
      %v3914 = vsel %vm367, %v3912, 0
      %3916 = vmatpush.bf16.msra.mxu0 %v350
      %3917 = vmatpush.bf16.msra.mxu0 %v349
      %3918 = vmatpush.bf16.msra.mxu0 %v348
      %3919 = vmatpush.bf16.msra.mxu0 %v347
      %3920 = vmatpush.bf16.msra.mxu0 %v346
      %3921 = vmatpush.bf16.msra.mxu0 %v345
      %3922 = vmatpush.bf16.msra.mxu0 %v344
      %3923 = vmatpush.bf16.msra.mxu0 %v343
      %3924 = vmatmul.bf16.gmra.mxu0 %v3911
      %v3925 = vpop.f32.mrf.mxu0
      %v3926 = vadd.f32 %v293, %v3925
      %v3927 = vpop.f32.mrf.mxu0
      %v3928 = vadd.f32 %v294, %v3927
      %3929 = vdwg.mxu0
      %3930 = vmatpush.bf16.msra.mxu0 0
      %3931 = vmatpush.bf16.msra.mxu0 0
      %3932 = vmatpush.bf16.msra.mxu0 0
      %3933 = vmatpush.bf16.msra.mxu0 0
      %3934 = vmatpush.bf16.msra.mxu0 %v354
      %3935 = vmatpush.bf16.msra.mxu0 %v353
      %3936 = vmatpush.bf16.msra.mxu0 %v352
      %3937 = vmatpush.bf16.msra.mxu0 %v351
      %3938 = vmatmul.bf16.gmra.mxu0 %v3914
      %v3939 = vpop.f32.mrf.mxu0
      %v3940 = vadd.f32 %v3926, %v3939
      %v3941 = vpop.f32.mrf.mxu0
      %v3942 = vadd.f32 %v3928, %v3941
      %3943 = vdwg.mxu0
      %v3944 = vadd.f32 %v3940, %v3837
      %v3945 = vadd.f32 %v3942, %v3837
      %v3946 = vtanh.pop %v3944
      %v3947 = vtanh.pop %v3945
      %v3948 = vpack.c.bf16 %v3947, %v3946
      %3949 = vmatpush.bf16.msra.mxu0 %v483
      %3950 = vmatpush.bf16.msra.mxu0 %v481
      %3951 = vmatpush.bf16.msra.mxu0 %v479
      %3952 = vmatpush.bf16.msra.mxu0 %v477
      %3953 = vmatpush.bf16.msra.mxu0 %v475
      %3954 = vmatpush.bf16.msra.mxu0 %v473
      %3955 = vmatpush.bf16.msra.mxu0 %v471
      %3956 = vmatpush.bf16.msra.mxu0 %v469
      %3957 = vmatmul.bf16.gmra.mxu0 %v3948
      %v3958 = vpop.f32.mrf.mxu0
      %v3959 = vadd.f32 0.0, %v3958
      %v3960 = vpop.f32.mrf.mxu0
      %v3961 = vadd.f32 0.0, %v3960
      %3962 = vdwg.mxu0
      %3963 = vmatpush.bf16.msra.mxu0 %v484
      %3964 = vmatpush.bf16.msra.mxu0 %v482
      %3965 = vmatpush.bf16.msra.mxu0 %v480
      %3966 = vmatpush.bf16.msra.mxu0 %v478
      %3967 = vmatpush.bf16.msra.mxu0 %v476
      %3968 = vmatpush.bf16.msra.mxu0 %v474
      %3969 = vmatpush.bf16.msra.mxu0 %v472
      %3970 = vmatpush.bf16.msra.mxu0 %v470
      %3971 = vmatmul.bf16.gmra.mxu0 %v3948
      %v3972 = vpop.f32.mrf.mxu0
      %v3973 = vadd.f32 0.0, %v3972
      %v3974 = vpop.f32.mrf.mxu0
      %v3975 = vadd.f32 0.0, %v3974
      %3976 = vdwg.mxu0
      %v3977 = vsub.f32 0.0, %v3959
      %v3978 = vsub.f32 0.0, %v3973
      %v3979 = vsub.f32 0.0, %v3961
      %v3980 = vsub.f32 0.0, %v3975
      %v3981 = vmul.f32 %v3977, 1.000068
      %v3982 = vmul.f32 %v3978, 1.000068
      %v3983 = vmul.f32 %v3979, 1.000068
      %v3984 = vmul.f32 %v3980, 1.000068
      %v3985 = vmul.f32 %v3907, -9.382483
      %v3986 = vmul.f32 %v3908, -9.382483
      %v3987 = vmul.f32 %v3909, -9.382483
      %v3988 = vmul.f32 %v3910, -9.382483
      %v3989 = vmul.f32 %v3981, 9.382483
      %v3990 = vmul.f32 %v3982, 9.382483
      %v3991 = vmul.f32 %v3983, 9.382483
      %v3992 = vmul.f32 %v3984, 9.382483
      %v3993 = vsub.f32 %v3985, %v3989
      %v3994 = vsub.f32 %v3986, %v3990
      %v3995 = vsub.f32 %v3987, %v3991
      %v3996 = vsub.f32 %v3988, %v3992
      %v3997 = vmul.f32 %v3981, %v3993
      %v3998 = vmul.f32 %v3982, %v3994
      %v3999 = vmul.f32 %v3983, %v3995
      %v4000 = vmul.f32 %v3984, %v3996
      %v4001 = vsel %vm367, %v3998, 0.0
      %v4002 = vadd.f32 %v3997, %v4001
      %4003 = vadd.xlane.f32.xlu0 %v4002
      %v4004 = vpop.xlane.xlu0 %4003
      %v4005 = vsel %vm367, %v4000, 0.0
      %v4006 = vadd.f32 %v3999, %v4005
      %4007 = vadd.xlane.f32.xlu0 %v4006
      %v4008 = vpop.xlane.xlu0 %4007
      %v4009 = vmul.f32 %v3993, 0.1249975
      %v4010 = vmul.f32 %v3994, 0.1249975
      %v4011 = vmul.f32 %v3995, 0.1249975
      %v4012 = vmul.f32 %v3996, 0.1249975
      %v4013 = vadd.f32 %v3679, %v4009
      %v4014 = vadd.f32 %v3680, %v4010
      %v4015 = vadd.f32 %v3681, %v4011
      %v4016 = vadd.f32 %v3682, %v4012
      %v4017 = vld [vmem:[%s4 + $0x10] sm:$0x1]
      %v4018 = vpack.c.bf16 %v4015, %v4013
      %v4019 = vpack.c.bf16 %v4016, %v4014
      %v4021 = vsel %vm367, %v4019, 0
      %4023 = vmatpush.bf16.msra.mxu0 %v350
      %4024 = vmatpush.bf16.msra.mxu0 %v349
      %4025 = vmatpush.bf16.msra.mxu0 %v348
      %4026 = vmatpush.bf16.msra.mxu0 %v347
      %4027 = vmatpush.bf16.msra.mxu0 %v346
      %4028 = vmatpush.bf16.msra.mxu0 %v345
      %4029 = vmatpush.bf16.msra.mxu0 %v344
      %4030 = vmatpush.bf16.msra.mxu0 %v343
      %4031 = vmatmul.bf16.gmra.mxu0 %v4018
      %v4032 = vpop.f32.mrf.mxu0
      %v4033 = vadd.f32 %v293, %v4032
      %v4034 = vpop.f32.mrf.mxu0
      %v4035 = vadd.f32 %v294, %v4034
      %4036 = vdwg.mxu0
      %4037 = vmatpush.bf16.msra.mxu0 0
      %4038 = vmatpush.bf16.msra.mxu0 0
      %4039 = vmatpush.bf16.msra.mxu0 0
      %4040 = vmatpush.bf16.msra.mxu0 0
      %4041 = vmatpush.bf16.msra.mxu0 %v354
      %4042 = vmatpush.bf16.msra.mxu0 %v353
      %4043 = vmatpush.bf16.msra.mxu0 %v352
      %4044 = vmatpush.bf16.msra.mxu0 %v351
      %4045 = vmatmul.bf16.gmra.mxu0 %v4021
      %v4046 = vpop.f32.mrf.mxu0
      %v4047 = vadd.f32 %v4033, %v4046
      %v4048 = vpop.f32.mrf.mxu0
      %v4049 = vadd.f32 %v4035, %v4048
      %4050 = vdwg.mxu0
      %v4051 = vperm.slane %v4017, 0
      %v4052 = vadd.f32 %v4047, %v4051
      %v4053 = vadd.f32 %v4049, %v4051
      %v4054 = vtanh.pop %v4052
      %v4055 = vtanh.pop %v4053
      %v4056 = vpack.c.bf16 %v4055, %v4054
      %4057 = vmatpush.bf16.msra.mxu0 %v483
      %4058 = vmatpush.bf16.msra.mxu0 %v481
      %4059 = vmatpush.bf16.msra.mxu0 %v479
      %4060 = vmatpush.bf16.msra.mxu0 %v477
      %4061 = vmatpush.bf16.msra.mxu0 %v475
      %4062 = vmatpush.bf16.msra.mxu0 %v473
      %4063 = vmatpush.bf16.msra.mxu0 %v471
      %4064 = vmatpush.bf16.msra.mxu0 %v469
      %4065 = vmatmul.bf16.gmra.mxu0 %v4056
      %v4066 = vpop.f32.mrf.mxu0
      %v4067 = vadd.f32 0.0, %v4066
      %v4068 = vpop.f32.mrf.mxu0
      %v4069 = vadd.f32 0.0, %v4068
      %4070 = vdwg.mxu0
      %4071 = vmatpush.bf16.msra.mxu0 %v484
      %4072 = vmatpush.bf16.msra.mxu0 %v482
      %4073 = vmatpush.bf16.msra.mxu0 %v480
      %4074 = vmatpush.bf16.msra.mxu0 %v478
      %4075 = vmatpush.bf16.msra.mxu0 %v476
      %4076 = vmatpush.bf16.msra.mxu0 %v474
      %4077 = vmatpush.bf16.msra.mxu0 %v472
      %4078 = vmatpush.bf16.msra.mxu0 %v470
      %4079 = vmatmul.bf16.gmra.mxu0 %v4056
      %v4080 = vpop.f32.mrf.mxu0
      %v4081 = vadd.f32 0.0, %v4080
      %v4082 = vpop.f32.mrf.mxu0
      %v4083 = vadd.f32 0.0, %v4082
      %4084 = vdwg.mxu0
      %v4085 = vsub.f32 0.0, %v4067
      %v4086 = vsub.f32 0.0, %v4081
      %v4087 = vsub.f32 0.0, %v4069
      %v4088 = vsub.f32 0.0, %v4083
      %v4089 = vmul.f32 %v4085, 1.0000201
      %v4090 = vmul.f32 %v4086, 1.0000201
      %v4091 = vmul.f32 %v4087, 1.0000201
      %v4092 = vmul.f32 %v4088, 1.0000201
      %v4093 = vmul.f32 %v4013, -10.0
      %v4094 = vmul.f32 %v4014, -10.0
      %v4095 = vmul.f32 %v4015, -10.0
      %v4096 = vmul.f32 %v4016, -10.0
      %v4097 = vmul.f32 %v4089, 10.0
      %v4098 = vmul.f32 %v4090, 10.0
      %v4099 = vmul.f32 %v4091, 10.0
      %v4100 = vmul.f32 %v4092, 10.0
      %v4101 = vsub.f32 %v4093, %v4097
      %v4102 = vsub.f32 %v4094, %v4098
      %v4103 = vsub.f32 %v4095, %v4099
      %v4104 = vsub.f32 %v4096, %v4100
      %v4105 = vmul.f32 %v4089, %v4101
      %v4106 = vmul.f32 %v4090, %v4102
      %v4107 = vmul.f32 %v4091, %v4103
      %v4108 = vmul.f32 %v4092, %v4104
      %v4109 = vsel %vm367, %v4106, 0.0
      %v4110 = vadd.f32 %v4105, %v4109
      %4111 = vadd.xlane.f32.xlu0 %v4110
      %v4112 = vpop.xlane.xlu0 %4111
      %v4113 = vsel %vm367, %v4108, 0.0
      %v4114 = vadd.f32 %v4107, %v4113
      %4115 = vadd.xlane.f32.xlu0 %v4114
      %v4116 = vpop.xlane.xlu0 %4115
      %v4117 = vmul.f32 %v3887, 2.0
      %v4118 = vmul.f32 %v3888, 2.0
      %v4119 = vmul.f32 %v3889, 2.0
      %v4120 = vmul.f32 %v3890, 2.0
      %v4121 = vadd.f32 %v3779, %v4117
      %v4122 = vadd.f32 %v3780, %v4118
      %v4123 = vadd.f32 %v3781, %v4119
      %v4124 = vadd.f32 %v3782, %v4120
      %v4125 = vmul.f32 %v3993, 2.0
      %v4126 = vmul.f32 %v3994, 2.0
      %v4127 = vmul.f32 %v3995, 2.0
      %v4128 = vmul.f32 %v3996, 2.0
      %v4129 = vadd.f32 %v4121, %v4125
      %v4130 = vadd.f32 %v4122, %v4126
      %v4131 = vadd.f32 %v4123, %v4127
      %v4132 = vadd.f32 %v4124, %v4128
      %v4133 = vadd.f32 %v4129, %v4101
      %v4134 = vadd.f32 %v4130, %v4102
      %v4135 = vadd.f32 %v4131, %v4103
      %v4136 = vadd.f32 %v4132, %v4104
      %v4137 = vmul.f32 %v4133, 0.020832917
      %v4138 = vmul.f32 %v4134, 0.020832917
      %v4139 = vmul.f32 %v4135, 0.020832917
      %v4140 = vmul.f32 %v4136, 0.020832917
      %v4141 = vadd.f32 %v3679, %v4137
      %v4142 = vadd.f32 %v3680, %v4138
      %v4143 = vadd.f32 %v3681, %v4139
      %v4144 = vadd.f32 %v3682, %v4140
      %v4145 = vmul.f32 %v3898, 2.0
      %v4146 = vmul.f32 %v3902, 2.0
      %v4147 = vadd.f32 %v3790, %v4145
      %v4148 = vadd.f32 %v3794, %v4146
      %v4149 = vmul.f32 %v4004, 2.0
      %v4150 = vmul.f32 %v4008, 2.0
      %v4151 = vadd.f32 %v4147, %v4149
      %v4152 = vadd.f32 %v4148, %v4150
      %v4153 = vadd.f32 %v4151, %v4112
      %v4154 = vadd.f32 %v4152, %v4116
      %v4155 = vmul.f32 %v4153, 0.020832917
      %v4156 = vmul.f32 %v4154, 0.020832917
      %v4157 = vadd.f32 %v3695, %v4155
      %v4158 = vadd.f32 %v3696, %v4156
      %v4159 = vmul.f32 %v4141, %v4141
      %v4160 = vmul.f32 %v4142, %v4142
      %v4161 = vmul.f32 %v4143, %v4143
      %v4162 = vmul.f32 %v4144, %v4144
      %v4163 = vsel %vm367, %v4160, 0.0
      %v4164 = vadd.f32 %v4159, %v4163
      %4165 = vadd.xlane.f32.xlu0 %v4164
      %v4166 = vpop.xlane.xlu0 %4165
      %v4167 = vsel %vm367, %v4162, 0.0
      %v4168 = vadd.f32 %v4161, %v4167
      %4169 = vadd.xlane.f32.xlu0 %v4168
      %v4170 = vpop.xlane.xlu0 %4169
      %v4171 = vmul.f32 %v4166, -0.5
      %v4172 = vmul.f32 %v4170, -0.5
      %v4173 = vsub.f32 %v4171, 176.4362
      %v4174 = vsub.f32 %v4172, 176.4362
      %v4175 = vadd.f32 %v4157, %v4173
      %v4176 = vadd.f32 %v4158, %v4174
      %v4177 = vsub.f32 0.0, %v4175
      %v4178 = vsub.f32 0.0, %v4176
      %v4179 = vrcp.pop 192.0
      %v4180 = vmul.f32 192.0, %v4179
      %v4181 = vsub.f32 1.0, %v4180
      %v4182 = vmul.f32 %v4179, %v4181
      %v4183 = vadd.f32 %v4179, %v4182
      %vm4184 = vweird.f32 %v4179
      %v4185 = vsel %vm4184, %v4179, %v4183
      %v4186 = vmul.f32 %v4177, %v4185
      %v4187 = vmul.f32 %v4178, %v4185
      %v4188 = vrcp.pop 0.6931472
      %v4189 = vmul.f32 0.6931472, %v4188
      %v4190 = vsub.f32 1.0, %v4189
      %v4191 = vmul.f32 %v4188, %v4190
      %v4192 = vadd.f32 %v4188, %v4191
      %vm4193 = vweird.f32 %v4188
      %v4194 = vsel %vm4193, %v4188, %v4192
      %v4195 = vmul.f32 %v4186, %v4194
      %v4196 = vmul.f32 %v4187, %v4194
      %v4197 = vadd.f32 %v4195, 7.0
      %v4198 = vadd.f32 %v4196, 7.0
      %vm4199 = vcmask 7168
      %4200 = vst.msk [vmem:[%s251] sm:$0xff] %vm4199, %v4197
      %4201 = vst.msk [vmem:[%s251 + $0x8] sm:$0xff] %vm4199, %v4198
      %s4202 = smul.u32 2, %s16
      %p4203 = scmp.lt.s32.totalorder %s4202, 3
      %s4204 = scalar_select %p4203, %s4202, 3
      %s4205 = smul.addr %s4204, 8
      %s4206 = scalar_lea.vmem %s5, %s4205
      // Predicated region
      $region41: #{sbgc_forward.1} parent=39 // pred_check
        %p4207 = pneg %p149
      $region42: #{sbgc_forward.1} parent=39 // pred_check_branch
        %4209 = sbr.rel (%p4207) target = $region44
      $region43: #{sbgc_forward.1} parent=39 // pred_region
        %s4210 = smul.u32 2, %s16
      $region44: #{sbgc_forward.1} parent=39 // pred_fallthru
        _
    $region40: #{sbgc_forward.1} parent=5 // pred_fallthru
      _
    %p4211 = scmp.le.s32.totalorder 2, %s11
    // Predicated region
    $region45: #{sbgc_forward.1} parent=5 // pred_check
      %p4212 = pneg %p4211
    $region46: #{sbgc_forward.1} parent=5 // pred_check_branch
      %4214 = sbr.rel (%p4212) target = $region48
    $region47: #{sbgc_forward.1} parent=5 // pred_region
      %s4215 = ssub.s32 %s11, 2
      // Predicated region
      $region49: #{sbgc_forward.1} parent=47 // pred_check
        %p4216 = pneg %p155
      $region50: #{sbgc_forward.1} parent=47 // pred_check_branch
        %4218 = sbr.rel (%p4216) target = $region52
      $region51: #{sbgc_forward.1} parent=47 // pred_region
        %s4219 = smul.u32 2, %s17
        %p4220 = scmp.lt.s32.totalorder %s4219, 3
        %s4221 = scalar_select %p4220, %s4219, 3
        %s4222 = smul.addr %s4221, 8
        %s4223 = scalar_lea.vmem %s5, %s4222
      $region52: #{sbgc_forward.1} parent=47 // pred_fallthru
        _
    $region48: #{sbgc_forward.1} parent=5 // pred_fallthru
      _
  $region6: #{sbgc_forward.1} parent=0 // loop_footer
    %s15 = sadd.s32 1, %s11
  $region7: #{sbgc_forward.1} parent=0 // loop_footer_branch
    %10 = sbr.rel target = $region3
  $region8: #{sbgc_forward.1} parent=0 // loop_exit
    _

</llo_original>
